<compile_context>
chip_gen: v7x
topology: tpu7x:2x2x1
jax: 0.10.0
libtpu: 0.0.40
codegen_flags: <defaults>
</compile_context>

<pallas_src>
import math

import jax
import jax.numpy as jnp
from jax.experimental import pallas as pl
from jax.experimental.pallas import tpu as pltpu


# ----------------------------------------------------------------------------
# Pallas plumbing helpers
# ----------------------------------------------------------------------------
def _full_spec(shape):
    n = len(shape)
    return pl.BlockSpec(tuple(shape), lambda i, n=n: (0,) * n)


def _call(kernel, inputs, out_shapes, scratch_shapes=()):
    single = not isinstance(out_shapes, (list, tuple))
    outs = [out_shapes] if single else list(out_shapes)
    fn = pl.pallas_call(
        kernel,
        grid=(1,),
        in_specs=[_full_spec(x.shape) for x in inputs],
        out_specs=[_full_spec(o.shape) for o in outs],
        out_shape=outs,
        scratch_shapes=list(scratch_shapes),
    )
    res = fn(*inputs)
    return res[0] if single else res


# ----------------------------------------------------------------------------
# Single fused PS_Mixer kernel
#   (BiLSTM->LN->BiLSTM per modality) + masked-mean + projections + Swin
#   stand-in + swimT_fusion MLP.  All intermediates stay in VMEM.
# ----------------------------------------------------------------------------
def _ps_mixer_kernel(
    vid_ref,        # [T, B, Dv]
    aco_ref,        # [T, B, Da]
    bert_ref,       # [B, L, 768]
    mask_ref,       # [B, L]
    # video BiLSTM stack (packed: interleaved per-gate cols, block-diag Whh)
    vwih1_ref, vwhh1_ref, vb1_ref, vlng_ref, vlnb_ref, vwih2_ref, vwhh2_ref, vb2_ref,
    # audio BiLSTM stack
    awih1_ref, awhh1_ref, ab1_ref, alng_ref, alnb_ref, awih2_ref, awhh2_ref, ab2_ref,
    # project_t / project_v / project_a  (Linear -> ReLU -> LayerNorm)
    ptw_ref, ptb_ref, ptg_ref, ptbe_ref,
    pvw_ref, pvb_ref, pvg_ref, pvbe_ref,
    paw_ref, pab_ref, pag_ref, pabe_ref,
    # Swin stand-in (upsample+pool folded into per-modality weights) + fusion MLP
    swt_ref, swv_ref, swa_ref, swb_ref, fw1_ref, fw2_ref,
    # output
    o_ref,          # [B, n_cls]
    # scratch: video then audio
    vgx_ref, vh1f_ref, vh1b_ref, vh_ref, vc_ref,
    agx_ref, ah1f_ref, ah1b_ref, ah_ref, ac_ref,
):
    # ---------------- per-modality BiLSTM stack -> utterance [B, 4H] ----------
    def bilstm_utterance(x_ref, wih1_ref, whh1_ref, b1_ref, lng_ref, lnb_ref,
                         wih2_ref, whh2_ref, b2_ref,
                         gx_ref, h1f_ref, h1b_ref, h_ref, c_ref):
        T = x_ref.shape[0]
        B = x_ref.shape[1]
        G = wih1_ref.shape[1]      # 8H (both directions, 4 gates, interleaved)
        H2 = whh1_ref.shape[0]     # 2H
        H = H2 // 2

        # Hoisted loop-invariant values.
        wih1 = wih1_ref[...]
        whh1 = whh1_ref[...]
        wih2 = wih2_ref[...]
        whh2 = whh2_ref[...]
        gamma = lng_ref[...]
        beta = lnb_ref[...]
        b1 = jnp.broadcast_to(b1_ref[...], (B, G))
        b2 = jnp.broadcast_to(b2_ref[...], (B, G))
        col = jax.lax.broadcasted_iota(jnp.int32, (1, G), 1)
        is_fwd = (col % H2) < H    # first H lanes of every 2H gate block = fwd dir

        def combine_directions():
            # In-place pairwise swap so gx[t] holds fwd gate-inputs for step t and
            # bwd gate-inputs for step T-1-t.  Keeps the serial recurrence down to
            # a single gate load per step (no per-step reverse-indexed load+select).
            @pl.loop(0, (T + 1) // 2)
            def _(t):
                tb = T - 1 - t
                ga = gx_ref[t]
                gb = gx_ref[tb]
                gx_ref[t] = jnp.where(is_fwd, ga, gb)
                gx_ref[tb] = jnp.where(is_fwd, gb, ga)

        def lstm_cell(gates):
            # Interleaved gate layout: [i_f,i_b | f_f,f_b | g_f,g_b | o_f,o_b]
            i = jax.nn.sigmoid(gates[:, 0:H2])
            f = jax.nn.sigmoid(gates[:, H2:2 * H2])
            g = jnp.tanh(gates[:, 2 * H2:3 * H2])
            o = jax.nn.sigmoid(gates[:, 3 * H2:4 * H2])
            c = f * c_ref[...] + i * g
            h = o * jnp.tanh(c)
            c_ref[...] = c
            h_ref[...] = h
            return h

        # ---- RNN1: input projection hoisted off the recurrence critical path ----
        @pl.loop(0, T)
        def _(t):
            gx_ref[t] = jnp.dot(x_ref[t], wih1,
                                preferred_element_type=jnp.float32) + b1
        combine_directions()

        # ---- RNN1: fused fwd/bwd recurrence (one MXU matmul per step) ----
        h_ref[...] = jnp.zeros_like(h_ref)
        c_ref[...] = jnp.zeros_like(c_ref)

        @pl.loop(0, T)
        def _(t):
            gates = gx_ref[t] + jnp.dot(h_ref[...], whh1,
                                        preferred_element_type=jnp.float32)
            h = lstm_cell(gates)
            h1f_ref[t] = h[:, 0:H]
            h1b_ref[T - 1 - t] = h[:, H:H2]

        # fwd final = h(T-1); bwd final = h after consuming x[0]  (both in h_ref)
        h1_fin = h_ref[...]

        # ---- LayerNorm(h1_seq) + RNN2 input projection (parallel pre-loop) ----
        @pl.loop(0, T)
        def _(t):
            h1 = jnp.concatenate([h1f_ref[t], h1b_ref[t]], axis=-1)   # [B, 2H]
            mu = jnp.mean(h1, axis=-1, keepdims=True)
            var = jnp.mean(jnp.square(h1 - mu), axis=-1, keepdims=True)
            normed = (h1 - mu) * jax.lax.rsqrt(var + 1e-5) * gamma + beta
            gx_ref[t] = jnp.dot(normed, wih2,
                                preferred_element_type=jnp.float32) + b2
        combine_directions()

        # ---- RNN2: fused fwd/bwd recurrence, final hidden only ----
        h_ref[...] = jnp.zeros_like(h_ref)
        c_ref[...] = jnp.zeros_like(c_ref)

        @pl.loop(0, T)
        def _(t):
            gates = gx_ref[t] + jnp.dot(h_ref[...], whh2,
                                        preferred_element_type=jnp.float32)
            lstm_cell(gates)

        h2_fin = h_ref[...]

        # Batch-major utterance: cat((h1,h2),2).permute(1,0,2).view(B,-1)
        # -> layout [h1_fwd, h2_fwd, h1_bwd, h2_bwd]
        return jnp.concatenate(
            [h1_fin[:, 0:H], h2_fin[:, 0:H], h1_fin[:, H:H2], h2_fin[:, H:H2]],
            axis=-1)

    utt_v = bilstm_utterance(vid_ref, vwih1_ref, vwhh1_ref, vb1_ref, vlng_ref,
                             vlnb_ref, vwih2_ref, vwhh2_ref, vb2_ref,
                             vgx_ref, vh1f_ref, vh1b_ref, vh_ref, vc_ref)
    utt_a = bilstm_utterance(aco_ref, awih1_ref, awhh1_ref, ab1_ref, alng_ref,
                             alnb_ref, awih2_ref, awhh2_ref, ab2_ref,
                             agx_ref, ah1f_ref, ah1b_ref, ah_ref, ac_ref)

    # ---------------- BERT masked mean -> utterance_text ----------------------
    bert = bert_ref[...]                       # [B, L, 768]
    m = mask_ref[...]                          # [B, L]
    utt_t = jnp.sum(bert * m[:, :, None], axis=1) / jnp.sum(m, axis=1, keepdims=True)

    # ---------------- project_{t,v,a}: Linear -> ReLU -> LayerNorm ------------
    def proj_ln(x, w, b, g, be):
        y = jnp.dot(x, w, preferred_element_type=jnp.float32) + b
        y = jnp.maximum(y, 0.0)                # config.activation assumed ReLU
        mu = jnp.mean(y, axis=-1, keepdims=True)
        var = jnp.mean(jnp.square(y - mu), axis=-1, keepdims=True)
        return (y - mu) * jax.lax.rsqrt(var + 1e-5) * g + be

    t = proj_ln(utt_t, ptw_ref[...], ptb_ref[...], ptg_ref[...], ptbe_ref[...])
    v = proj_ln(utt_v, pvw_ref[...], pvb_ref[...], pvg_ref[...], pvbe_ref[...])
    a = proj_ln(utt_a, paw_ref[...], pab_ref[...], pag_ref[...], pabe_ref[...])

    # Swin stand-in (upsample-x14 + 4x4 avg-pool + Linear) pre-folded per modality.
    swim = (jnp.dot(t, swt_ref[...], preferred_element_type=jnp.float32)
            + jnp.dot(v, swv_ref[...], preferred_element_type=jnp.float32)
            + jnp.dot(a, swa_ref[...], preferred_element_type=jnp.float32)
            + swb_ref[...])

    # swimT_fusion: Linear(no bias) -> Dropout(eval: identity) -> ReLU -> Linear(no bias)
    h = jnp.maximum(jnp.dot(swim, fw1_ref[...],
                            preferred_element_type=jnp.float32), 0.0)
    o_ref[...] = jnp.dot(h, fw2_ref[...], preferred_element_type=jnp.float32)


# ----------------------------------------------------------------------------
# PS_Mixer forward (eval mode: dropout = identity)
# ----------------------------------------------------------------------------
def ps_mixer_forward(pre, video, acoustic, lengths, bert_sent, bert_sent_type,
                     bert_sent_mask, hidden_size):
    # TODO(synk): BertModel('bert-base-uncased') is an external pretrained backbone;
    # replaced with a deterministic embedding-sum stand-in producing [B, L, 768].
    bert_output = (pre["bert_word_emb"][bert_sent]
                   + pre["bert_type_emb"][bert_sent_type])

    # TODO(synk): pack_padded_sequence with variable lengths is not modeled;
    # all sequences are treated as full-length.
    T, B, _ = video.shape
    vr1, vr2 = pre["vrnn1_packed"], pre["vrnn2_packed"]
    ar1, ar2 = pre["arnn1_packed"], pre["arnn2_packed"]
    Hv, Gv = vr1[1].shape[0] // 2, vr1[0].shape[1]
    Ha, Ga = ar1[1].shape[0] // 2, ar1[0].shape[1]

    pt, pv, pa = pre["project_t"], pre["project_v"], pre["project_a"]
    inputs = [
        video, acoustic, bert_output, bert_sent_mask,
        vr1[0], vr1[1], vr1[2], pre["vln_g"], pre["vln_b"], vr2[0], vr2[1], vr2[2],
        ar1[0], ar1[1], ar1[2], pre["aln_g"], pre["aln_b"], ar2[0], ar2[1], ar2[2],
        pt["w"], pt["b"], pt["g"], pt["beta"],
        pv["w"], pv["b"], pv["g"], pv["beta"],
        pa["w"], pa["b"], pa["g"], pa["beta"],
        pre["swin_wt"], pre["swin_wv"], pre["swin_wa"], pre["swin_b"],
        pre["fusion_w1"], pre["fusion_w2"],
    ]
    scratch = [
        # video: precomputed input gates, rnn1 fwd/bwd hidden seq, h/c states
        pltpu.VMEM((T, B, Gv), jnp.float32),
        pltpu.VMEM((T, B, Hv), jnp.float32),
        pltpu.VMEM((T, B, Hv), jnp.float32),
        pltpu.VMEM((B, 2 * Hv), jnp.float32),
        pltpu.VMEM((B, 2 * Hv), jnp.float32),
        # audio
        pltpu.VMEM((T, B, Ga), jnp.float32),
        pltpu.VMEM((T, B, Ha), jnp.float32),
        pltpu.VMEM((T, B, Ha), jnp.float32),
        pltpu.VMEM((B, 2 * Ha), jnp.float32),
        pltpu.VMEM((B, 2 * Ha), jnp.float32),
    ]
    n_cls = pre["fusion_w2"].shape[1]
    o7 = _call(
        _ps_mixer_kernel,
        inputs,
        jax.ShapeDtypeStruct((B, n_cls), jnp.float32),
        scratch_shapes=scratch,
    )
    return o7


# ----------------------------------------------------------------------------
# Parameter construction & one-time prepacking
# ----------------------------------------------------------------------------
def _lstm_params(key, d_in, h):
    ks = jax.random.split(key, 6)
    sc = 0.2
    return {
        "wih_f": sc * jax.random.normal(ks[0], (d_in, 4 * h), jnp.float32),
        "whh_f": sc * jax.random.normal(ks[1], (h, 4 * h), jnp.float32),
        "b_f": sc * jax.random.normal(ks[2], (1, 4 * h), jnp.float32),
        "wih_b": sc * jax.random.normal(ks[3], (d_in, 4 * h), jnp.float32),
        "whh_b": sc * jax.random.normal(ks[4], (h, 4 * h), jnp.float32),
        "b_b": sc * jax.random.normal(ks[5], (1, 4 * h), jnp.float32),
    }


def _project_params(key, d_in, d_out):
    k1, k2 = jax.random.split(key)
    return {
        "w": 0.1 * jax.random.normal(k1, (d_in, d_out), jnp.float32),
        "b": 0.1 * jax.random.normal(k2, (1, d_out), jnp.float32),
        "g": jnp.ones((1, d_out), jnp.float32),
        "beta": jnp.zeros((1, d_out), jnp.float32),
    }


def init_params(key, vis, aco, hidden, n_cls, vocab=30, bert_dim=768, swin_in=588):
    keys = jax.random.split(key, 16)
    return {
        "bert_word_emb": 0.1 * jax.random.normal(keys[0], (vocab, bert_dim), jnp.float32),
        "bert_type_emb": 0.1 * jax.random.normal(keys[1], (2, bert_dim), jnp.float32),
        "vrnn1": _lstm_params(keys[2], vis, vis),
        "vrnn2": _lstm_params(keys[3], 2 * vis, vis),
        "arnn1": _lstm_params(keys[4], aco, aco),
        "arnn2": _lstm_params(keys[5], 2 * aco, aco),
        "vln_g": jnp.ones((1, 1, 2 * vis), jnp.float32),
        "vln_b": jnp.zeros((1, 1, 2 * vis), jnp.float32),
        "aln_g": jnp.ones((1, 1, 2 * aco), jnp.float32),
        "aln_b": jnp.zeros((1, 1, 2 * aco), jnp.float32),
        "project_t": _project_params(keys[6], bert_dim, hidden),
        "project_v": _project_params(keys[7], 4 * vis, hidden),
        "project_a": _project_params(keys[8], 4 * aco, hidden),
        "swin_w": 0.05 * jax.random.normal(keys[9], (swin_in, 1000), jnp.float32),
        "swin_b": 0.05 * jax.random.normal(keys[10], (1, 1000), jnp.float32),
        "fusion_w1": 0.05 * jax.random.normal(keys[11], (1000, 6 * hidden), jnp.float32),
        "fusion_w2": 0.05 * jax.random.normal(keys[12], (6 * hidden, n_cls), jnp.float32),
    }


def _pack_bilstm(p, h):
    """Pack fwd/bwd LSTM weights into a single interleaved/block-diag layout.

    Column layout (width 8H): [i_f,i_b | f_f,f_b | g_f,g_b | o_f,o_b], each block H wide.
    """
    def interleave_cols(wf, wb):
        k = wf.shape[0]
        wf4 = wf.reshape(k, 4, h)
        wb4 = wb.reshape(k, 4, h)
        return jnp.concatenate([wf4, wb4], axis=2).reshape(k, 8 * h)

    wih_fb = interleave_cols(p["wih_f"], p["wih_b"])        # [D, 8H]
    b_fb = interleave_cols(p["b_f"], p["b_b"])              # [1, 8H]
    z = jnp.zeros((h, 4, h), jnp.float32)
    top = jnp.concatenate([p["whh_f"].reshape(h, 4, h), z], axis=2)   # fwd rows
    bot = jnp.concatenate([z, p["whh_b"].reshape(h, 4, h)], axis=2)   # bwd rows
    whh_fb = jnp.concatenate([top, bot], axis=0).reshape(2 * h, 8 * h)
    return wih_fb, whh_fb, b_fb


def _upsample_pool_matrix(s, scale=14, pool=4):
    """Linear map equivalent to nearest-x`scale` upsample followed by `pool`x`pool`
    average pooling on an s x s grid, flattened row-major on both sides."""
    up = scale * s
    assert up % pool == 0
    p = up // pool
    rows_up = jnp.arange(up) // scale                         # up row -> input row
    one_hot = jax.nn.one_hot(rows_up, s, dtype=jnp.float32)   # [up, s]
    a = one_hot.reshape(p, pool, s).mean(axis=1)              # [P, s]
    m = jnp.einsum('ir,jc->rcij', a, a).reshape(s * s, p * p) # [s*s, P*P]
    return m


def prepack_params(params, hidden_size):
    s = int(math.sqrt(hidden_size))
    pre = {
        "bert_word_emb": params["bert_word_emb"],
        "bert_type_emb": params["bert_type_emb"],
        "project_t": params["project_t"],
        "project_v": params["project_v"],
        "project_a": params["project_a"],
        "swin_b": params["swin_b"],
        "fusion_w1": params["fusion_w1"],
        "fusion_w2": params["fusion_w2"],
    }
    for name in ("v", "a"):
        h = params[f"{name}rnn1"]["whh_f"].shape[0]
        pre[f"{name}rnn1_packed"] = _pack_bilstm(params[f"{name}rnn1"], h)
        pre[f"{name}rnn2_packed"] = _pack_bilstm(params[f"{name}rnn2"], h)
        pre[f"{name}ln_g"] = params[f"{name}ln_g"].reshape(1, -1)
        pre[f"{name}ln_b"] = params[f"{name}ln_b"].reshape(1, -1)

    # TODO(synk): SwinTransformer backbone is an external model; replaced by a
    # deterministic (upsample-x14 + 4x4 avg-pool + Linear->1000) stand-in whose
    # pooling is folded here into per-modality weight matrices so the 196x
    # upsampled image is never materialized.
    m = _upsample_pool_matrix(s)
    p2 = m.shape[1]
    sw = params["swin_w"]
    pre["swin_wt"] = m @ sw[0:p2]
    pre["swin_wv"] = m @ sw[p2:2 * p2]
    pre["swin_wa"] = m @ sw[2 * p2:3 * p2]
    return pre


# ----------------------------------------------------------------------------
# Main
# ----------------------------------------------------------------------------
if __name__ == "__main__":
    B, T, L = 2, 8, 8
    VIS, ACO, HIDDEN, N_CLS = 8, 8, 16, 1   # hidden_size must be a perfect square

    key = jax.random.PRNGKey(0)
    k_par, k_v, k_a, k_s = jax.random.split(key, 4)

    s = int(math.sqrt(HIDDEN))
    swin_in = 3 * (s * 14 // 4) * (s * 14 // 4)
    params = init_params(k_par, VIS, ACO, HIDDEN, N_CLS, swin_in=swin_in)
    pre = prepack_params(params, HIDDEN)

    video = jax.random.normal(k_v, (T, B, VIS), jnp.float32)
    acoustic = jax.random.normal(k_a, (T, B, ACO), jnp.float32)
    lengths = jnp.full((B,), T, dtype=jnp.int32)
    bert_sent = jax.random.randint(k_s, (B, L), 0, 30)
    bert_sent_type = jnp.zeros((B, L), jnp.int32)
    bert_sent_mask = jnp.ones((B, L), jnp.float32).at[1, 6:].set(0.0)

    fwd = jax.jit(lambda v, a, ln, bs, bt, bm: ps_mixer_forward(
        pre, v, a, ln, bs, bt, bm, HIDDEN))
    out = fwd(video, acoustic, lengths, bert_sent, bert_sent_type, bert_sent_mask)
    out = jax.block_until_ready(out)

    assert out.shape == (B, N_CLS), out.shape
    assert bool(jnp.all(jnp.isfinite(out)))
    print("KERNEL_OK")
</pallas_src>

<mosaic_0001>
module attributes {stable_mosaic.version = 11 : i64} {
  func.func @_ps_mixer_kernel(%arg0: i32, %arg1: memref<8x2x8xf32, #tpu.memory_space<vmem>>, %arg2: memref<8x2x8xf32, #tpu.memory_space<vmem>>, %arg3: memref<2x8x768xf32, #tpu.memory_space<vmem>>, %arg4: memref<2x8xf32, #tpu.memory_space<vmem>>, %arg5: memref<8x64xf32, #tpu.memory_space<vmem>>, %arg6: memref<16x64xf32, #tpu.memory_space<vmem>>, %arg7: memref<1x64xf32, #tpu.memory_space<vmem>>, %arg8: memref<1x16xf32, #tpu.memory_space<vmem>>, %arg9: memref<1x16xf32, #tpu.memory_space<vmem>>, %arg10: memref<16x64xf32, #tpu.memory_space<vmem>>, %arg11: memref<16x64xf32, #tpu.memory_space<vmem>>, %arg12: memref<1x64xf32, #tpu.memory_space<vmem>>, %arg13: memref<8x64xf32, #tpu.memory_space<vmem>>, %arg14: memref<16x64xf32, #tpu.memory_space<vmem>>, %arg15: memref<1x64xf32, #tpu.memory_space<vmem>>, %arg16: memref<1x16xf32, #tpu.memory_space<vmem>>, %arg17: memref<1x16xf32, #tpu.memory_space<vmem>>, %arg18: memref<16x64xf32, #tpu.memory_space<vmem>>, %arg19: memref<16x64xf32, #tpu.memory_space<vmem>>, %arg20: memref<1x64xf32, #tpu.memory_space<vmem>>, %arg21: memref<768x16xf32, #tpu.memory_space<vmem>>, %arg22: memref<1x16xf32, #tpu.memory_space<vmem>>, %arg23: memref<1x16xf32, #tpu.memory_space<vmem>>, %arg24: memref<1x16xf32, #tpu.memory_space<vmem>>, %arg25: memref<32x16xf32, #tpu.memory_space<vmem>>, %arg26: memref<1x16xf32, #tpu.memory_space<vmem>>, %arg27: memref<1x16xf32, #tpu.memory_space<vmem>>, %arg28: memref<1x16xf32, #tpu.memory_space<vmem>>, %arg29: memref<32x16xf32, #tpu.memory_space<vmem>>, %arg30: memref<1x16xf32, #tpu.memory_space<vmem>>, %arg31: memref<1x16xf32, #tpu.memory_space<vmem>>, %arg32: memref<1x16xf32, #tpu.memory_space<vmem>>, %arg33: memref<16x1000xf32, #tpu.memory_space<vmem>>, %arg34: memref<16x1000xf32, #tpu.memory_space<vmem>>, %arg35: memref<16x1000xf32, #tpu.memory_space<vmem>>, %arg36: memref<1x1000xf32, #tpu.memory_space<vmem>>, %arg37: memref<1000x96xf32, #tpu.memory_space<vmem>>, %arg38: memref<96x1xf32, #tpu.memory_space<vmem>>, %arg39: memref<2x1xf32, #tpu.memory_space<vmem>>, %arg40: memref<8x2x64xf32, #tpu.memory_space<vmem>>, %arg41: memref<8x2x8xf32, #tpu.memory_space<vmem>>, %arg42: memref<8x2x8xf32, #tpu.memory_space<vmem>>, %arg43: memref<2x16xf32, #tpu.memory_space<vmem>>, %arg44: memref<2x16xf32, #tpu.memory_space<vmem>>, %arg45: memref<8x2x64xf32, #tpu.memory_space<vmem>>, %arg46: memref<8x2x8xf32, #tpu.memory_space<vmem>>, %arg47: memref<8x2x8xf32, #tpu.memory_space<vmem>>, %arg48: memref<2x16xf32, #tpu.memory_space<vmem>>, %arg49: memref<2x16xf32, #tpu.memory_space<vmem>>) attributes {dimension_semantics = [#tpu.dimension_semantics<arbitrary>], iteration_bounds = array<i64: 1>, scalar_prefetch = 0 : i64, scratch_operands = 10 : i64, tpu.core_type = #tpu.core_type<tc>, window_params = [{pipeline_mode = #tpu.pipeline_mode<synchronous>, transform_indices = @transform_0, window_bounds = array<i64: 8, 2, 8>}, {pipeline_mode = #tpu.pipeline_mode<synchronous>, transform_indices = @transform_1, window_bounds = array<i64: 8, 2, 8>}, {pipeline_mode = #tpu.pipeline_mode<synchronous>, transform_indices = @transform_2, window_bounds = array<i64: 2, 8, 768>}, {pipeline_mode = #tpu.pipeline_mode<synchronous>, transform_indices = @transform_3, window_bounds = array<i64: 2, 8>}, {pipeline_mode = #tpu.pipeline_mode<synchronous>, transform_indices = @transform_4, window_bounds = array<i64: 8, 64>}, {pipeline_mode = #tpu.pipeline_mode<synchronous>, transform_indices = @transform_5, window_bounds = array<i64: 16, 64>}, {pipeline_mode = #tpu.pipeline_mode<synchronous>, transform_indices = @transform_6, window_bounds = array<i64: 1, 64>}, {pipeline_mode = #tpu.pipeline_mode<synchronous>, transform_indices = @transform_7, window_bounds = array<i64: 1, 16>}, {pipeline_mode = #tpu.pipeline_mode<synchronous>, transform_indices = @transform_8, window_bounds = array<i64: 1, 16>}, {pipeline_mode = #tpu.pipeline_mode<synchronous>, transform_indices = @transform_9, window_bounds = array<i64: 16, 64>}, {pipeline_mode = #tpu.pipeline_mode<synchronous>, transform_indices = @transform_10, window_bounds = array<i64: 16, 64>}, {pipeline_mode = #tpu.pipeline_mode<synchronous>, transform_indices = @transform_11, window_bounds = array<i64: 1, 64>}, {pipeline_mode = #tpu.pipeline_mode<synchronous>, transform_indices = @transform_12, window_bounds = array<i64: 8, 64>}, {pipeline_mode = #tpu.pipeline_mode<synchronous>, transform_indices = @transform_13, window_bounds = array<i64: 16, 64>}, {pipeline_mode = #tpu.pipeline_mode<synchronous>, transform_indices = @transform_14, window_bounds = array<i64: 1, 64>}, {pipeline_mode = #tpu.pipeline_mode<synchronous>, transform_indices = @transform_15, window_bounds = array<i64: 1, 16>}, {pipeline_mode = #tpu.pipeline_mode<synchronous>, transform_indices = @transform_16, window_bounds = array<i64: 1, 16>}, {pipeline_mode = #tpu.pipeline_mode<synchronous>, transform_indices = @transform_17, window_bounds = array<i64: 16, 64>}, {pipeline_mode = #tpu.pipeline_mode<synchronous>, transform_indices = @transform_18, window_bounds = array<i64: 16, 64>}, {pipeline_mode = #tpu.pipeline_mode<synchronous>, transform_indices = @transform_19, window_bounds = array<i64: 1, 64>}, {pipeline_mode = #tpu.pipeline_mode<synchronous>, transform_indices = @transform_20, window_bounds = array<i64: 768, 16>}, {pipeline_mode = #tpu.pipeline_mode<synchronous>, transform_indices = @transform_21, window_bounds = array<i64: 1, 16>}, {pipeline_mode = #tpu.pipeline_mode<synchronous>, transform_indices = @transform_22, window_bounds = array<i64: 1, 16>}, {pipeline_mode = #tpu.pipeline_mode<synchronous>, transform_indices = @transform_23, window_bounds = array<i64: 1, 16>}, {pipeline_mode = #tpu.pipeline_mode<synchronous>, transform_indices = @transform_24, window_bounds = array<i64: 32, 16>}, {pipeline_mode = #tpu.pipeline_mode<synchronous>, transform_indices = @transform_25, window_bounds = array<i64: 1, 16>}, {pipeline_mode = #tpu.pipeline_mode<synchronous>, transform_indices = @transform_26, window_bounds = array<i64: 1, 16>}, {pipeline_mode = #tpu.pipeline_mode<synchronous>, transform_indices = @transform_27, window_bounds = array<i64: 1, 16>}, {pipeline_mode = #tpu.pipeline_mode<synchronous>, transform_indices = @transform_28, window_bounds = array<i64: 32, 16>}, {pipeline_mode = #tpu.pipeline_mode<synchronous>, transform_indices = @transform_29, window_bounds = array<i64: 1, 16>}, {pipeline_mode = #tpu.pipeline_mode<synchronous>, transform_indices = @transform_30, window_bounds = array<i64: 1, 16>}, {pipeline_mode = #tpu.pipeline_mode<synchronous>, transform_indices = @transform_31, window_bounds = array<i64: 1, 16>}, {pipeline_mode = #tpu.pipeline_mode<synchronous>, transform_indices = @transform_32, window_bounds = array<i64: 16, 1000>}, {pipeline_mode = #tpu.pipeline_mode<synchronous>, transform_indices = @transform_33, window_bounds = array<i64: 16, 1000>}, {pipeline_mode = #tpu.pipeline_mode<synchronous>, transform_indices = @transform_34, window_bounds = array<i64: 16, 1000>}, {pipeline_mode = #tpu.pipeline_mode<synchronous>, transform_indices = @transform_35, window_bounds = array<i64: 1, 1000>}, {pipeline_mode = #tpu.pipeline_mode<synchronous>, transform_indices = @transform_36, window_bounds = array<i64: 1000, 96>}, {pipeline_mode = #tpu.pipeline_mode<synchronous>, transform_indices = @transform_37, window_bounds = array<i64: 96, 1>}, {pipeline_mode = #tpu.pipeline_mode<synchronous>, transform_indices = @transform_38, window_bounds = array<i64: 2, 1>}]} {
    %c0 = arith.constant 0 : index
    %c0_0 = arith.constant 0 : index
    %0 = vector.load %arg5[%c0, %c0_0] : memref<8x64xf32, #tpu.memory_space<vmem>>, vector<8x64xf32>
    %c0_1 = arith.constant 0 : index
    %c0_2 = arith.constant 0 : index
    %1 = vector.load %arg6[%c0_1, %c0_2] : memref<16x64xf32, #tpu.memory_space<vmem>>, vector<16x64xf32>
    %c0_3 = arith.constant 0 : index
    %c0_4 = arith.constant 0 : index
    %2 = vector.load %arg10[%c0_3, %c0_4] : memref<16x64xf32, #tpu.memory_space<vmem>>, vector<16x64xf32>
    %c0_5 = arith.constant 0 : index
    %c0_6 = arith.constant 0 : index
    %3 = vector.load %arg11[%c0_5, %c0_6] : memref<16x64xf32, #tpu.memory_space<vmem>>, vector<16x64xf32>
    %c0_7 = arith.constant 0 : index
    %c0_8 = arith.constant 0 : index
    %4 = vector.load %arg8[%c0_7, %c0_8] : memref<1x16xf32, #tpu.memory_space<vmem>>, vector<1x16xf32>
    %c0_9 = arith.constant 0 : index
    %c0_10 = arith.constant 0 : index
    %5 = vector.load %arg9[%c0_9, %c0_10] : memref<1x16xf32, #tpu.memory_space<vmem>>, vector<1x16xf32>
    %c0_11 = arith.constant 0 : index
    %c0_12 = arith.constant 0 : index
    %6 = vector.load %arg7[%c0_11, %c0_12] : memref<1x64xf32, #tpu.memory_space<vmem>>, vector<1x64xf32>
    %7 = vector.shape_cast %6 : vector<1x64xf32> to vector<1x64xf32>
    %8 = vector.broadcast %7 : vector<1x64xf32> to vector<2x64xf32>
    %c0_13 = arith.constant 0 : index
    %c0_14 = arith.constant 0 : index
    %9 = vector.load %arg12[%c0_13, %c0_14] : memref<1x64xf32, #tpu.memory_space<vmem>>, vector<1x64xf32>
    %10 = vector.shape_cast %9 : vector<1x64xf32> to vector<1x64xf32>
    %11 = vector.broadcast %10 : vector<1x64xf32> to vector<2x64xf32>
    %12 = tpu.iota {dimensions = array<i32: 1>} : vector<1x64xi32>
    %c16_i32 = arith.constant 16 : i32
    %c0_i32 = arith.constant 0 : i32
    %13 = arith.cmpi eq, %c16_i32, %c0_i32 : i32
    %c1_i32 = arith.constant 1 : i32
    %14 = arith.select %13, %c1_i32, %c16_i32 : i32
    %15 = vector.broadcast %14 : i32 to vector<1x64xi32>
    %16 = arith.remsi %12, %15 : vector<1x64xi32>
    %c0_i32_15 = arith.constant 0 : i32
    %17 = vector.broadcast %c0_i32_15 : i32 to vector<1x64xi32>
    %18 = arith.cmpi ne, %16, %17 : vector<1x64xi32>
    %c0_i32_16 = arith.constant 0 : i32
    %19 = vector.broadcast %c0_i32_16 : i32 to vector<1x64xi32>
    %20 = arith.cmpi slt, %16, %19 : vector<1x64xi32>
    %c0_i32_17 = arith.constant 0 : i32
    %21 = arith.cmpi slt, %14, %c0_i32_17 : i32
    %22 = vector.broadcast %21 : i1 to vector<1x64xi1>
    %23 = vector.broadcast %22 : vector<1x64xi1> to vector<1x64xi1>
    %24 = arith.xori %20, %23 : vector<1x64xi1>
    %25 = arith.andi %24, %18 : vector<1x64xi1>
    %26 = vector.broadcast %14 : i32 to vector<1x64xi32>
    %27 = arith.addi %16, %26 : vector<1x64xi32>
    %28 = arith.select %25, %27, %16 : vector<1x64xi1>, vector<1x64xi32>
    %c8_i32 = arith.constant 8 : i32
    %29 = vector.broadcast %c8_i32 : i32 to vector<1x64xi32>
    %30 = arith.cmpi slt, %28, %29 : vector<1x64xi32>
    %c0_i32_18 = arith.constant 0 : i32
    %c8_i32_19 = arith.constant 8 : i32
    %31 = arith.addi %c0_i32_18, %c8_i32_19 : i32
    %c1_i32_20 = arith.constant 1 : i32
    scf.for %arg50 = %c0_i32_18 to %31 step %c1_i32_20  : i32 {
      %c1_i32_191 = arith.constant 1 : i32
      %225 = arith.muli %arg50, %c1_i32_191 : i32
      %c0_i32_192 = arith.constant 0 : i32
      %226 = arith.addi %c0_i32_192, %225 : i32
      %227 = arith.index_cast %226 : i32 to index
      %c0_193 = arith.constant 0 : index
      %c0_194 = arith.constant 0 : index
      %228 = vector.load %arg1[%227, %c0_193, %c0_194] : memref<8x2x8xf32, #tpu.memory_space<vmem>>, vector<1x2x8xf32>
      %229 = vector.shape_cast %228 : vector<1x2x8xf32> to vector<2x8xf32>
      %cst_195 = arith.constant dense<0.000000e+00> : vector<2x64xf32>
      %230 = tpu.matmul %229, %0, %cst_195 {dimension_numbers = #tpu.dot_dimension_numbers<[1], [0], [0], [1], [0, 0, 1, 1], [], []>} : vector<2x8xf32>, vector<8x64xf32>, vector<2x64xf32> -> vector<2x64xf32>
      %231 = arith.addf %230, %8 : vector<2x64xf32>
      %232 = arith.index_cast %226 : i32 to index
      %c0_196 = arith.constant 0 : index
      %c0_197 = arith.constant 0 : index
      %233 = vector.load %arg40[%232, %c0_196, %c0_197] : memref<8x2x64xf32, #tpu.memory_space<vmem>>, vector<1x2x64xf32>
      %234 = vector.shape_cast %233 : vector<1x2x64xf32> to vector<2x64xf32>
      %235 = vector.shape_cast %231 : vector<2x64xf32> to vector<1x2x64xf32>
      tpu.vector_store %arg40[%232, %c0_196, %c0_197], %235 {strides = array<i32>} : memref<8x2x64xf32, #tpu.memory_space<vmem>>, vector<1x2x64xf32>,
    }
    %c8_i32_21 = arith.constant 8 : i32
    %c0_i32_22 = arith.constant 0 : i32
    %c4_i32 = arith.constant 4 : i32
    %32 = arith.addi %c0_i32_22, %c4_i32 : i32
    %c1_i32_23 = arith.constant 1 : i32
    scf.for %arg50 = %c0_i32_22 to %32 step %c1_i32_23  : i32 {
      %c1_i32_191 = arith.constant 1 : i32
      %225 = arith.muli %arg50, %c1_i32_191 : i32
      %c0_i32_192 = arith.constant 0 : i32
      %226 = arith.addi %c0_i32_192, %225 : i32
      %c7_i32 = arith.constant 7 : i32
      %227 = arith.subi %c7_i32, %226 : i32
      %228 = arith.index_cast %226 : i32 to index
      %c0_193 = arith.constant 0 : index
      %c0_194 = arith.constant 0 : index
      %229 = vector.load %arg40[%228, %c0_193, %c0_194] : memref<8x2x64xf32, #tpu.memory_space<vmem>>, vector<1x2x64xf32>
      %230 = vector.shape_cast %229 : vector<1x2x64xf32> to vector<2x64xf32>
      %231 = arith.index_cast %227 : i32 to index
      %c0_195 = arith.constant 0 : index
      %c0_196 = arith.constant 0 : index
      %232 = vector.load %arg40[%231, %c0_195, %c0_196] : memref<8x2x64xf32, #tpu.memory_space<vmem>>, vector<1x2x64xf32>
      %233 = vector.shape_cast %232 : vector<1x2x64xf32> to vector<2x64xf32>
      %234 = vector.shape_cast %30 : vector<1x64xi1> to vector<1x64xi1>
      %235 = vector.broadcast %234 : vector<1x64xi1> to vector<2x64xi1>
      %236 = arith.select %235, %230, %233 : vector<2x64xi1>, vector<2x64xf32>
      %237 = arith.index_cast %226 : i32 to index
      %c0_197 = arith.constant 0 : index
      %c0_198 = arith.constant 0 : index
      %238 = vector.load %arg40[%237, %c0_197, %c0_198] : memref<8x2x64xf32, #tpu.memory_space<vmem>>, vector<1x2x64xf32>
      %239 = vector.shape_cast %238 : vector<1x2x64xf32> to vector<2x64xf32>
      %240 = vector.shape_cast %236 : vector<2x64xf32> to vector<1x2x64xf32>
      tpu.vector_store %arg40[%237, %c0_197, %c0_198], %240 {strides = array<i32>} : memref<8x2x64xf32, #tpu.memory_space<vmem>>, vector<1x2x64xf32>,
      %241 = vector.shape_cast %30 : vector<1x64xi1> to vector<1x64xi1>
      %242 = vector.broadcast %241 : vector<1x64xi1> to vector<2x64xi1>
      %243 = arith.select %242, %233, %230 : vector<2x64xi1>, vector<2x64xf32>
      %244 = arith.index_cast %227 : i32 to index
      %c0_199 = arith.constant 0 : index
      %c0_200 = arith.constant 0 : index
      %245 = vector.load %arg40[%244, %c0_199, %c0_200] : memref<8x2x64xf32, #tpu.memory_space<vmem>>, vector<1x2x64xf32>
      %246 = vector.shape_cast %245 : vector<1x2x64xf32> to vector<2x64xf32>
      %247 = vector.shape_cast %243 : vector<2x64xf32> to vector<1x2x64xf32>
      tpu.vector_store %arg40[%244, %c0_199, %c0_200], %247 {strides = array<i32>} : memref<8x2x64xf32, #tpu.memory_space<vmem>>, vector<1x2x64xf32>,
    }
    %c4_i32_24 = arith.constant 4 : i32
    %cst = arith.constant 0.000000e+00 : f32
    %33 = vector.broadcast %cst : f32 to vector<2x16xf32>
    %c0_25 = arith.constant 0 : index
    %c0_26 = arith.constant 0 : index
    %34 = vector.load %arg43[%c0_25, %c0_26] : memref<2x16xf32, #tpu.memory_space<vmem>>, vector<2x16xf32>
    tpu.vector_store %arg43[%c0_25, %c0_26], %33 {strides = array<i32>} : memref<2x16xf32, #tpu.memory_space<vmem>>, vector<2x16xf32>,
    %cst_27 = arith.constant 0.000000e+00 : f32
    %35 = vector.broadcast %cst_27 : f32 to vector<2x16xf32>
    %c0_28 = arith.constant 0 : index
    %c0_29 = arith.constant 0 : index
    %36 = vector.load %arg44[%c0_28, %c0_29] : memref<2x16xf32, #tpu.memory_space<vmem>>, vector<2x16xf32>
    tpu.vector_store %arg44[%c0_28, %c0_29], %35 {strides = array<i32>} : memref<2x16xf32, #tpu.memory_space<vmem>>, vector<2x16xf32>,
    %c0_i32_30 = arith.constant 0 : i32
    %c8_i32_31 = arith.constant 8 : i32
    %37 = arith.addi %c0_i32_30, %c8_i32_31 : i32
    %c1_i32_32 = arith.constant 1 : i32
    scf.for %arg50 = %c0_i32_30 to %37 step %c1_i32_32  : i32 {
      %c1_i32_191 = arith.constant 1 : i32
      %225 = arith.muli %arg50, %c1_i32_191 : i32
      %c0_i32_192 = arith.constant 0 : i32
      %226 = arith.addi %c0_i32_192, %225 : i32
      %227 = arith.index_cast %226 : i32 to index
      %c0_193 = arith.constant 0 : index
      %c0_194 = arith.constant 0 : index
      %228 = vector.load %arg40[%227, %c0_193, %c0_194] : memref<8x2x64xf32, #tpu.memory_space<vmem>>, vector<1x2x64xf32>
      %229 = vector.shape_cast %228 : vector<1x2x64xf32> to vector<2x64xf32>
      %c0_195 = arith.constant 0 : index
      %c0_196 = arith.constant 0 : index
      %230 = vector.load %arg43[%c0_195, %c0_196] : memref<2x16xf32, #tpu.memory_space<vmem>>, vector<2x16xf32>
      %cst_197 = arith.constant dense<0.000000e+00> : vector<2x64xf32>
      %231 = tpu.matmul %230, %1, %cst_197 {dimension_numbers = #tpu.dot_dimension_numbers<[1], [0], [0], [1], [0, 0, 1, 1], [], []>} : vector<2x16xf32>, vector<16x64xf32>, vector<2x64xf32> -> vector<2x64xf32>
      %232 = arith.addf %229, %231 : vector<2x64xf32>
      %233 = vector.extract_strided_slice %232 {offsets = [0, 0], sizes = [2, 16], strides = [1, 1]} : vector<2x64xf32> to vector<2x16xf32>
      %234 = arith.negf %233 : vector<2x16xf32>
      %235 = math.exp %234 : vector<2x16xf32>
      %cst_198 = arith.constant 1.000000e+00 : f32
      %236 = vector.broadcast %cst_198 : f32 to vector<2x16xf32>
      %237 = arith.addf %236, %235 : vector<2x16xf32>
      %238 = arith.divf %236, %237 : vector<2x16xf32>
      %239 = vector.extract_strided_slice %232 {offsets = [0, 16], sizes = [2, 16], strides = [1, 1]} : vector<2x64xf32> to vector<2x16xf32>
      %240 = arith.negf %239 : vector<2x16xf32>
      %241 = math.exp %240 : vector<2x16xf32>
      %cst_199 = arith.constant 1.000000e+00 : f32
      %242 = vector.broadcast %cst_199 : f32 to vector<2x16xf32>
      %243 = arith.addf %242, %241 : vector<2x16xf32>
      %244 = arith.divf %242, %243 : vector<2x16xf32>
      %245 = vector.extract_strided_slice %232 {offsets = [0, 32], sizes = [2, 16], strides = [1, 1]} : vector<2x64xf32> to vector<2x16xf32>
      %246 = math.tanh %245 : vector<2x16xf32>
      %247 = vector.extract_strided_slice %232 {offsets = [0, 48], sizes = [2, 16], strides = [1, 1]} : vector<2x64xf32> to vector<2x16xf32>
      %248 = arith.negf %247 : vector<2x16xf32>
      %249 = math.exp %248 : vector<2x16xf32>
      %cst_200 = arith.constant 1.000000e+00 : f32
      %250 = vector.broadcast %cst_200 : f32 to vector<2x16xf32>
      %251 = arith.addf %250, %249 : vector<2x16xf32>
      %252 = arith.divf %250, %251 : vector<2x16xf32>
      %c0_201 = arith.constant 0 : index
      %c0_202 = arith.constant 0 : index
      %253 = vector.load %arg44[%c0_201, %c0_202] : memref<2x16xf32, #tpu.memory_space<vmem>>, vector<2x16xf32>
      %254 = arith.mulf %244, %253 : vector<2x16xf32>
      %255 = arith.mulf %238, %246 : vector<2x16xf32>
      %256 = arith.addf %254, %255 : vector<2x16xf32>
      %257 = math.tanh %256 : vector<2x16xf32>
      %258 = arith.mulf %252, %257 : vector<2x16xf32>
      %c0_203 = arith.constant 0 : index
      %c0_204 = arith.constant 0 : index
      %259 = vector.load %arg44[%c0_203, %c0_204] : memref<2x16xf32, #tpu.memory_space<vmem>>, vector<2x16xf32>
      tpu.vector_store %arg44[%c0_203, %c0_204], %256 {strides = array<i32>} : memref<2x16xf32, #tpu.memory_space<vmem>>, vector<2x16xf32>,
      %c0_205 = arith.constant 0 : index
      %c0_206 = arith.constant 0 : index
      %260 = vector.load %arg43[%c0_205, %c0_206] : memref<2x16xf32, #tpu.memory_space<vmem>>, vector<2x16xf32>
      tpu.vector_store %arg43[%c0_205, %c0_206], %258 {strides = array<i32>} : memref<2x16xf32, #tpu.memory_space<vmem>>, vector<2x16xf32>,
      %261 = vector.extract_strided_slice %258 {offsets = [0, 0], sizes = [2, 8], strides = [1, 1]} : vector<2x16xf32> to vector<2x8xf32>
      %262 = arith.index_cast %226 : i32 to index
      %c0_207 = arith.constant 0 : index
      %c0_208 = arith.constant 0 : index
      %263 = vector.load %arg41[%262, %c0_207, %c0_208] : memref<8x2x8xf32, #tpu.memory_space<vmem>>, vector<1x2x8xf32>
      %264 = vector.shape_cast %263 : vector<1x2x8xf32> to vector<2x8xf32>
      %265 = vector.shape_cast %261 : vector<2x8xf32> to vector<1x2x8xf32>
      tpu.vector_store %arg41[%262, %c0_207, %c0_208], %265 {strides = array<i32>} : memref<8x2x8xf32, #tpu.memory_space<vmem>>, vector<1x2x8xf32>,
      %266 = vector.extract_strided_slice %258 {offsets = [0, 8], sizes = [2, 8], strides = [1, 1]} : vector<2x16xf32> to vector<2x8xf32>
      %c7_i32 = arith.constant 7 : i32
      %267 = arith.subi %c7_i32, %226 : i32
      %268 = arith.index_cast %267 : i32 to index
      %c0_209 = arith.constant 0 : index
      %c0_210 = arith.constant 0 : index
      %269 = vector.load %arg42[%268, %c0_209, %c0_210] : memref<8x2x8xf32, #tpu.memory_space<vmem>>, vector<1x2x8xf32>
      %270 = vector.shape_cast %269 : vector<1x2x8xf32> to vector<2x8xf32>
      %271 = vector.shape_cast %266 : vector<2x8xf32> to vector<1x2x8xf32>
      tpu.vector_store %arg42[%268, %c0_209, %c0_210], %271 {strides = array<i32>} : memref<8x2x8xf32, #tpu.memory_space<vmem>>, vector<1x2x8xf32>,
    }
    %c8_i32_33 = arith.constant 8 : i32
    %c0_34 = arith.constant 0 : index
    %c0_35 = arith.constant 0 : index
    %38 = vector.load %arg43[%c0_34, %c0_35] : memref<2x16xf32, #tpu.memory_space<vmem>>, vector<2x16xf32>
    %c0_i32_36 = arith.constant 0 : i32
    %c8_i32_37 = arith.constant 8 : i32
    %39 = arith.addi %c0_i32_36, %c8_i32_37 : i32
    %c1_i32_38 = arith.constant 1 : i32
    scf.for %arg50 = %c0_i32_36 to %39 step %c1_i32_38  : i32 {
      %c1_i32_191 = arith.constant 1 : i32
      %225 = arith.muli %arg50, %c1_i32_191 : i32
      %c0_i32_192 = arith.constant 0 : i32
      %226 = arith.addi %c0_i32_192, %225 : i32
      %227 = arith.index_cast %226 : i32 to index
      %c0_193 = arith.constant 0 : index
      %c0_194 = arith.constant 0 : index
      %228 = vector.load %arg41[%227, %c0_193, %c0_194] : memref<8x2x8xf32, #tpu.memory_space<vmem>>, vector<1x2x8xf32>
      %229 = vector.shape_cast %228 : vector<1x2x8xf32> to vector<2x8xf32>
      %230 = arith.index_cast %226 : i32 to index
      %c0_195 = arith.constant 0 : index
      %c0_196 = arith.constant 0 : index
      %231 = vector.load %arg42[%230, %c0_195, %c0_196] : memref<8x2x8xf32, #tpu.memory_space<vmem>>, vector<1x2x8xf32>
      %232 = vector.shape_cast %231 : vector<1x2x8xf32> to vector<2x8xf32>
      %233 = tpu.concatenate %229, %232 in 1 : vector<2x8xf32>, vector<2x8xf32> -> vector<2x16xf32>
      %cst_197 = arith.constant dense<0.000000e+00> : vector<2xf32>
      %234 = vector.multi_reduction <add>, %233, %cst_197 [1] : vector<2x16xf32> to vector<2xf32>
      %235 = vector.shape_cast %234 : vector<2xf32> to vector<2x1xf32>
      %cst_198 = arith.constant 1.600000e+01 : f32
      %236 = vector.broadcast %cst_198 : f32 to vector<2x1xf32>
      %237 = arith.divf %235, %236 : vector<2x1xf32>
      %238 = vector.broadcast %237 : vector<2x1xf32> to vector<2x16xf32>
      %239 = arith.subf %233, %238 : vector<2x16xf32>
      %240 = arith.mulf %239, %239 : vector<2x16xf32>
      %cst_199 = arith.constant dense<0.000000e+00> : vector<2xf32>
      %241 = vector.multi_reduction <add>, %240, %cst_199 [1] : vector<2x16xf32> to vector<2xf32>
      %242 = vector.shape_cast %241 : vector<2xf32> to vector<2x1xf32>
      %cst_200 = arith.constant 1.600000e+01 : f32
      %243 = vector.broadcast %cst_200 : f32 to vector<2x1xf32>
      %244 = arith.divf %242, %243 : vector<2x1xf32>
      %245 = vector.broadcast %237 : vector<2x1xf32> to vector<2x16xf32>
      %246 = arith.subf %233, %245 : vector<2x16xf32>
      %cst_201 = arith.constant 9.99999974E-6 : f32
      %247 = vector.broadcast %cst_201 : f32 to vector<2x1xf32>
      %248 = arith.addf %244, %247 : vector<2x1xf32>
      %249 = math.rsqrt %248 : vector<2x1xf32>
      %250 = vector.broadcast %249 : vector<2x1xf32> to vector<2x16xf32>
      %251 = arith.mulf %246, %250 : vector<2x16xf32>
      %252 = vector.broadcast %4 : vector<1x16xf32> to vector<2x16xf32>
      %253 = arith.mulf %251, %252 : vector<2x16xf32>
      %254 = vector.broadcast %5 : vector<1x16xf32> to vector<2x16xf32>
      %255 = arith.addf %253, %254 : vector<2x16xf32>
      %cst_202 = arith.constant dense<0.000000e+00> : vector<2x64xf32>
      %256 = tpu.matmul %255, %2, %cst_202 {dimension_numbers = #tpu.dot_dimension_numbers<[1], [0], [0], [1], [0, 0, 1, 1], [], []>} : vector<2x16xf32>, vector<16x64xf32>, vector<2x64xf32> -> vector<2x64xf32>
      %257 = arith.addf %256, %11 : vector<2x64xf32>
      %258 = arith.index_cast %226 : i32 to index
      %c0_203 = arith.constant 0 : index
      %c0_204 = arith.constant 0 : index
      %259 = vector.load %arg40[%258, %c0_203, %c0_204] : memref<8x2x64xf32, #tpu.memory_space<vmem>>, vector<1x2x64xf32>
      %260 = vector.shape_cast %259 : vector<1x2x64xf32> to vector<2x64xf32>
      %261 = vector.shape_cast %257 : vector<2x64xf32> to vector<1x2x64xf32>
      tpu.vector_store %arg40[%258, %c0_203, %c0_204], %261 {strides = array<i32>} : memref<8x2x64xf32, #tpu.memory_space<vmem>>, vector<1x2x64xf32>,
    }
    %c8_i32_39 = arith.constant 8 : i32
    %c0_i32_40 = arith.constant 0 : i32
    %c4_i32_41 = arith.constant 4 : i32
    %40 = arith.addi %c0_i32_40, %c4_i32_41 : i32
    %c1_i32_42 = arith.constant 1 : i32
    scf.for %arg50 = %c0_i32_40 to %40 step %c1_i32_42  : i32 {
      %c1_i32_191 = arith.constant 1 : i32
      %225 = arith.muli %arg50, %c1_i32_191 : i32
      %c0_i32_192 = arith.constant 0 : i32
      %226 = arith.addi %c0_i32_192, %225 : i32
      %c7_i32 = arith.constant 7 : i32
      %227 = arith.subi %c7_i32, %226 : i32
      %228 = arith.index_cast %226 : i32 to index
      %c0_193 = arith.constant 0 : index
      %c0_194 = arith.constant 0 : index
      %229 = vector.load %arg40[%228, %c0_193, %c0_194] : memref<8x2x64xf32, #tpu.memory_space<vmem>>, vector<1x2x64xf32>
      %230 = vector.shape_cast %229 : vector<1x2x64xf32> to vector<2x64xf32>
      %231 = arith.index_cast %227 : i32 to index
      %c0_195 = arith.constant 0 : index
      %c0_196 = arith.constant 0 : index
      %232 = vector.load %arg40[%231, %c0_195, %c0_196] : memref<8x2x64xf32, #tpu.memory_space<vmem>>, vector<1x2x64xf32>
      %233 = vector.shape_cast %232 : vector<1x2x64xf32> to vector<2x64xf32>
      %234 = vector.shape_cast %30 : vector<1x64xi1> to vector<1x64xi1>
      %235 = vector.broadcast %234 : vector<1x64xi1> to vector<2x64xi1>
      %236 = arith.select %235, %230, %233 : vector<2x64xi1>, vector<2x64xf32>
      %237 = arith.index_cast %226 : i32 to index
      %c0_197 = arith.constant 0 : index
      %c0_198 = arith.constant 0 : index
      %238 = vector.load %arg40[%237, %c0_197, %c0_198] : memref<8x2x64xf32, #tpu.memory_space<vmem>>, vector<1x2x64xf32>
      %239 = vector.shape_cast %238 : vector<1x2x64xf32> to vector<2x64xf32>
      %240 = vector.shape_cast %236 : vector<2x64xf32> to vector<1x2x64xf32>
      tpu.vector_store %arg40[%237, %c0_197, %c0_198], %240 {strides = array<i32>} : memref<8x2x64xf32, #tpu.memory_space<vmem>>, vector<1x2x64xf32>,
      %241 = vector.shape_cast %30 : vector<1x64xi1> to vector<1x64xi1>
      %242 = vector.broadcast %241 : vector<1x64xi1> to vector<2x64xi1>
      %243 = arith.select %242, %233, %230 : vector<2x64xi1>, vector<2x64xf32>
      %244 = arith.index_cast %227 : i32 to index
      %c0_199 = arith.constant 0 : index
      %c0_200 = arith.constant 0 : index
      %245 = vector.load %arg40[%244, %c0_199, %c0_200] : memref<8x2x64xf32, #tpu.memory_space<vmem>>, vector<1x2x64xf32>
      %246 = vector.shape_cast %245 : vector<1x2x64xf32> to vector<2x64xf32>
      %247 = vector.shape_cast %243 : vector<2x64xf32> to vector<1x2x64xf32>
      tpu.vector_store %arg40[%244, %c0_199, %c0_200], %247 {strides = array<i32>} : memref<8x2x64xf32, #tpu.memory_space<vmem>>, vector<1x2x64xf32>,
    }
    %c4_i32_43 = arith.constant 4 : i32
    %cst_44 = arith.constant 0.000000e+00 : f32
    %41 = vector.broadcast %cst_44 : f32 to vector<2x16xf32>
    %c0_45 = arith.constant 0 : index
    %c0_46 = arith.constant 0 : index
    %42 = vector.load %arg43[%c0_45, %c0_46] : memref<2x16xf32, #tpu.memory_space<vmem>>, vector<2x16xf32>
    tpu.vector_store %arg43[%c0_45, %c0_46], %41 {strides = array<i32>} : memref<2x16xf32, #tpu.memory_space<vmem>>, vector<2x16xf32>,
    %cst_47 = arith.constant 0.000000e+00 : f32
    %43 = vector.broadcast %cst_47 : f32 to vector<2x16xf32>
    %c0_48 = arith.constant 0 : index
    %c0_49 = arith.constant 0 : index
    %44 = vector.load %arg44[%c0_48, %c0_49] : memref<2x16xf32, #tpu.memory_space<vmem>>, vector<2x16xf32>
    tpu.vector_store %arg44[%c0_48, %c0_49], %43 {strides = array<i32>} : memref<2x16xf32, #tpu.memory_space<vmem>>, vector<2x16xf32>,
    %c0_i32_50 = arith.constant 0 : i32
    %c8_i32_51 = arith.constant 8 : i32
    %45 = arith.addi %c0_i32_50, %c8_i32_51 : i32
    %c1_i32_52 = arith.constant 1 : i32
    scf.for %arg50 = %c0_i32_50 to %45 step %c1_i32_52  : i32 {
      %c1_i32_191 = arith.constant 1 : i32
      %225 = arith.muli %arg50, %c1_i32_191 : i32
      %c0_i32_192 = arith.constant 0 : i32
      %226 = arith.addi %c0_i32_192, %225 : i32
      %227 = arith.index_cast %226 : i32 to index
      %c0_193 = arith.constant 0 : index
      %c0_194 = arith.constant 0 : index
      %228 = vector.load %arg40[%227, %c0_193, %c0_194] : memref<8x2x64xf32, #tpu.memory_space<vmem>>, vector<1x2x64xf32>
      %229 = vector.shape_cast %228 : vector<1x2x64xf32> to vector<2x64xf32>
      %c0_195 = arith.constant 0 : index
      %c0_196 = arith.constant 0 : index
      %230 = vector.load %arg43[%c0_195, %c0_196] : memref<2x16xf32, #tpu.memory_space<vmem>>, vector<2x16xf32>
      %cst_197 = arith.constant dense<0.000000e+00> : vector<2x64xf32>
      %231 = tpu.matmul %230, %3, %cst_197 {dimension_numbers = #tpu.dot_dimension_numbers<[1], [0], [0], [1], [0, 0, 1, 1], [], []>} : vector<2x16xf32>, vector<16x64xf32>, vector<2x64xf32> -> vector<2x64xf32>
      %232 = arith.addf %229, %231 : vector<2x64xf32>
      %233 = vector.extract_strided_slice %232 {offsets = [0, 0], sizes = [2, 16], strides = [1, 1]} : vector<2x64xf32> to vector<2x16xf32>
      %234 = arith.negf %233 : vector<2x16xf32>
      %235 = math.exp %234 : vector<2x16xf32>
      %cst_198 = arith.constant 1.000000e+00 : f32
      %236 = vector.broadcast %cst_198 : f32 to vector<2x16xf32>
      %237 = arith.addf %236, %235 : vector<2x16xf32>
      %238 = arith.divf %236, %237 : vector<2x16xf32>
      %239 = vector.extract_strided_slice %232 {offsets = [0, 16], sizes = [2, 16], strides = [1, 1]} : vector<2x64xf32> to vector<2x16xf32>
      %240 = arith.negf %239 : vector<2x16xf32>
      %241 = math.exp %240 : vector<2x16xf32>
      %cst_199 = arith.constant 1.000000e+00 : f32
      %242 = vector.broadcast %cst_199 : f32 to vector<2x16xf32>
      %243 = arith.addf %242, %241 : vector<2x16xf32>
      %244 = arith.divf %242, %243 : vector<2x16xf32>
      %245 = vector.extract_strided_slice %232 {offsets = [0, 32], sizes = [2, 16], strides = [1, 1]} : vector<2x64xf32> to vector<2x16xf32>
      %246 = math.tanh %245 : vector<2x16xf32>
      %247 = vector.extract_strided_slice %232 {offsets = [0, 48], sizes = [2, 16], strides = [1, 1]} : vector<2x64xf32> to vector<2x16xf32>
      %248 = arith.negf %247 : vector<2x16xf32>
      %249 = math.exp %248 : vector<2x16xf32>
      %cst_200 = arith.constant 1.000000e+00 : f32
      %250 = vector.broadcast %cst_200 : f32 to vector<2x16xf32>
      %251 = arith.addf %250, %249 : vector<2x16xf32>
      %252 = arith.divf %250, %251 : vector<2x16xf32>
      %c0_201 = arith.constant 0 : index
      %c0_202 = arith.constant 0 : index
      %253 = vector.load %arg44[%c0_201, %c0_202] : memref<2x16xf32, #tpu.memory_space<vmem>>, vector<2x16xf32>
      %254 = arith.mulf %244, %253 : vector<2x16xf32>
      %255 = arith.mulf %238, %246 : vector<2x16xf32>
      %256 = arith.addf %254, %255 : vector<2x16xf32>
      %257 = math.tanh %256 : vector<2x16xf32>
      %258 = arith.mulf %252, %257 : vector<2x16xf32>
      %c0_203 = arith.constant 0 : index
      %c0_204 = arith.constant 0 : index
      %259 = vector.load %arg44[%c0_203, %c0_204] : memref<2x16xf32, #tpu.memory_space<vmem>>, vector<2x16xf32>
      tpu.vector_store %arg44[%c0_203, %c0_204], %256 {strides = array<i32>} : memref<2x16xf32, #tpu.memory_space<vmem>>, vector<2x16xf32>,
      %c0_205 = arith.constant 0 : index
      %c0_206 = arith.constant 0 : index
      %260 = vector.load %arg43[%c0_205, %c0_206] : memref<2x16xf32, #tpu.memory_space<vmem>>, vector<2x16xf32>
      tpu.vector_store %arg43[%c0_205, %c0_206], %258 {strides = array<i32>} : memref<2x16xf32, #tpu.memory_space<vmem>>, vector<2x16xf32>,
    }
    %c8_i32_53 = arith.constant 8 : i32
    %c0_54 = arith.constant 0 : index
    %c0_55 = arith.constant 0 : index
    %46 = vector.load %arg43[%c0_54, %c0_55] : memref<2x16xf32, #tpu.memory_space<vmem>>, vector<2x16xf32>
    %47 = vector.extract_strided_slice %38 {offsets = [0, 0], sizes = [2, 8], strides = [1, 1]} : vector<2x16xf32> to vector<2x8xf32>
    %48 = vector.extract_strided_slice %46 {offsets = [0, 0], sizes = [2, 8], strides = [1, 1]} : vector<2x16xf32> to vector<2x8xf32>
    %49 = vector.extract_strided_slice %38 {offsets = [0, 8], sizes = [2, 8], strides = [1, 1]} : vector<2x16xf32> to vector<2x8xf32>
    %50 = vector.extract_strided_slice %46 {offsets = [0, 8], sizes = [2, 8], strides = [1, 1]} : vector<2x16xf32> to vector<2x8xf32>
    %51 = tpu.concatenate %47, %48, %49, %50 in 1 : vector<2x8xf32>, vector<2x8xf32>, vector<2x8xf32>, vector<2x8xf32> -> vector<2x32xf32>
    %c0_56 = arith.constant 0 : index
    %c0_57 = arith.constant 0 : index
    %52 = vector.load %arg13[%c0_56, %c0_57] : memref<8x64xf32, #tpu.memory_space<vmem>>, vector<8x64xf32>
    %c0_58 = arith.constant 0 : index
    %c0_59 = arith.constant 0 : index
    %53 = vector.load %arg14[%c0_58, %c0_59] : memref<16x64xf32, #tpu.memory_space<vmem>>, vector<16x64xf32>
    %c0_60 = arith.constant 0 : index
    %c0_61 = arith.constant 0 : index
    %54 = vector.load %arg18[%c0_60, %c0_61] : memref<16x64xf32, #tpu.memory_space<vmem>>, vector<16x64xf32>
    %c0_62 = arith.constant 0 : index
    %c0_63 = arith.constant 0 : index
    %55 = vector.load %arg19[%c0_62, %c0_63] : memref<16x64xf32, #tpu.memory_space<vmem>>, vector<16x64xf32>
    %c0_64 = arith.constant 0 : index
    %c0_65 = arith.constant 0 : index
    %56 = vector.load %arg16[%c0_64, %c0_65] : memref<1x16xf32, #tpu.memory_space<vmem>>, vector<1x16xf32>
    %c0_66 = arith.constant 0 : index
    %c0_67 = arith.constant 0 : index
    %57 = vector.load %arg17[%c0_66, %c0_67] : memref<1x16xf32, #tpu.memory_space<vmem>>, vector<1x16xf32>
    %c0_68 = arith.constant 0 : index
    %c0_69 = arith.constant 0 : index
    %58 = vector.load %arg15[%c0_68, %c0_69] : memref<1x64xf32, #tpu.memory_space<vmem>>, vector<1x64xf32>
    %59 = vector.shape_cast %58 : vector<1x64xf32> to vector<1x64xf32>
    %60 = vector.broadcast %59 : vector<1x64xf32> to vector<2x64xf32>
    %c0_70 = arith.constant 0 : index
    %c0_71 = arith.constant 0 : index
    %61 = vector.load %arg20[%c0_70, %c0_71] : memref<1x64xf32, #tpu.memory_space<vmem>>, vector<1x64xf32>
    %62 = vector.shape_cast %61 : vector<1x64xf32> to vector<1x64xf32>
    %63 = vector.broadcast %62 : vector<1x64xf32> to vector<2x64xf32>
    %64 = tpu.iota {dimensions = array<i32: 1>} : vector<1x64xi32>
    %c16_i32_72 = arith.constant 16 : i32
    %c0_i32_73 = arith.constant 0 : i32
    %65 = arith.cmpi eq, %c16_i32_72, %c0_i32_73 : i32
    %c1_i32_74 = arith.constant 1 : i32
    %66 = arith.select %65, %c1_i32_74, %c16_i32_72 : i32
    %67 = vector.broadcast %66 : i32 to vector<1x64xi32>
    %68 = arith.remsi %64, %67 : vector<1x64xi32>
    %c0_i32_75 = arith.constant 0 : i32
    %69 = vector.broadcast %c0_i32_75 : i32 to vector<1x64xi32>
    %70 = arith.cmpi ne, %68, %69 : vector<1x64xi32>
    %c0_i32_76 = arith.constant 0 : i32
    %71 = vector.broadcast %c0_i32_76 : i32 to vector<1x64xi32>
    %72 = arith.cmpi slt, %68, %71 : vector<1x64xi32>
    %c0_i32_77 = arith.constant 0 : i32
    %73 = arith.cmpi slt, %66, %c0_i32_77 : i32
    %74 = vector.broadcast %73 : i1 to vector<1x64xi1>
    %75 = vector.broadcast %74 : vector<1x64xi1> to vector<1x64xi1>
    %76 = arith.xori %72, %75 : vector<1x64xi1>
    %77 = arith.andi %76, %70 : vector<1x64xi1>
    %78 = vector.broadcast %66 : i32 to vector<1x64xi32>
    %79 = arith.addi %68, %78 : vector<1x64xi32>
    %80 = arith.select %77, %79, %68 : vector<1x64xi1>, vector<1x64xi32>
    %c8_i32_78 = arith.constant 8 : i32
    %81 = vector.broadcast %c8_i32_78 : i32 to vector<1x64xi32>
    %82 = arith.cmpi slt, %80, %81 : vector<1x64xi32>
    %c0_i32_79 = arith.constant 0 : i32
    %c8_i32_80 = arith.constant 8 : i32
    %83 = arith.addi %c0_i32_79, %c8_i32_80 : i32
    %c1_i32_81 = arith.constant 1 : i32
    scf.for %arg50 = %c0_i32_79 to %83 step %c1_i32_81  : i32 {
      %c1_i32_191 = arith.constant 1 : i32
      %225 = arith.muli %arg50, %c1_i32_191 : i32
      %c0_i32_192 = arith.constant 0 : i32
      %226 = arith.addi %c0_i32_192, %225 : i32
      %227 = arith.index_cast %226 : i32 to index
      %c0_193 = arith.constant 0 : index
      %c0_194 = arith.constant 0 : index
      %228 = vector.load %arg2[%227, %c0_193, %c0_194] : memref<8x2x8xf32, #tpu.memory_space<vmem>>, vector<1x2x8xf32>
      %229 = vector.shape_cast %228 : vector<1x2x8xf32> to vector<2x8xf32>
      %cst_195 = arith.constant dense<0.000000e+00> : vector<2x64xf32>
      %230 = tpu.matmul %229, %52, %cst_195 {dimension_numbers = #tpu.dot_dimension_numbers<[1], [0], [0], [1], [0, 0, 1, 1], [], []>} : vector<2x8xf32>, vector<8x64xf32>, vector<2x64xf32> -> vector<2x64xf32>
      %231 = arith.addf %230, %60 : vector<2x64xf32>
      %232 = arith.index_cast %226 : i32 to index
      %c0_196 = arith.constant 0 : index
      %c0_197 = arith.constant 0 : index
      %233 = vector.load %arg45[%232, %c0_196, %c0_197] : memref<8x2x64xf32, #tpu.memory_space<vmem>>, vector<1x2x64xf32>
      %234 = vector.shape_cast %233 : vector<1x2x64xf32> to vector<2x64xf32>
      %235 = vector.shape_cast %231 : vector<2x64xf32> to vector<1x2x64xf32>
      tpu.vector_store %arg45[%232, %c0_196, %c0_197], %235 {strides = array<i32>} : memref<8x2x64xf32, #tpu.memory_space<vmem>>, vector<1x2x64xf32>,
    }
    %c8_i32_82 = arith.constant 8 : i32
    %c0_i32_83 = arith.constant 0 : i32
    %c4_i32_84 = arith.constant 4 : i32
    %84 = arith.addi %c0_i32_83, %c4_i32_84 : i32
    %c1_i32_85 = arith.constant 1 : i32
    scf.for %arg50 = %c0_i32_83 to %84 step %c1_i32_85  : i32 {
      %c1_i32_191 = arith.constant 1 : i32
      %225 = arith.muli %arg50, %c1_i32_191 : i32
      %c0_i32_192 = arith.constant 0 : i32
      %226 = arith.addi %c0_i32_192, %225 : i32
      %c7_i32 = arith.constant 7 : i32
      %227 = arith.subi %c7_i32, %226 : i32
      %228 = arith.index_cast %226 : i32 to index
      %c0_193 = arith.constant 0 : index
      %c0_194 = arith.constant 0 : index
      %229 = vector.load %arg45[%228, %c0_193, %c0_194] : memref<8x2x64xf32, #tpu.memory_space<vmem>>, vector<1x2x64xf32>
      %230 = vector.shape_cast %229 : vector<1x2x64xf32> to vector<2x64xf32>
      %231 = arith.index_cast %227 : i32 to index
      %c0_195 = arith.constant 0 : index
      %c0_196 = arith.constant 0 : index
      %232 = vector.load %arg45[%231, %c0_195, %c0_196] : memref<8x2x64xf32, #tpu.memory_space<vmem>>, vector<1x2x64xf32>
      %233 = vector.shape_cast %232 : vector<1x2x64xf32> to vector<2x64xf32>
      %234 = vector.shape_cast %82 : vector<1x64xi1> to vector<1x64xi1>
      %235 = vector.broadcast %234 : vector<1x64xi1> to vector<2x64xi1>
      %236 = arith.select %235, %230, %233 : vector<2x64xi1>, vector<2x64xf32>
      %237 = arith.index_cast %226 : i32 to index
      %c0_197 = arith.constant 0 : index
      %c0_198 = arith.constant 0 : index
      %238 = vector.load %arg45[%237, %c0_197, %c0_198] : memref<8x2x64xf32, #tpu.memory_space<vmem>>, vector<1x2x64xf32>
      %239 = vector.shape_cast %238 : vector<1x2x64xf32> to vector<2x64xf32>
      %240 = vector.shape_cast %236 : vector<2x64xf32> to vector<1x2x64xf32>
      tpu.vector_store %arg45[%237, %c0_197, %c0_198], %240 {strides = array<i32>} : memref<8x2x64xf32, #tpu.memory_space<vmem>>, vector<1x2x64xf32>,
      %241 = vector.shape_cast %82 : vector<1x64xi1> to vector<1x64xi1>
      %242 = vector.broadcast %241 : vector<1x64xi1> to vector<2x64xi1>
      %243 = arith.select %242, %233, %230 : vector<2x64xi1>, vector<2x64xf32>
      %244 = arith.index_cast %227 : i32 to index
      %c0_199 = arith.constant 0 : index
      %c0_200 = arith.constant 0 : index
      %245 = vector.load %arg45[%244, %c0_199, %c0_200] : memref<8x2x64xf32, #tpu.memory_space<vmem>>, vector<1x2x64xf32>
      %246 = vector.shape_cast %245 : vector<1x2x64xf32> to vector<2x64xf32>
      %247 = vector.shape_cast %243 : vector<2x64xf32> to vector<1x2x64xf32>
      tpu.vector_store %arg45[%244, %c0_199, %c0_200], %247 {strides = array<i32>} : memref<8x2x64xf32, #tpu.memory_space<vmem>>, vector<1x2x64xf32>,
    }
    %c4_i32_86 = arith.constant 4 : i32
    %cst_87 = arith.constant 0.000000e+00 : f32
    %85 = vector.broadcast %cst_87 : f32 to vector<2x16xf32>
    %c0_88 = arith.constant 0 : index
    %c0_89 = arith.constant 0 : index
    %86 = vector.load %arg48[%c0_88, %c0_89] : memref<2x16xf32, #tpu.memory_space<vmem>>, vector<2x16xf32>
    tpu.vector_store %arg48[%c0_88, %c0_89], %85 {strides = array<i32>} : memref<2x16xf32, #tpu.memory_space<vmem>>, vector<2x16xf32>,
    %cst_90 = arith.constant 0.000000e+00 : f32
    %87 = vector.broadcast %cst_90 : f32 to vector<2x16xf32>
    %c0_91 = arith.constant 0 : index
    %c0_92 = arith.constant 0 : index
    %88 = vector.load %arg49[%c0_91, %c0_92] : memref<2x16xf32, #tpu.memory_space<vmem>>, vector<2x16xf32>
    tpu.vector_store %arg49[%c0_91, %c0_92], %87 {strides = array<i32>} : memref<2x16xf32, #tpu.memory_space<vmem>>, vector<2x16xf32>,
    %c0_i32_93 = arith.constant 0 : i32
    %c8_i32_94 = arith.constant 8 : i32
    %89 = arith.addi %c0_i32_93, %c8_i32_94 : i32
    %c1_i32_95 = arith.constant 1 : i32
    scf.for %arg50 = %c0_i32_93 to %89 step %c1_i32_95  : i32 {
      %c1_i32_191 = arith.constant 1 : i32
      %225 = arith.muli %arg50, %c1_i32_191 : i32
      %c0_i32_192 = arith.constant 0 : i32
      %226 = arith.addi %c0_i32_192, %225 : i32
      %227 = arith.index_cast %226 : i32 to index
      %c0_193 = arith.constant 0 : index
      %c0_194 = arith.constant 0 : index
      %228 = vector.load %arg45[%227, %c0_193, %c0_194] : memref<8x2x64xf32, #tpu.memory_space<vmem>>, vector<1x2x64xf32>
      %229 = vector.shape_cast %228 : vector<1x2x64xf32> to vector<2x64xf32>
      %c0_195 = arith.constant 0 : index
      %c0_196 = arith.constant 0 : index
      %230 = vector.load %arg48[%c0_195, %c0_196] : memref<2x16xf32, #tpu.memory_space<vmem>>, vector<2x16xf32>
      %cst_197 = arith.constant dense<0.000000e+00> : vector<2x64xf32>
      %231 = tpu.matmul %230, %53, %cst_197 {dimension_numbers = #tpu.dot_dimension_numbers<[1], [0], [0], [1], [0, 0, 1, 1], [], []>} : vector<2x16xf32>, vector<16x64xf32>, vector<2x64xf32> -> vector<2x64xf32>
      %232 = arith.addf %229, %231 : vector<2x64xf32>
      %233 = vector.extract_strided_slice %232 {offsets = [0, 0], sizes = [2, 16], strides = [1, 1]} : vector<2x64xf32> to vector<2x16xf32>
      %234 = arith.negf %233 : vector<2x16xf32>
      %235 = math.exp %234 : vector<2x16xf32>
      %cst_198 = arith.constant 1.000000e+00 : f32
      %236 = vector.broadcast %cst_198 : f32 to vector<2x16xf32>
      %237 = arith.addf %236, %235 : vector<2x16xf32>
      %238 = arith.divf %236, %237 : vector<2x16xf32>
      %239 = vector.extract_strided_slice %232 {offsets = [0, 16], sizes = [2, 16], strides = [1, 1]} : vector<2x64xf32> to vector<2x16xf32>
      %240 = arith.negf %239 : vector<2x16xf32>
      %241 = math.exp %240 : vector<2x16xf32>
      %cst_199 = arith.constant 1.000000e+00 : f32
      %242 = vector.broadcast %cst_199 : f32 to vector<2x16xf32>
      %243 = arith.addf %242, %241 : vector<2x16xf32>
      %244 = arith.divf %242, %243 : vector<2x16xf32>
      %245 = vector.extract_strided_slice %232 {offsets = [0, 32], sizes = [2, 16], strides = [1, 1]} : vector<2x64xf32> to vector<2x16xf32>
      %246 = math.tanh %245 : vector<2x16xf32>
      %247 = vector.extract_strided_slice %232 {offsets = [0, 48], sizes = [2, 16], strides = [1, 1]} : vector<2x64xf32> to vector<2x16xf32>
      %248 = arith.negf %247 : vector<2x16xf32>
      %249 = math.exp %248 : vector<2x16xf32>
      %cst_200 = arith.constant 1.000000e+00 : f32
      %250 = vector.broadcast %cst_200 : f32 to vector<2x16xf32>
      %251 = arith.addf %250, %249 : vector<2x16xf32>
      %252 = arith.divf %250, %251 : vector<2x16xf32>
      %c0_201 = arith.constant 0 : index
      %c0_202 = arith.constant 0 : index
      %253 = vector.load %arg49[%c0_201, %c0_202] : memref<2x16xf32, #tpu.memory_space<vmem>>, vector<2x16xf32>
      %254 = arith.mulf %244, %253 : vector<2x16xf32>
      %255 = arith.mulf %238, %246 : vector<2x16xf32>
      %256 = arith.addf %254, %255 : vector<2x16xf32>
      %257 = math.tanh %256 : vector<2x16xf32>
      %258 = arith.mulf %252, %257 : vector<2x16xf32>
      %c0_203 = arith.constant 0 : index
      %c0_204 = arith.constant 0 : index
      %259 = vector.load %arg49[%c0_203, %c0_204] : memref<2x16xf32, #tpu.memory_space<vmem>>, vector<2x16xf32>
      tpu.vector_store %arg49[%c0_203, %c0_204], %256 {strides = array<i32>} : memref<2x16xf32, #tpu.memory_space<vmem>>, vector<2x16xf32>,
      %c0_205 = arith.constant 0 : index
      %c0_206 = arith.constant 0 : index
      %260 = vector.load %arg48[%c0_205, %c0_206] : memref<2x16xf32, #tpu.memory_space<vmem>>, vector<2x16xf32>
      tpu.vector_store %arg48[%c0_205, %c0_206], %258 {strides = array<i32>} : memref<2x16xf32, #tpu.memory_space<vmem>>, vector<2x16xf32>,
      %261 = vector.extract_strided_slice %258 {offsets = [0, 0], sizes = [2, 8], strides = [1, 1]} : vector<2x16xf32> to vector<2x8xf32>
      %262 = arith.index_cast %226 : i32 to index
      %c0_207 = arith.constant 0 : index
      %c0_208 = arith.constant 0 : index
      %263 = vector.load %arg46[%262, %c0_207, %c0_208] : memref<8x2x8xf32, #tpu.memory_space<vmem>>, vector<1x2x8xf32>
      %264 = vector.shape_cast %263 : vector<1x2x8xf32> to vector<2x8xf32>
      %265 = vector.shape_cast %261 : vector<2x8xf32> to vector<1x2x8xf32>
      tpu.vector_store %arg46[%262, %c0_207, %c0_208], %265 {strides = array<i32>} : memref<8x2x8xf32, #tpu.memory_space<vmem>>, vector<1x2x8xf32>,
      %266 = vector.extract_strided_slice %258 {offsets = [0, 8], sizes = [2, 8], strides = [1, 1]} : vector<2x16xf32> to vector<2x8xf32>
      %c7_i32 = arith.constant 7 : i32
      %267 = arith.subi %c7_i32, %226 : i32
      %268 = arith.index_cast %267 : i32 to index
      %c0_209 = arith.constant 0 : index
      %c0_210 = arith.constant 0 : index
      %269 = vector.load %arg47[%268, %c0_209, %c0_210] : memref<8x2x8xf32, #tpu.memory_space<vmem>>, vector<1x2x8xf32>
      %270 = vector.shape_cast %269 : vector<1x2x8xf32> to vector<2x8xf32>
      %271 = vector.shape_cast %266 : vector<2x8xf32> to vector<1x2x8xf32>
      tpu.vector_store %arg47[%268, %c0_209, %c0_210], %271 {strides = array<i32>} : memref<8x2x8xf32, #tpu.memory_space<vmem>>, vector<1x2x8xf32>,
    }
    %c8_i32_96 = arith.constant 8 : i32
    %c0_97 = arith.constant 0 : index
    %c0_98 = arith.constant 0 : index
    %90 = vector.load %arg48[%c0_97, %c0_98] : memref<2x16xf32, #tpu.memory_space<vmem>>, vector<2x16xf32>
    %c0_i32_99 = arith.constant 0 : i32
    %c8_i32_100 = arith.constant 8 : i32
    %91 = arith.addi %c0_i32_99, %c8_i32_100 : i32
    %c1_i32_101 = arith.constant 1 : i32
    scf.for %arg50 = %c0_i32_99 to %91 step %c1_i32_101  : i32 {
      %c1_i32_191 = arith.constant 1 : i32
      %225 = arith.muli %arg50, %c1_i32_191 : i32
      %c0_i32_192 = arith.constant 0 : i32
      %226 = arith.addi %c0_i32_192, %225 : i32
      %227 = arith.index_cast %226 : i32 to index
      %c0_193 = arith.constant 0 : index
      %c0_194 = arith.constant 0 : index
      %228 = vector.load %arg46[%227, %c0_193, %c0_194] : memref<8x2x8xf32, #tpu.memory_space<vmem>>, vector<1x2x8xf32>
      %229 = vector.shape_cast %228 : vector<1x2x8xf32> to vector<2x8xf32>
      %230 = arith.index_cast %226 : i32 to index
      %c0_195 = arith.constant 0 : index
      %c0_196 = arith.constant 0 : index
      %231 = vector.load %arg47[%230, %c0_195, %c0_196] : memref<8x2x8xf32, #tpu.memory_space<vmem>>, vector<1x2x8xf32>
      %232 = vector.shape_cast %231 : vector<1x2x8xf32> to vector<2x8xf32>
      %233 = tpu.concatenate %229, %232 in 1 : vector<2x8xf32>, vector<2x8xf32> -> vector<2x16xf32>
      %cst_197 = arith.constant dense<0.000000e+00> : vector<2xf32>
      %234 = vector.multi_reduction <add>, %233, %cst_197 [1] : vector<2x16xf32> to vector<2xf32>
      %235 = vector.shape_cast %234 : vector<2xf32> to vector<2x1xf32>
      %cst_198 = arith.constant 1.600000e+01 : f32
      %236 = vector.broadcast %cst_198 : f32 to vector<2x1xf32>
      %237 = arith.divf %235, %236 : vector<2x1xf32>
      %238 = vector.broadcast %237 : vector<2x1xf32> to vector<2x16xf32>
      %239 = arith.subf %233, %238 : vector<2x16xf32>
      %240 = arith.mulf %239, %239 : vector<2x16xf32>
      %cst_199 = arith.constant dense<0.000000e+00> : vector<2xf32>
      %241 = vector.multi_reduction <add>, %240, %cst_199 [1] : vector<2x16xf32> to vector<2xf32>
      %242 = vector.shape_cast %241 : vector<2xf32> to vector<2x1xf32>
      %cst_200 = arith.constant 1.600000e+01 : f32
      %243 = vector.broadcast %cst_200 : f32 to vector<2x1xf32>
      %244 = arith.divf %242, %243 : vector<2x1xf32>
      %245 = vector.broadcast %237 : vector<2x1xf32> to vector<2x16xf32>
      %246 = arith.subf %233, %245 : vector<2x16xf32>
      %cst_201 = arith.constant 9.99999974E-6 : f32
      %247 = vector.broadcast %cst_201 : f32 to vector<2x1xf32>
      %248 = arith.addf %244, %247 : vector<2x1xf32>
      %249 = math.rsqrt %248 : vector<2x1xf32>
      %250 = vector.broadcast %249 : vector<2x1xf32> to vector<2x16xf32>
      %251 = arith.mulf %246, %250 : vector<2x16xf32>
      %252 = vector.broadcast %56 : vector<1x16xf32> to vector<2x16xf32>
      %253 = arith.mulf %251, %252 : vector<2x16xf32>
      %254 = vector.broadcast %57 : vector<1x16xf32> to vector<2x16xf32>
      %255 = arith.addf %253, %254 : vector<2x16xf32>
      %cst_202 = arith.constant dense<0.000000e+00> : vector<2x64xf32>
      %256 = tpu.matmul %255, %54, %cst_202 {dimension_numbers = #tpu.dot_dimension_numbers<[1], [0], [0], [1], [0, 0, 1, 1], [], []>} : vector<2x16xf32>, vector<16x64xf32>, vector<2x64xf32> -> vector<2x64xf32>
      %257 = arith.addf %256, %63 : vector<2x64xf32>
      %258 = arith.index_cast %226 : i32 to index
      %c0_203 = arith.constant 0 : index
      %c0_204 = arith.constant 0 : index
      %259 = vector.load %arg45[%258, %c0_203, %c0_204] : memref<8x2x64xf32, #tpu.memory_space<vmem>>, vector<1x2x64xf32>
      %260 = vector.shape_cast %259 : vector<1x2x64xf32> to vector<2x64xf32>
      %261 = vector.shape_cast %257 : vector<2x64xf32> to vector<1x2x64xf32>
      tpu.vector_store %arg45[%258, %c0_203, %c0_204], %261 {strides = array<i32>} : memref<8x2x64xf32, #tpu.memory_space<vmem>>, vector<1x2x64xf32>,
    }
    %c8_i32_102 = arith.constant 8 : i32
    %c0_i32_103 = arith.constant 0 : i32
    %c4_i32_104 = arith.constant 4 : i32
    %92 = arith.addi %c0_i32_103, %c4_i32_104 : i32
    %c1_i32_105 = arith.constant 1 : i32
    scf.for %arg50 = %c0_i32_103 to %92 step %c1_i32_105  : i32 {
      %c1_i32_191 = arith.constant 1 : i32
      %225 = arith.muli %arg50, %c1_i32_191 : i32
      %c0_i32_192 = arith.constant 0 : i32
      %226 = arith.addi %c0_i32_192, %225 : i32
      %c7_i32 = arith.constant 7 : i32
      %227 = arith.subi %c7_i32, %226 : i32
      %228 = arith.index_cast %226 : i32 to index
      %c0_193 = arith.constant 0 : index
      %c0_194 = arith.constant 0 : index
      %229 = vector.load %arg45[%228, %c0_193, %c0_194] : memref<8x2x64xf32, #tpu.memory_space<vmem>>, vector<1x2x64xf32>
      %230 = vector.shape_cast %229 : vector<1x2x64xf32> to vector<2x64xf32>
      %231 = arith.index_cast %227 : i32 to index
      %c0_195 = arith.constant 0 : index
      %c0_196 = arith.constant 0 : index
      %232 = vector.load %arg45[%231, %c0_195, %c0_196] : memref<8x2x64xf32, #tpu.memory_space<vmem>>, vector<1x2x64xf32>
      %233 = vector.shape_cast %232 : vector<1x2x64xf32> to vector<2x64xf32>
      %234 = vector.shape_cast %82 : vector<1x64xi1> to vector<1x64xi1>
      %235 = vector.broadcast %234 : vector<1x64xi1> to vector<2x64xi1>
      %236 = arith.select %235, %230, %233 : vector<2x64xi1>, vector<2x64xf32>
      %237 = arith.index_cast %226 : i32 to index
      %c0_197 = arith.constant 0 : index
      %c0_198 = arith.constant 0 : index
      %238 = vector.load %arg45[%237, %c0_197, %c0_198] : memref<8x2x64xf32, #tpu.memory_space<vmem>>, vector<1x2x64xf32>
      %239 = vector.shape_cast %238 : vector<1x2x64xf32> to vector<2x64xf32>
      %240 = vector.shape_cast %236 : vector<2x64xf32> to vector<1x2x64xf32>
      tpu.vector_store %arg45[%237, %c0_197, %c0_198], %240 {strides = array<i32>} : memref<8x2x64xf32, #tpu.memory_space<vmem>>, vector<1x2x64xf32>,
      %241 = vector.shape_cast %82 : vector<1x64xi1> to vector<1x64xi1>
      %242 = vector.broadcast %241 : vector<1x64xi1> to vector<2x64xi1>
      %243 = arith.select %242, %233, %230 : vector<2x64xi1>, vector<2x64xf32>
      %244 = arith.index_cast %227 : i32 to index
      %c0_199 = arith.constant 0 : index
      %c0_200 = arith.constant 0 : index
      %245 = vector.load %arg45[%244, %c0_199, %c0_200] : memref<8x2x64xf32, #tpu.memory_space<vmem>>, vector<1x2x64xf32>
      %246 = vector.shape_cast %245 : vector<1x2x64xf32> to vector<2x64xf32>
      %247 = vector.shape_cast %243 : vector<2x64xf32> to vector<1x2x64xf32>
      tpu.vector_store %arg45[%244, %c0_199, %c0_200], %247 {strides = array<i32>} : memref<8x2x64xf32, #tpu.memory_space<vmem>>, vector<1x2x64xf32>,
    }
    %c4_i32_106 = arith.constant 4 : i32
    %cst_107 = arith.constant 0.000000e+00 : f32
    %93 = vector.broadcast %cst_107 : f32 to vector<2x16xf32>
    %c0_108 = arith.constant 0 : index
    %c0_109 = arith.constant 0 : index
    %94 = vector.load %arg48[%c0_108, %c0_109] : memref<2x16xf32, #tpu.memory_space<vmem>>, vector<2x16xf32>
    tpu.vector_store %arg48[%c0_108, %c0_109], %93 {strides = array<i32>} : memref<2x16xf32, #tpu.memory_space<vmem>>, vector<2x16xf32>,
    %cst_110 = arith.constant 0.000000e+00 : f32
    %95 = vector.broadcast %cst_110 : f32 to vector<2x16xf32>
    %c0_111 = arith.constant 0 : index
    %c0_112 = arith.constant 0 : index
    %96 = vector.load %arg49[%c0_111, %c0_112] : memref<2x16xf32, #tpu.memory_space<vmem>>, vector<2x16xf32>
    tpu.vector_store %arg49[%c0_111, %c0_112], %95 {strides = array<i32>} : memref<2x16xf32, #tpu.memory_space<vmem>>, vector<2x16xf32>,
    %c0_i32_113 = arith.constant 0 : i32
    %c8_i32_114 = arith.constant 8 : i32
    %97 = arith.addi %c0_i32_113, %c8_i32_114 : i32
    %c1_i32_115 = arith.constant 1 : i32
    scf.for %arg50 = %c0_i32_113 to %97 step %c1_i32_115  : i32 {
      %c1_i32_191 = arith.constant 1 : i32
      %225 = arith.muli %arg50, %c1_i32_191 : i32
      %c0_i32_192 = arith.constant 0 : i32
      %226 = arith.addi %c0_i32_192, %225 : i32
      %227 = arith.index_cast %226 : i32 to index
      %c0_193 = arith.constant 0 : index
      %c0_194 = arith.constant 0 : index
      %228 = vector.load %arg45[%227, %c0_193, %c0_194] : memref<8x2x64xf32, #tpu.memory_space<vmem>>, vector<1x2x64xf32>
      %229 = vector.shape_cast %228 : vector<1x2x64xf32> to vector<2x64xf32>
      %c0_195 = arith.constant 0 : index
      %c0_196 = arith.constant 0 : index
      %230 = vector.load %arg48[%c0_195, %c0_196] : memref<2x16xf32, #tpu.memory_space<vmem>>, vector<2x16xf32>
      %cst_197 = arith.constant dense<0.000000e+00> : vector<2x64xf32>
      %231 = tpu.matmul %230, %55, %cst_197 {dimension_numbers = #tpu.dot_dimension_numbers<[1], [0], [0], [1], [0, 0, 1, 1], [], []>} : vector<2x16xf32>, vector<16x64xf32>, vector<2x64xf32> -> vector<2x64xf32>
      %232 = arith.addf %229, %231 : vector<2x64xf32>
      %233 = vector.extract_strided_slice %232 {offsets = [0, 0], sizes = [2, 16], strides = [1, 1]} : vector<2x64xf32> to vector<2x16xf32>
      %234 = arith.negf %233 : vector<2x16xf32>
      %235 = math.exp %234 : vector<2x16xf32>
      %cst_198 = arith.constant 1.000000e+00 : f32
      %236 = vector.broadcast %cst_198 : f32 to vector<2x16xf32>
      %237 = arith.addf %236, %235 : vector<2x16xf32>
      %238 = arith.divf %236, %237 : vector<2x16xf32>
      %239 = vector.extract_strided_slice %232 {offsets = [0, 16], sizes = [2, 16], strides = [1, 1]} : vector<2x64xf32> to vector<2x16xf32>
      %240 = arith.negf %239 : vector<2x16xf32>
      %241 = math.exp %240 : vector<2x16xf32>
      %cst_199 = arith.constant 1.000000e+00 : f32
      %242 = vector.broadcast %cst_199 : f32 to vector<2x16xf32>
      %243 = arith.addf %242, %241 : vector<2x16xf32>
      %244 = arith.divf %242, %243 : vector<2x16xf32>
      %245 = vector.extract_strided_slice %232 {offsets = [0, 32], sizes = [2, 16], strides = [1, 1]} : vector<2x64xf32> to vector<2x16xf32>
      %246 = math.tanh %245 : vector<2x16xf32>
      %247 = vector.extract_strided_slice %232 {offsets = [0, 48], sizes = [2, 16], strides = [1, 1]} : vector<2x64xf32> to vector<2x16xf32>
      %248 = arith.negf %247 : vector<2x16xf32>
      %249 = math.exp %248 : vector<2x16xf32>
      %cst_200 = arith.constant 1.000000e+00 : f32
      %250 = vector.broadcast %cst_200 : f32 to vector<2x16xf32>
      %251 = arith.addf %250, %249 : vector<2x16xf32>
      %252 = arith.divf %250, %251 : vector<2x16xf32>
      %c0_201 = arith.constant 0 : index
      %c0_202 = arith.constant 0 : index
      %253 = vector.load %arg49[%c0_201, %c0_202] : memref<2x16xf32, #tpu.memory_space<vmem>>, vector<2x16xf32>
      %254 = arith.mulf %244, %253 : vector<2x16xf32>
      %255 = arith.mulf %238, %246 : vector<2x16xf32>
      %256 = arith.addf %254, %255 : vector<2x16xf32>
      %257 = math.tanh %256 : vector<2x16xf32>
      %258 = arith.mulf %252, %257 : vector<2x16xf32>
      %c0_203 = arith.constant 0 : index
      %c0_204 = arith.constant 0 : index
      %259 = vector.load %arg49[%c0_203, %c0_204] : memref<2x16xf32, #tpu.memory_space<vmem>>, vector<2x16xf32>
      tpu.vector_store %arg49[%c0_203, %c0_204], %256 {strides = array<i32>} : memref<2x16xf32, #tpu.memory_space<vmem>>, vector<2x16xf32>,
      %c0_205 = arith.constant 0 : index
      %c0_206 = arith.constant 0 : index
      %260 = vector.load %arg48[%c0_205, %c0_206] : memref<2x16xf32, #tpu.memory_space<vmem>>, vector<2x16xf32>
      tpu.vector_store %arg48[%c0_205, %c0_206], %258 {strides = array<i32>} : memref<2x16xf32, #tpu.memory_space<vmem>>, vector<2x16xf32>,
    }
    %c8_i32_116 = arith.constant 8 : i32
    %c0_117 = arith.constant 0 : index
    %c0_118 = arith.constant 0 : index
    %98 = vector.load %arg48[%c0_117, %c0_118] : memref<2x16xf32, #tpu.memory_space<vmem>>, vector<2x16xf32>
    %99 = vector.extract_strided_slice %90 {offsets = [0, 0], sizes = [2, 8], strides = [1, 1]} : vector<2x16xf32> to vector<2x8xf32>
    %100 = vector.extract_strided_slice %98 {offsets = [0, 0], sizes = [2, 8], strides = [1, 1]} : vector<2x16xf32> to vector<2x8xf32>
    %101 = vector.extract_strided_slice %90 {offsets = [0, 8], sizes = [2, 8], strides = [1, 1]} : vector<2x16xf32> to vector<2x8xf32>
    %102 = vector.extract_strided_slice %98 {offsets = [0, 8], sizes = [2, 8], strides = [1, 1]} : vector<2x16xf32> to vector<2x8xf32>
    %103 = tpu.concatenate %99, %100, %101, %102 in 1 : vector<2x8xf32>, vector<2x8xf32>, vector<2x8xf32>, vector<2x8xf32> -> vector<2x32xf32>
    %c0_119 = arith.constant 0 : index
    %c0_120 = arith.constant 0 : index
    %c0_121 = arith.constant 0 : index
    %104 = vector.load %arg3[%c0_119, %c0_120, %c0_121] : memref<2x8x768xf32, #tpu.memory_space<vmem>>, vector<2x8x768xf32>
    %c0_122 = arith.constant 0 : index
    %c0_123 = arith.constant 0 : index
    %105 = vector.load %arg4[%c0_122, %c0_123] : memref<2x8xf32, #tpu.memory_space<vmem>>, vector<2x8xf32>
    %106 = vector.shape_cast %105 : vector<2x8xf32> to vector<2x8x1xf32>
    %107 = vector.broadcast %106 : vector<2x8x1xf32> to vector<2x8x768xf32>
    %108 = arith.mulf %104, %107 : vector<2x8x768xf32>
    %cst_124 = arith.constant dense<0.000000e+00> : vector<2x768xf32>
    %109 = vector.multi_reduction <add>, %108, %cst_124 [1] : vector<2x8x768xf32> to vector<2x768xf32>
    %cst_125 = arith.constant dense<0.000000e+00> : vector<2xf32>
    %110 = vector.multi_reduction <add>, %105, %cst_125 [1] : vector<2x8xf32> to vector<2xf32>
    %111 = vector.shape_cast %110 : vector<2xf32> to vector<2x1xf32>
    %112 = vector.broadcast %111 : vector<2x1xf32> to vector<2x768xf32>
    %113 = arith.divf %109, %112 : vector<2x768xf32>
    %c0_126 = arith.constant 0 : index
    %c0_127 = arith.constant 0 : index
    %114 = vector.load %arg21[%c0_126, %c0_127] : memref<768x16xf32, #tpu.memory_space<vmem>>, vector<768x16xf32>
    %c0_128 = arith.constant 0 : index
    %c0_129 = arith.constant 0 : index
    %115 = vector.load %arg22[%c0_128, %c0_129] : memref<1x16xf32, #tpu.memory_space<vmem>>, vector<1x16xf32>
    %c0_130 = arith.constant 0 : index
    %c0_131 = arith.constant 0 : index
    %116 = vector.load %arg23[%c0_130, %c0_131] : memref<1x16xf32, #tpu.memory_space<vmem>>, vector<1x16xf32>
    %c0_132 = arith.constant 0 : index
    %c0_133 = arith.constant 0 : index
    %117 = vector.load %arg24[%c0_132, %c0_133] : memref<1x16xf32, #tpu.memory_space<vmem>>, vector<1x16xf32>
    %cst_134 = arith.constant dense<0.000000e+00> : vector<2x16xf32>
    %118 = tpu.matmul %113, %114, %cst_134 {dimension_numbers = #tpu.dot_dimension_numbers<[1], [0], [0], [1], [0, 0, 1, 1], [], []>} : vector<2x768xf32>, vector<768x16xf32>, vector<2x16xf32> -> vector<2x16xf32>
    %119 = vector.broadcast %115 : vector<1x16xf32> to vector<2x16xf32>
    %120 = arith.addf %118, %119 : vector<2x16xf32>
    %cst_135 = arith.constant 0.000000e+00 : f32
    %121 = vector.broadcast %cst_135 : f32 to vector<2x16xf32>
    %122 = arith.maximumf %120, %121 : vector<2x16xf32>
    %cst_136 = arith.constant dense<0.000000e+00> : vector<2xf32>
    %123 = vector.multi_reduction <add>, %122, %cst_136 [1] : vector<2x16xf32> to vector<2xf32>
    %124 = vector.shape_cast %123 : vector<2xf32> to vector<2x1xf32>
    %cst_137 = arith.constant 1.600000e+01 : f32
    %125 = vector.broadcast %cst_137 : f32 to vector<2x1xf32>
    %126 = arith.divf %124, %125 : vector<2x1xf32>
    %127 = vector.broadcast %126 : vector<2x1xf32> to vector<2x16xf32>
    %128 = arith.subf %122, %127 : vector<2x16xf32>
    %129 = arith.mulf %128, %128 : vector<2x16xf32>
    %cst_138 = arith.constant dense<0.000000e+00> : vector<2xf32>
    %130 = vector.multi_reduction <add>, %129, %cst_138 [1] : vector<2x16xf32> to vector<2xf32>
    %131 = vector.shape_cast %130 : vector<2xf32> to vector<2x1xf32>
    %cst_139 = arith.constant 1.600000e+01 : f32
    %132 = vector.broadcast %cst_139 : f32 to vector<2x1xf32>
    %133 = arith.divf %131, %132 : vector<2x1xf32>
    %134 = vector.broadcast %126 : vector<2x1xf32> to vector<2x16xf32>
    %135 = arith.subf %122, %134 : vector<2x16xf32>
    %cst_140 = arith.constant 9.99999974E-6 : f32
    %136 = vector.broadcast %cst_140 : f32 to vector<2x1xf32>
    %137 = arith.addf %133, %136 : vector<2x1xf32>
    %138 = math.rsqrt %137 : vector<2x1xf32>
    %139 = vector.broadcast %138 : vector<2x1xf32> to vector<2x16xf32>
    %140 = arith.mulf %135, %139 : vector<2x16xf32>
    %141 = vector.broadcast %116 : vector<1x16xf32> to vector<2x16xf32>
    %142 = arith.mulf %140, %141 : vector<2x16xf32>
    %143 = vector.broadcast %117 : vector<1x16xf32> to vector<2x16xf32>
    %144 = arith.addf %142, %143 : vector<2x16xf32>
    %c0_141 = arith.constant 0 : index
    %c0_142 = arith.constant 0 : index
    %145 = vector.load %arg25[%c0_141, %c0_142] : memref<32x16xf32, #tpu.memory_space<vmem>>, vector<32x16xf32>
    %c0_143 = arith.constant 0 : index
    %c0_144 = arith.constant 0 : index
    %146 = vector.load %arg26[%c0_143, %c0_144] : memref<1x16xf32, #tpu.memory_space<vmem>>, vector<1x16xf32>
    %c0_145 = arith.constant 0 : index
    %c0_146 = arith.constant 0 : index
    %147 = vector.load %arg27[%c0_145, %c0_146] : memref<1x16xf32, #tpu.memory_space<vmem>>, vector<1x16xf32>
    %c0_147 = arith.constant 0 : index
    %c0_148 = arith.constant 0 : index
    %148 = vector.load %arg28[%c0_147, %c0_148] : memref<1x16xf32, #tpu.memory_space<vmem>>, vector<1x16xf32>
    %cst_149 = arith.constant dense<0.000000e+00> : vector<2x16xf32>
    %149 = tpu.matmul %51, %145, %cst_149 {dimension_numbers = #tpu.dot_dimension_numbers<[1], [0], [0], [1], [0, 0, 1, 1], [], []>} : vector<2x32xf32>, vector<32x16xf32>, vector<2x16xf32> -> vector<2x16xf32>
    %150 = vector.broadcast %146 : vector<1x16xf32> to vector<2x16xf32>
    %151 = arith.addf %149, %150 : vector<2x16xf32>
    %cst_150 = arith.constant 0.000000e+00 : f32
    %152 = vector.broadcast %cst_150 : f32 to vector<2x16xf32>
    %153 = arith.maximumf %151, %152 : vector<2x16xf32>
    %cst_151 = arith.constant dense<0.000000e+00> : vector<2xf32>
    %154 = vector.multi_reduction <add>, %153, %cst_151 [1] : vector<2x16xf32> to vector<2xf32>
    %155 = vector.shape_cast %154 : vector<2xf32> to vector<2x1xf32>
    %cst_152 = arith.constant 1.600000e+01 : f32
    %156 = vector.broadcast %cst_152 : f32 to vector<2x1xf32>
    %157 = arith.divf %155, %156 : vector<2x1xf32>
    %158 = vector.broadcast %157 : vector<2x1xf32> to vector<2x16xf32>
    %159 = arith.subf %153, %158 : vector<2x16xf32>
    %160 = arith.mulf %159, %159 : vector<2x16xf32>
    %cst_153 = arith.constant dense<0.000000e+00> : vector<2xf32>
    %161 = vector.multi_reduction <add>, %160, %cst_153 [1] : vector<2x16xf32> to vector<2xf32>
    %162 = vector.shape_cast %161 : vector<2xf32> to vector<2x1xf32>
    %cst_154 = arith.constant 1.600000e+01 : f32
    %163 = vector.broadcast %cst_154 : f32 to vector<2x1xf32>
    %164 = arith.divf %162, %163 : vector<2x1xf32>
    %165 = vector.broadcast %157 : vector<2x1xf32> to vector<2x16xf32>
    %166 = arith.subf %153, %165 : vector<2x16xf32>
    %cst_155 = arith.constant 9.99999974E-6 : f32
    %167 = vector.broadcast %cst_155 : f32 to vector<2x1xf32>
    %168 = arith.addf %164, %167 : vector<2x1xf32>
    %169 = math.rsqrt %168 : vector<2x1xf32>
    %170 = vector.broadcast %169 : vector<2x1xf32> to vector<2x16xf32>
    %171 = arith.mulf %166, %170 : vector<2x16xf32>
    %172 = vector.broadcast %147 : vector<1x16xf32> to vector<2x16xf32>
    %173 = arith.mulf %171, %172 : vector<2x16xf32>
    %174 = vector.broadcast %148 : vector<1x16xf32> to vector<2x16xf32>
    %175 = arith.addf %173, %174 : vector<2x16xf32>
    %c0_156 = arith.constant 0 : index
    %c0_157 = arith.constant 0 : index
    %176 = vector.load %arg29[%c0_156, %c0_157] : memref<32x16xf32, #tpu.memory_space<vmem>>, vector<32x16xf32>
    %c0_158 = arith.constant 0 : index
    %c0_159 = arith.constant 0 : index
    %177 = vector.load %arg30[%c0_158, %c0_159] : memref<1x16xf32, #tpu.memory_space<vmem>>, vector<1x16xf32>
    %c0_160 = arith.constant 0 : index
    %c0_161 = arith.constant 0 : index
    %178 = vector.load %arg31[%c0_160, %c0_161] : memref<1x16xf32, #tpu.memory_space<vmem>>, vector<1x16xf32>
    %c0_162 = arith.constant 0 : index
    %c0_163 = arith.constant 0 : index
    %179 = vector.load %arg32[%c0_162, %c0_163] : memref<1x16xf32, #tpu.memory_space<vmem>>, vector<1x16xf32>
    %cst_164 = arith.constant dense<0.000000e+00> : vector<2x16xf32>
    %180 = tpu.matmul %103, %176, %cst_164 {dimension_numbers = #tpu.dot_dimension_numbers<[1], [0], [0], [1], [0, 0, 1, 1], [], []>} : vector<2x32xf32>, vector<32x16xf32>, vector<2x16xf32> -> vector<2x16xf32>
    %181 = vector.broadcast %177 : vector<1x16xf32> to vector<2x16xf32>
    %182 = arith.addf %180, %181 : vector<2x16xf32>
    %cst_165 = arith.constant 0.000000e+00 : f32
    %183 = vector.broadcast %cst_165 : f32 to vector<2x16xf32>
    %184 = arith.maximumf %182, %183 : vector<2x16xf32>
    %cst_166 = arith.constant dense<0.000000e+00> : vector<2xf32>
    %185 = vector.multi_reduction <add>, %184, %cst_166 [1] : vector<2x16xf32> to vector<2xf32>
    %186 = vector.shape_cast %185 : vector<2xf32> to vector<2x1xf32>
    %cst_167 = arith.constant 1.600000e+01 : f32
    %187 = vector.broadcast %cst_167 : f32 to vector<2x1xf32>
    %188 = arith.divf %186, %187 : vector<2x1xf32>
    %189 = vector.broadcast %188 : vector<2x1xf32> to vector<2x16xf32>
    %190 = arith.subf %184, %189 : vector<2x16xf32>
    %191 = arith.mulf %190, %190 : vector<2x16xf32>
    %cst_168 = arith.constant dense<0.000000e+00> : vector<2xf32>
    %192 = vector.multi_reduction <add>, %191, %cst_168 [1] : vector<2x16xf32> to vector<2xf32>
    %193 = vector.shape_cast %192 : vector<2xf32> to vector<2x1xf32>
    %cst_169 = arith.constant 1.600000e+01 : f32
    %194 = vector.broadcast %cst_169 : f32 to vector<2x1xf32>
    %195 = arith.divf %193, %194 : vector<2x1xf32>
    %196 = vector.broadcast %188 : vector<2x1xf32> to vector<2x16xf32>
    %197 = arith.subf %184, %196 : vector<2x16xf32>
    %cst_170 = arith.constant 9.99999974E-6 : f32
    %198 = vector.broadcast %cst_170 : f32 to vector<2x1xf32>
    %199 = arith.addf %195, %198 : vector<2x1xf32>
    %200 = math.rsqrt %199 : vector<2x1xf32>
    %201 = vector.broadcast %200 : vector<2x1xf32> to vector<2x16xf32>
    %202 = arith.mulf %197, %201 : vector<2x16xf32>
    %203 = vector.broadcast %178 : vector<1x16xf32> to vector<2x16xf32>
    %204 = arith.mulf %202, %203 : vector<2x16xf32>
    %205 = vector.broadcast %179 : vector<1x16xf32> to vector<2x16xf32>
    %206 = arith.addf %204, %205 : vector<2x16xf32>
    %c0_171 = arith.constant 0 : index
    %c0_172 = arith.constant 0 : index
    %207 = vector.load %arg33[%c0_171, %c0_172] : memref<16x1000xf32, #tpu.memory_space<vmem>>, vector<16x1000xf32>
    %cst_173 = arith.constant dense<0.000000e+00> : vector<2x1000xf32>
    %208 = tpu.matmul %144, %207, %cst_173 {dimension_numbers = #tpu.dot_dimension_numbers<[1], [0], [0], [1], [0, 0, 1, 1], [], []>} : vector<2x16xf32>, vector<16x1000xf32>, vector<2x1000xf32> -> vector<2x1000xf32>
    %c0_174 = arith.constant 0 : index
    %c0_175 = arith.constant 0 : index
    %209 = vector.load %arg34[%c0_174, %c0_175] : memref<16x1000xf32, #tpu.memory_space<vmem>>, vector<16x1000xf32>
    %cst_176 = arith.constant dense<0.000000e+00> : vector<2x1000xf32>
    %210 = tpu.matmul %175, %209, %cst_176 {dimension_numbers = #tpu.dot_dimension_numbers<[1], [0], [0], [1], [0, 0, 1, 1], [], []>} : vector<2x16xf32>, vector<16x1000xf32>, vector<2x1000xf32> -> vector<2x1000xf32>
    %211 = arith.addf %208, %210 : vector<2x1000xf32>
    %c0_177 = arith.constant 0 : index
    %c0_178 = arith.constant 0 : index
    %212 = vector.load %arg35[%c0_177, %c0_178] : memref<16x1000xf32, #tpu.memory_space<vmem>>, vector<16x1000xf32>
    %cst_179 = arith.constant dense<0.000000e+00> : vector<2x1000xf32>
    %213 = tpu.matmul %206, %212, %cst_179 {dimension_numbers = #tpu.dot_dimension_numbers<[1], [0], [0], [1], [0, 0, 1, 1], [], []>} : vector<2x16xf32>, vector<16x1000xf32>, vector<2x1000xf32> -> vector<2x1000xf32>
    %214 = arith.addf %211, %213 : vector<2x1000xf32>
    %c0_180 = arith.constant 0 : index
    %c0_181 = arith.constant 0 : index
    %215 = vector.load %arg36[%c0_180, %c0_181] : memref<1x1000xf32, #tpu.memory_space<vmem>>, vector<1x1000xf32>
    %216 = vector.broadcast %215 : vector<1x1000xf32> to vector<2x1000xf32>
    %217 = arith.addf %214, %216 : vector<2x1000xf32>
    %c0_182 = arith.constant 0 : index
    %c0_183 = arith.constant 0 : index
    %218 = vector.load %arg37[%c0_182, %c0_183] : memref<1000x96xf32, #tpu.memory_space<vmem>>, vector<1000x96xf32>
    %cst_184 = arith.constant dense<0.000000e+00> : vector<2x96xf32>
    %219 = tpu.matmul %217, %218, %cst_184 {dimension_numbers = #tpu.dot_dimension_numbers<[1], [0], [0], [1], [0, 0, 1, 1], [], []>} : vector<2x1000xf32>, vector<1000x96xf32>, vector<2x96xf32> -> vector<2x96xf32>
    %cst_185 = arith.constant 0.000000e+00 : f32
    %220 = vector.broadcast %cst_185 : f32 to vector<2x96xf32>
    %221 = arith.maximumf %219, %220 : vector<2x96xf32>
    %c0_186 = arith.constant 0 : index
    %c0_187 = arith.constant 0 : index
    %222 = vector.load %arg38[%c0_186, %c0_187] : memref<96x1xf32, #tpu.memory_space<vmem>>, vector<96x1xf32>
    %cst_188 = arith.constant dense<0.000000e+00> : vector<2x1xf32>
    %223 = tpu.matmul %221, %222, %cst_188 {dimension_numbers = #tpu.dot_dimension_numbers<[1], [0], [0], [1], [0, 0, 1, 1], [], []>} : vector<2x96xf32>, vector<96x1xf32>, vector<2x1xf32> -> vector<2x1xf32>
    %c0_189 = arith.constant 0 : index
    %c0_190 = arith.constant 0 : index
    %224 = vector.load %arg39[%c0_189, %c0_190] : memref<2x1xf32, #tpu.memory_space<vmem>>, vector<2x1xf32>
    tpu.vector_store %arg39[%c0_189, %c0_190], %223 {strides = array<i32>} : memref<2x1xf32, #tpu.memory_space<vmem>>, vector<2x1xf32>,
    return
  }
  func.func @transform_0(%arg0: i32) -> (i32, i32, i32) {
    %c0_i32 = arith.constant 0 : i32
    %c0_i32_0 = arith.constant 0 : i32
    %c0_i32_1 = arith.constant 0 : i32
    %c0_i32_2 = arith.constant 0 : i32
    return %c0_i32, %c0_i32_0, %c0_i32_1 : i32, i32, i32
  }
  func.func @transform_1(%arg0: i32) -> (i32, i32, i32) {
    %c0_i32 = arith.constant 0 : i32
    %c0_i32_0 = arith.constant 0 : i32
    %c0_i32_1 = arith.constant 0 : i32
    %c0_i32_2 = arith.constant 0 : i32
    return %c0_i32, %c0_i32_0, %c0_i32_1 : i32, i32, i32
  }
  func.func @transform_2(%arg0: i32) -> (i32, i32, i32) {
    %c0_i32 = arith.constant 0 : i32
    %c0_i32_0 = arith.constant 0 : i32
    %c0_i32_1 = arith.constant 0 : i32
    %c0_i32_2 = arith.constant 0 : i32
    return %c0_i32, %c0_i32_0, %c0_i32_1 : i32, i32, i32
  }
  func.func @transform_3(%arg0: i32) -> (i32, i32) {
    %c0_i32 = arith.constant 0 : i32
    %c0_i32_0 = arith.constant 0 : i32
    %c0_i32_1 = arith.constant 0 : i32
    return %c0_i32, %c0_i32_0 : i32, i32
  }
  func.func @transform_4(%arg0: i32) -> (i32, i32) {
    %c0_i32 = arith.constant 0 : i32
    %c0_i32_0 = arith.constant 0 : i32
    %c0_i32_1 = arith.constant 0 : i32
    return %c0_i32, %c0_i32_0 : i32, i32
  }
  func.func @transform_5(%arg0: i32) -> (i32, i32) {
    %c0_i32 = arith.constant 0 : i32
    %c0_i32_0 = arith.constant 0 : i32
    %c0_i32_1 = arith.constant 0 : i32
    return %c0_i32, %c0_i32_0 : i32, i32
  }
  func.func @transform_6(%arg0: i32) -> (i32, i32) {
    %c0_i32 = arith.constant 0 : i32
    %c0_i32_0 = arith.constant 0 : i32
    %c0_i32_1 = arith.constant 0 : i32
    return %c0_i32, %c0_i32_0 : i32, i32
  }
  func.func @transform_7(%arg0: i32) -> (i32, i32) {
    %c0_i32 = arith.constant 0 : i32
    %c0_i32_0 = arith.constant 0 : i32
    %c0_i32_1 = arith.constant 0 : i32
    return %c0_i32, %c0_i32_0 : i32, i32
  }
  func.func @transform_8(%arg0: i32) -> (i32, i32) {
    %c0_i32 = arith.constant 0 : i32
    %c0_i32_0 = arith.constant 0 : i32
    %c0_i32_1 = arith.constant 0 : i32
    return %c0_i32, %c0_i32_0 : i32, i32
  }
  func.func @transform_9(%arg0: i32) -> (i32, i32) {
    %c0_i32 = arith.constant 0 : i32
    %c0_i32_0 = arith.constant 0 : i32
    %c0_i32_1 = arith.constant 0 : i32
    return %c0_i32, %c0_i32_0 : i32, i32
  }
  func.func @transform_10(%arg0: i32) -> (i32, i32) {
    %c0_i32 = arith.constant 0 : i32
    %c0_i32_0 = arith.constant 0 : i32
    %c0_i32_1 = arith.constant 0 : i32
    return %c0_i32, %c0_i32_0 : i32, i32
  }
  func.func @transform_11(%arg0: i32) -> (i32, i32) {
    %c0_i32 = arith.constant 0 : i32
    %c0_i32_0 = arith.constant 0 : i32
    %c0_i32_1 = arith.constant 0 : i32
    return %c0_i32, %c0_i32_0 : i32, i32
  }
  func.func @transform_12(%arg0: i32) -> (i32, i32) {
    %c0_i32 = arith.constant 0 : i32
    %c0_i32_0 = arith.constant 0 : i32
    %c0_i32_1 = arith.constant 0 : i32
    return %c0_i32, %c0_i32_0 : i32, i32
  }
  func.func @transform_13(%arg0: i32) -> (i32, i32) {
    %c0_i32 = arith.constant 0 : i32
    %c0_i32_0 = arith.constant 0 : i32
    %c0_i32_1 = arith.constant 0 : i32
    return %c0_i32, %c0_i32_0 : i32, i32
  }
  func.func @transform_14(%arg0: i32) -> (i32, i32) {
    %c0_i32 = arith.constant 0 : i32
    %c0_i32_0 = arith.constant 0 : i32
    %c0_i32_1 = arith.constant 0 : i32
    return %c0_i32, %c0_i32_0 : i32, i32
  }
  func.func @transform_15(%arg0: i32) -> (i32, i32) {
    %c0_i32 = arith.constant 0 : i32
    %c0_i32_0 = arith.constant 0 : i32
    %c0_i32_1 = arith.constant 0 : i32
    return %c0_i32, %c0_i32_0 : i32, i32
  }
  func.func @transform_16(%arg0: i32) -> (i32, i32) {
    %c0_i32 = arith.constant 0 : i32
    %c0_i32_0 = arith.constant 0 : i32
    %c0_i32_1 = arith.constant 0 : i32
    return %c0_i32, %c0_i32_0 : i32, i32
  }
  func.func @transform_17(%arg0: i32) -> (i32, i32) {
    %c0_i32 = arith.constant 0 : i32
    %c0_i32_0 = arith.constant 0 : i32
    %c0_i32_1 = arith.constant 0 : i32
    return %c0_i32, %c0_i32_0 : i32, i32
  }
  func.func @transform_18(%arg0: i32) -> (i32, i32) {
    %c0_i32 = arith.constant 0 : i32
    %c0_i32_0 = arith.constant 0 : i32
    %c0_i32_1 = arith.constant 0 : i32
    return %c0_i32, %c0_i32_0 : i32, i32
  }
  func.func @transform_19(%arg0: i32) -> (i32, i32) {
    %c0_i32 = arith.constant 0 : i32
    %c0_i32_0 = arith.constant 0 : i32
    %c0_i32_1 = arith.constant 0 : i32
    return %c0_i32, %c0_i32_0 : i32, i32
  }
  func.func @transform_20(%arg0: i32) -> (i32, i32) {
    %c0_i32 = arith.constant 0 : i32
    %c0_i32_0 = arith.constant 0 : i32
    %c0_i32_1 = arith.constant 0 : i32
    return %c0_i32, %c0_i32_0 : i32, i32
  }
  func.func @transform_21(%arg0: i32) -> (i32, i32) {
    %c0_i32 = arith.constant 0 : i32
    %c0_i32_0 = arith.constant 0 : i32
    %c0_i32_1 = arith.constant 0 : i32
    return %c0_i32, %c0_i32_0 : i32, i32
  }
  func.func @transform_22(%arg0: i32) -> (i32, i32) {
    %c0_i32 = arith.constant 0 : i32
    %c0_i32_0 = arith.constant 0 : i32
    %c0_i32_1 = arith.constant 0 : i32
    return %c0_i32, %c0_i32_0 : i32, i32
  }
  func.func @transform_23(%arg0: i32) -> (i32, i32) {
    %c0_i32 = arith.constant 0 : i32
    %c0_i32_0 = arith.constant 0 : i32
    %c0_i32_1 = arith.constant 0 : i32
    return %c0_i32, %c0_i32_0 : i32, i32
  }
  func.func @transform_24(%arg0: i32) -> (i32, i32) {
    %c0_i32 = arith.constant 0 : i32
    %c0_i32_0 = arith.constant 0 : i32
    %c0_i32_1 = arith.constant 0 : i32
    return %c0_i32, %c0_i32_0 : i32, i32
  }
  func.func @transform_25(%arg0: i32) -> (i32, i32) {
    %c0_i32 = arith.constant 0 : i32
    %c0_i32_0 = arith.constant 0 : i32
    %c0_i32_1 = arith.constant 0 : i32
    return %c0_i32, %c0_i32_0 : i32, i32
  }
  func.func @transform_26(%arg0: i32) -> (i32, i32) {
    %c0_i32 = arith.constant 0 : i32
    %c0_i32_0 = arith.constant 0 : i32
    %c0_i32_1 = arith.constant 0 : i32
    return %c0_i32, %c0_i32_0 : i32, i32
  }
  func.func @transform_27(%arg0: i32) -> (i32, i32) {
    %c0_i32 = arith.constant 0 : i32
    %c0_i32_0 = arith.constant 0 : i32
    %c0_i32_1 = arith.constant 0 : i32
    return %c0_i32, %c0_i32_0 : i32, i32
  }
  func.func @transform_28(%arg0: i32) -> (i32, i32) {
    %c0_i32 = arith.constant 0 : i32
    %c0_i32_0 = arith.constant 0 : i32
    %c0_i32_1 = arith.constant 0 : i32
    return %c0_i32, %c0_i32_0 : i32, i32
  }
  func.func @transform_29(%arg0: i32) -> (i32, i32) {
    %c0_i32 = arith.constant 0 : i32
    %c0_i32_0 = arith.constant 0 : i32
    %c0_i32_1 = arith.constant 0 : i32
    return %c0_i32, %c0_i32_0 : i32, i32
  }
  func.func @transform_30(%arg0: i32) -> (i32, i32) {
    %c0_i32 = arith.constant 0 : i32
    %c0_i32_0 = arith.constant 0 : i32
    %c0_i32_1 = arith.constant 0 : i32
    return %c0_i32, %c0_i32_0 : i32, i32
  }
  func.func @transform_31(%arg0: i32) -> (i32, i32) {
    %c0_i32 = arith.constant 0 : i32
    %c0_i32_0 = arith.constant 0 : i32
    %c0_i32_1 = arith.constant 0 : i32
    return %c0_i32, %c0_i32_0 : i32, i32
  }
  func.func @transform_32(%arg0: i32) -> (i32, i32) {
    %c0_i32 = arith.constant 0 : i32
    %c0_i32_0 = arith.constant 0 : i32
    %c0_i32_1 = arith.constant 0 : i32
    return %c0_i32, %c0_i32_0 : i32, i32
  }
  func.func @transform_33(%arg0: i32) -> (i32, i32) {
    %c0_i32 = arith.constant 0 : i32
    %c0_i32_0 = arith.constant 0 : i32
    %c0_i32_1 = arith.constant 0 : i32
    return %c0_i32, %c0_i32_0 : i32, i32
  }
  func.func @transform_34(%arg0: i32) -> (i32, i32) {
    %c0_i32 = arith.constant 0 : i32
    %c0_i32_0 = arith.constant 0 : i32
    %c0_i32_1 = arith.constant 0 : i32
    return %c0_i32, %c0_i32_0 : i32, i32
  }
  func.func @transform_35(%arg0: i32) -> (i32, i32) {
    %c0_i32 = arith.constant 0 : i32
    %c0_i32_0 = arith.constant 0 : i32
    %c0_i32_1 = arith.constant 0 : i32
    return %c0_i32, %c0_i32_0 : i32, i32
  }
  func.func @transform_36(%arg0: i32) -> (i32, i32) {
    %c0_i32 = arith.constant 0 : i32
    %c0_i32_0 = arith.constant 0 : i32
    %c0_i32_1 = arith.constant 0 : i32
    return %c0_i32, %c0_i32_0 : i32, i32
  }
  func.func @transform_37(%arg0: i32) -> (i32, i32) {
    %c0_i32 = arith.constant 0 : i32
    %c0_i32_0 = arith.constant 0 : i32
    %c0_i32_1 = arith.constant 0 : i32
    return %c0_i32, %c0_i32_0 : i32, i32
  }
  func.func @transform_38(%arg0: i32) -> (i32, i32) {
    %c0_i32 = arith.constant 0 : i32
    %c0_i32_0 = arith.constant 0 : i32
    %c0_i32_1 = arith.constant 0 : i32
    return %c0_i32, %c0_i32_0 : i32, i32
  }
}

</mosaic_0001>

<llo_original>
// kernel: _lambda_.1
$region0: #{_lambda_.1}
  #allocation0 [shape = 'u32[]', space=smem, size = 0x4, offset = 0x4, fixed_abs, tag = 'smem constant byte address 0x4 - core index']
  #allocation1 [shape = 'u32[144,128]{1,0:T(1,128)}', space=vmem, size = 0x12000, scoped, tag = 'internal scratch']
  #allocation2 [shape = 'f32[8,2,64]{2,1,0:T(2,128)}', space=vmem, size = 0x2000, scoped, tag = 'scratch operand']
  #allocation3 [shape = 'f32[8,2,8]{2,1,0:T(2,128)}', space=vmem, size = 0x2000, scoped, tag = 'scratch operand']
  #allocation4 [shape = 'f32[8,2,8]{2,1,0:T(2,128)}', space=vmem, size = 0x2000, scoped, tag = 'scratch operand']
  #allocation5 [shape = 'f32[2,16]{1,0:T(2,128)}', space=vmem, size = 0x400, scoped, tag = 'scratch operand']
  #allocation6 [shape = 'f32[2,16]{1,0:T(2,128)}', space=vmem, size = 0x400, scoped, tag = 'scratch operand']
  #allocation7 [shape = 'f32[8,2,64]{2,1,0:T(2,128)}', space=vmem, size = 0x2000, scoped, tag = 'scratch operand']
  #allocation8 [shape = 'f32[8,2,8]{2,1,0:T(2,128)}', space=vmem, size = 0x2000, scoped, tag = 'scratch operand']
  #allocation9 [shape = 'f32[8,2,8]{2,1,0:T(2,128)}', space=vmem, size = 0x2000, scoped, tag = 'scratch operand']
  #allocation10 [shape = 'f32[2,16]{1,0:T(2,128)}', space=vmem, size = 0x400, scoped, tag = 'scratch operand']
  #allocation11 [shape = 'f32[2,16]{1,0:T(2,128)}', space=vmem, size = 0x400, scoped, tag = 'scratch operand']
  %s0 = inlined_call_operand.smem [shape: u32[39], index: -1, kind: input, shape index: {}]
  %s1 = sld [smem:[%s0]]
  %s2 = scalar_lea.smem %s0, 1
  %s3 = sld [smem:[%s2]]
  %s4 = scalar_lea.smem %s0, 2
  %s5 = sld [smem:[%s4]]
  %s6 = scalar_lea.smem %s0, 3
  %s7 = sld [smem:[%s6]]
  %s8 = scalar_lea.smem %s0, 4
  %s9 = sld [smem:[%s8]]
  %s10 = scalar_lea.smem %s0, 5
  %s11 = sld [smem:[%s10]]
  %s12 = scalar_lea.smem %s0, 6
  %s13 = sld [smem:[%s12]]
  %s14 = scalar_lea.smem %s0, 7
  %s15 = sld [smem:[%s14]]
  %s16 = scalar_lea.smem %s0, 8
  %s17 = sld [smem:[%s16]]
  %s18 = scalar_lea.smem %s0, 9
  %s19 = sld [smem:[%s18]]
  %s20 = scalar_lea.smem %s0, 10
  %s21 = sld [smem:[%s20]]
  %s22 = scalar_lea.smem %s0, 11
  %s23 = sld [smem:[%s22]]
  %s24 = scalar_lea.smem %s0, 12
  %s25 = sld [smem:[%s24]]
  %s26 = scalar_lea.smem %s0, 13
  %s27 = sld [smem:[%s26]]
  %s28 = scalar_lea.smem %s0, 14
  %s29 = sld [smem:[%s28]]
  %s30 = scalar_lea.smem %s0, 15
  %s31 = sld [smem:[%s30]]
  %s32 = scalar_lea.smem %s0, 16
  %s33 = sld [smem:[%s32]]
  %s34 = scalar_lea.smem %s0, 17
  %s35 = sld [smem:[%s34]]
  %s36 = scalar_lea.smem %s0, 18
  %s37 = sld [smem:[%s36]]
  %s38 = scalar_lea.smem %s0, 19
  %s39 = sld [smem:[%s38]]
  %s40 = scalar_lea.smem %s0, 20
  %s41 = sld [smem:[%s40]]
  %s42 = scalar_lea.smem %s0, 21
  %s43 = sld [smem:[%s42]]
  %s44 = scalar_lea.smem %s0, 22
  %s45 = sld [smem:[%s44]]
  %s46 = scalar_lea.smem %s0, 23
  %s47 = sld [smem:[%s46]]
  %s48 = scalar_lea.smem %s0, 24
  %s49 = sld [smem:[%s48]]
  %s50 = scalar_lea.smem %s0, 25
  %s51 = sld [smem:[%s50]]
  %s52 = scalar_lea.smem %s0, 26
  %s53 = sld [smem:[%s52]]
  %s54 = scalar_lea.smem %s0, 27
  %s55 = sld [smem:[%s54]]
  %s56 = scalar_lea.smem %s0, 28
  %s57 = sld [smem:[%s56]]
  %s58 = scalar_lea.smem %s0, 29
  %s59 = sld [smem:[%s58]]
  %s60 = scalar_lea.smem %s0, 30
  %s61 = sld [smem:[%s60]]
  %s62 = scalar_lea.smem %s0, 31
  %s63 = sld [smem:[%s62]]
  %s64 = scalar_lea.smem %s0, 32
  %s65 = sld [smem:[%s64]]
  %s66 = scalar_lea.smem %s0, 33
  %s67 = sld [smem:[%s66]]
  %s68 = scalar_lea.smem %s0, 34
  %s69 = sld [smem:[%s68]]
  %s70 = scalar_lea.smem %s0, 35
  %s71 = sld [smem:[%s70]]
  %s72 = scalar_lea.smem %s0, 36
  %s73 = sld [smem:[%s72]]
  %s74 = scalar_lea.smem %s0, 37
  %s75 = sld [smem:[%s74]]
  %s76 = scalar_lea.smem %s0, 38
  %s77 = sld [smem:[%s76]]
  %s78 = sld [smem:[#allocation0]]
  $region306: #{_lambda_.1} parent=0
    _
  %s80 = ssub.s32 1, %s78
  %s81 = scalar_select 0, %s80, %s78
  $region1: #{_lambda_.1} parent=0
    #allocation12 [shape = 'u8[8192]{0}', space=vmem, size = 0x2000, scoped, tag = 'input window, operand 1, single buffered']
    #allocation13 [shape = 's32[1]{0}', space=sflag, size = 0x4, scoped, tag = 'scoped memory for _lambda_.1']
    #allocation14 [shape = 'u8[512]{0}', space=vmem, size = 0x400, scoped, tag = 'input window, operand 11, single buffered']
    #allocation15 [shape = 's32[1]{0}', space=sflag, size = 0x4, scoped, tag = 'scoped memory for _lambda_.1']
    #allocation16 [shape = 'u8[4096]{0}', space=vmem, size = 0x1000, scoped, tag = 'input window, operand 12, single buffered']
    #allocation17 [shape = 'u8[8192]{0}', space=vmem, size = 0x2000, scoped, tag = 'input window, operand 13, single buffered']
    #allocation18 [shape = 's32[1]{0}', space=sflag, size = 0x4, scoped, tag = 'scoped memory for _lambda_.1']
    #allocation19 [shape = 'u8[512]{0}', space=vmem, size = 0x400, scoped, tag = 'input window, operand 14, single buffered']
    #allocation20 [shape = 'u8[8192]{0}', space=vmem, size = 0x2000, scoped, tag = 'input window, operand 17, single buffered']
    #allocation21 [shape = 's32[1]{0}', space=sflag, size = 0x4, scoped, tag = 'scoped memory for _lambda_.1']
    #allocation22 [shape = 'u8[8192]{0}', space=vmem, size = 0x2000, scoped, tag = 'input window, operand 18, single buffered']
    #allocation23 [shape = 'u8[512]{0}', space=vmem, size = 0x400, scoped, tag = 'input window, operand 19, single buffered']
    #allocation24 [shape = 's32[1]{0}', space=sflag, size = 0x4, scoped, tag = 'scoped memory for _lambda_.1']
    #allocation25 [shape = 'u8[512]{0}', space=vmem, size = 0x400, scoped, tag = 'input window, operand 21, single buffered']
    #allocation26 [shape = 'u8[512]{0}', space=vmem, size = 0x400, scoped, tag = 'input window, operand 25, single buffered']
    #allocation27 [shape = 's32[1]{0}', space=sflag, size = 0x4, scoped, tag = 'scoped memory for _lambda_.1']
    #allocation28 [shape = 'u8[16384]{0}', space=vmem, size = 0x4000, scoped, tag = 'input window, operand 28, single buffered']
    #allocation29 [shape = 'u8[512]{0}', space=vmem, size = 0x400, scoped, tag = 'input window, operand 29, single buffered']
    #allocation30 [shape = 's32[1]{0}', space=sflag, size = 0x4, scoped, tag = 'scoped memory for _lambda_.1']
    #allocation31 [shape = 'u8[65536]{0}', space=vmem, size = 0x10000, scoped, tag = 'input window, operand 34, single buffered']
    #allocation32 [shape = 'u8[4096]{0}', space=vmem, size = 0x1000, scoped, tag = 'input window, operand 35, single buffered']
    #allocation33 [shape = 's32[1]{0}', space=sflag, size = 0x4, scoped, tag = 'scoped memory for _lambda_.1']
    #allocation34 [shape = 'u8[49152]{0}', space=vmem, size = 0xc000, scoped, tag = 'input window, operand 37, single buffered']
    %82 = vsyncpa [#allocation13], 0
    %83 = vsyncpa [#allocation15], 0
    %84 = vsyncpa [#allocation18], 0
    %85 = vsyncpa [#allocation21], 0
    %86 = vsyncpa [#allocation24], 0
    %87 = vsyncpa [#allocation27], 0
    %88 = vsyncpa [#allocation30], 0
    %89 = vsyncpa [#allocation33], 0
    // Predicated region
    $region2: #{_lambda_.1} parent=1 // pred_check
      _
    $region3: #{_lambda_.1} parent=1 // pred_check_branch
      %91 = sbr.rel (0) target = $region5
    $region4: #{_lambda_.1} parent=1 // pred_region
      _
    $region5: #{_lambda_.1} parent=1 // pred_fallthru
      _
    // Predicated region
    $region6: #{_lambda_.1} parent=1 // pred_check
      _
    $region7: #{_lambda_.1} parent=1 // pred_check_branch
      %93 = sbr.rel (0) target = $region9
    $region8: #{_lambda_.1} parent=1 // pred_region
      %s95 = ssub.s32 256, 256
      %96 = vsyncadd [#allocation13], %s95
      %s97 = sshll.u32 [#allocation12], 4
      %s98 = int_to_ptr.vmem [resolvable:$true] %s97
      %103 = dma.hbm_to_vmem [thread:$0]  %s3, 256, %s98, [#allocation13], 32, 32, 2
    $region9: #{_lambda_.1} parent=1 // pred_fallthru
      _
    // Predicated region
    $region10: #{_lambda_.1} parent=1 // pred_check
      _
    $region11: #{_lambda_.1} parent=1 // pred_check_branch
      %105 = sbr.rel (0) target = $region13
    $region12: #{_lambda_.1} parent=1 // pred_region
      _
    $region13: #{_lambda_.1} parent=1 // pred_fallthru
      _
    // Predicated region
    $region14: #{_lambda_.1} parent=1 // pred_check
      _
    $region15: #{_lambda_.1} parent=1 // pred_check_branch
      %107 = sbr.rel (0) target = $region17
    $region16: #{_lambda_.1} parent=1 // pred_region
      _
    $region17: #{_lambda_.1} parent=1 // pred_fallthru
      _
    // Predicated region
    $region18: #{_lambda_.1} parent=1 // pred_check
      _
    $region19: #{_lambda_.1} parent=1 // pred_check_branch
      %109 = sbr.rel (0) target = $region21
    $region20: #{_lambda_.1} parent=1 // pred_region
      _
    $region21: #{_lambda_.1} parent=1 // pred_fallthru
      _
    // Predicated region
    $region22: #{_lambda_.1} parent=1 // pred_check
      _
    $region23: #{_lambda_.1} parent=1 // pred_check_branch
      %111 = sbr.rel (0) target = $region25
    $region24: #{_lambda_.1} parent=1 // pred_region
      _
    $region25: #{_lambda_.1} parent=1 // pred_fallthru
      _
    // Predicated region
    $region26: #{_lambda_.1} parent=1 // pred_check
      _
    $region27: #{_lambda_.1} parent=1 // pred_check_branch
      %113 = sbr.rel (0) target = $region29
    $region28: #{_lambda_.1} parent=1 // pred_region
      _
    $region29: #{_lambda_.1} parent=1 // pred_fallthru
      _
    // Predicated region
    $region30: #{_lambda_.1} parent=1 // pred_check
      _
    $region31: #{_lambda_.1} parent=1 // pred_check_branch
      %115 = sbr.rel (0) target = $region33
    $region32: #{_lambda_.1} parent=1 // pred_region
      _
    $region33: #{_lambda_.1} parent=1 // pred_fallthru
      _
    // Predicated region
    $region34: #{_lambda_.1} parent=1 // pred_check
      _
    $region35: #{_lambda_.1} parent=1 // pred_check_branch
      %117 = sbr.rel (0) target = $region37
    $region36: #{_lambda_.1} parent=1 // pred_region
      _
    $region37: #{_lambda_.1} parent=1 // pred_fallthru
      _
    // Predicated region
    $region38: #{_lambda_.1} parent=1 // pred_check
      _
    $region39: #{_lambda_.1} parent=1 // pred_check_branch
      %119 = sbr.rel (0) target = $region41
    $region40: #{_lambda_.1} parent=1 // pred_region
      _
    $region41: #{_lambda_.1} parent=1 // pred_fallthru
      _
    // Predicated region
    $region42: #{_lambda_.1} parent=1 // pred_check
      _
    $region43: #{_lambda_.1} parent=1 // pred_check_branch
      %121 = sbr.rel (0) target = $region45
    $region44: #{_lambda_.1} parent=1 // pred_region
      _
    $region45: #{_lambda_.1} parent=1 // pred_fallthru
      _
    // Predicated region
    $region46: #{_lambda_.1} parent=1 // pred_check
      _
    $region47: #{_lambda_.1} parent=1 // pred_check_branch
      %123 = sbr.rel (0) target = $region49
    $region48: #{_lambda_.1} parent=1 // pred_region
      %s125 = ssub.s32 16, 16
      %126 = vsyncadd [#allocation15], %s125
      %s128 = sshll.u32 [#allocation14], 4
      %s129 = int_to_ptr.vmem [resolvable:$true] %s128
      %131 = dma.hbm_to_vmem [thread:$0]  %s23, 16, %s129, [#allocation15]
    $region49: #{_lambda_.1} parent=1 // pred_fallthru
      _
    // Predicated region
    $region50: #{_lambda_.1} parent=1 // pred_check
      _
    $region51: #{_lambda_.1} parent=1 // pred_check_branch
      %133 = sbr.rel (0) target = $region53
    $region52: #{_lambda_.1} parent=1 // pred_region
      %s135 = ssub.s32 128, 128
      %136 = vsyncadd [#allocation15], %s135
      %s138 = sshll.u32 [#allocation16], 4
      %s139 = int_to_ptr.vmem [resolvable:$true] %s138
      %141 = dma.hbm_to_vmem [thread:$0]  %s25, 128, %s139, [#allocation15]
    $region53: #{_lambda_.1} parent=1 // pred_fallthru
      _
    // Predicated region
    $region54: #{_lambda_.1} parent=1 // pred_check
      _
    $region55: #{_lambda_.1} parent=1 // pred_check_branch
      %143 = sbr.rel (0) target = $region57
    $region56: #{_lambda_.1} parent=1 // pred_region
      %s145 = ssub.s32 256, 256
      %146 = vsyncadd [#allocation18], %s145
      %s147 = sshll.u32 [#allocation17], 4
      %s148 = int_to_ptr.vmem [resolvable:$true] %s147
      %153 = dma.hbm_to_vmem [thread:$0]  %s27, 256, %s148, [#allocation18], 128, 128, 8
    $region57: #{_lambda_.1} parent=1 // pred_fallthru
      _
    // Predicated region
    $region58: #{_lambda_.1} parent=1 // pred_check
      _
    $region59: #{_lambda_.1} parent=1 // pred_check_branch
      %155 = sbr.rel (0) target = $region61
    $region60: #{_lambda_.1} parent=1 // pred_region
      %s157 = ssub.s32 16, 16
      %158 = vsyncadd [#allocation18], %s157
      %s160 = sshll.u32 [#allocation19], 4
      %s161 = int_to_ptr.vmem [resolvable:$true] %s160
      %163 = dma.hbm_to_vmem [thread:$0]  %s29, 16, %s161, [#allocation18]
    $region61: #{_lambda_.1} parent=1 // pred_fallthru
      _
    // Predicated region
    $region62: #{_lambda_.1} parent=1 // pred_check
      _
    $region63: #{_lambda_.1} parent=1 // pred_check_branch
      %165 = sbr.rel (0) target = $region65
    $region64: #{_lambda_.1} parent=1 // pred_region
      _
    $region65: #{_lambda_.1} parent=1 // pred_fallthru
      _
    // Predicated region
    $region66: #{_lambda_.1} parent=1 // pred_check
      _
    $region67: #{_lambda_.1} parent=1 // pred_check_branch
      %167 = sbr.rel (0) target = $region69
    $region68: #{_lambda_.1} parent=1 // pred_region
      _
    $region69: #{_lambda_.1} parent=1 // pred_fallthru
      _
    // Predicated region
    $region70: #{_lambda_.1} parent=1 // pred_check
      _
    $region71: #{_lambda_.1} parent=1 // pred_check_branch
      %169 = sbr.rel (0) target = $region73
    $region72: #{_lambda_.1} parent=1 // pred_region
      %s171 = ssub.s32 256, 256
      %172 = vsyncadd [#allocation21], %s171
      %s173 = sshll.u32 [#allocation20], 4
      %s174 = int_to_ptr.vmem [resolvable:$true] %s173
      %179 = dma.hbm_to_vmem [thread:$0]  %s35, 256, %s174, [#allocation21], 128, 128, 8
    $region73: #{_lambda_.1} parent=1 // pred_fallthru
      _
    // Predicated region
    $region74: #{_lambda_.1} parent=1 // pred_check
      _
    $region75: #{_lambda_.1} parent=1 // pred_check_branch
      %181 = sbr.rel (0) target = $region77
    $region76: #{_lambda_.1} parent=1 // pred_region
      %s183 = ssub.s32 256, 256
      %184 = vsyncadd [#allocation21], %s183
      %s185 = sshll.u32 [#allocation22], 4
      %s186 = int_to_ptr.vmem [resolvable:$true] %s185
      %191 = dma.hbm_to_vmem [thread:$0]  %s37, 256, %s186, [#allocation21], 128, 128, 8
    $region77: #{_lambda_.1} parent=1 // pred_fallthru
      _
    // Predicated region
    $region78: #{_lambda_.1} parent=1 // pred_check
      _
    $region79: #{_lambda_.1} parent=1 // pred_check_branch
      %193 = sbr.rel (0) target = $region81
    $region80: #{_lambda_.1} parent=1 // pred_region
      %s195 = ssub.s32 16, 16
      %196 = vsyncadd [#allocation24], %s195
      %s198 = sshll.u32 [#allocation23], 4
      %s199 = int_to_ptr.vmem [resolvable:$true] %s198
      %201 = dma.hbm_to_vmem [thread:$0]  %s39, 16, %s199, [#allocation24]
    $region81: #{_lambda_.1} parent=1 // pred_fallthru
      _
    // Predicated region
    $region82: #{_lambda_.1} parent=1 // pred_check
      _
    $region83: #{_lambda_.1} parent=1 // pred_check_branch
      %203 = sbr.rel (0) target = $region85
    $region84: #{_lambda_.1} parent=1 // pred_region
      _
    $region85: #{_lambda_.1} parent=1 // pred_fallthru
      _
    // Predicated region
    $region86: #{_lambda_.1} parent=1 // pred_check
      _
    $region87: #{_lambda_.1} parent=1 // pred_check_branch
      %205 = sbr.rel (0) target = $region89
    $region88: #{_lambda_.1} parent=1 // pred_region
      %s207 = ssub.s32 16, 16
      %208 = vsyncadd [#allocation24], %s207
      %s210 = sshll.u32 [#allocation25], 4
      %s211 = int_to_ptr.vmem [resolvable:$true] %s210
      %213 = dma.hbm_to_vmem [thread:$0]  %s43, 16, %s211, [#allocation24]
    $region89: #{_lambda_.1} parent=1 // pred_fallthru
      _
    // Predicated region
    $region90: #{_lambda_.1} parent=1 // pred_check
      _
    $region91: #{_lambda_.1} parent=1 // pred_check_branch
      %215 = sbr.rel (0) target = $region93
    $region92: #{_lambda_.1} parent=1 // pred_region
      _
    $region93: #{_lambda_.1} parent=1 // pred_fallthru
      _
    // Predicated region
    $region94: #{_lambda_.1} parent=1 // pred_check
      _
    $region95: #{_lambda_.1} parent=1 // pred_check_branch
      %217 = sbr.rel (0) target = $region97
    $region96: #{_lambda_.1} parent=1 // pred_region
      _
    $region97: #{_lambda_.1} parent=1 // pred_fallthru
      _
    // Predicated region
    $region98: #{_lambda_.1} parent=1 // pred_check
      _
    $region99: #{_lambda_.1} parent=1 // pred_check_branch
      %219 = sbr.rel (0) target = $region101
    $region100: #{_lambda_.1} parent=1 // pred_region
      _
    $region101: #{_lambda_.1} parent=1 // pred_fallthru
      _
    // Predicated region
    $region102: #{_lambda_.1} parent=1 // pred_check
      _
    $region103: #{_lambda_.1} parent=1 // pred_check_branch
      %221 = sbr.rel (0) target = $region105
    $region104: #{_lambda_.1} parent=1 // pred_region
      %s223 = ssub.s32 16, 16
      %224 = vsyncadd [#allocation27], %s223
      %s226 = sshll.u32 [#allocation26], 4
      %s227 = int_to_ptr.vmem [resolvable:$true] %s226
      %229 = dma.hbm_to_vmem [thread:$0]  %s51, 16, %s227, [#allocation27]
    $region105: #{_lambda_.1} parent=1 // pred_fallthru
      _
    // Predicated region
    $region106: #{_lambda_.1} parent=1 // pred_check
      _
    $region107: #{_lambda_.1} parent=1 // pred_check_branch
      %231 = sbr.rel (0) target = $region109
    $region108: #{_lambda_.1} parent=1 // pred_region
      _
    $region109: #{_lambda_.1} parent=1 // pred_fallthru
      _
    // Predicated region
    $region110: #{_lambda_.1} parent=1 // pred_check
      _
    $region111: #{_lambda_.1} parent=1 // pred_check_branch
      %233 = sbr.rel (0) target = $region113
    $region112: #{_lambda_.1} parent=1 // pred_region
      _
    $region113: #{_lambda_.1} parent=1 // pred_fallthru
      _
    // Predicated region
    $region114: #{_lambda_.1} parent=1 // pred_check
      _
    $region115: #{_lambda_.1} parent=1 // pred_check_branch
      %235 = sbr.rel (0) target = $region117
    $region116: #{_lambda_.1} parent=1 // pred_region
      %s237 = ssub.s32 512, 512
      %238 = vsyncadd [#allocation27], %s237
      %s239 = sshll.u32 [#allocation28], 4
      %s240 = int_to_ptr.vmem [resolvable:$true] %s239
      %245 = dma.hbm_to_vmem [thread:$0]  %s57, 512, %s240, [#allocation27], 128, 128, 8
    $region117: #{_lambda_.1} parent=1 // pred_fallthru
      _
    // Predicated region
    $region118: #{_lambda_.1} parent=1 // pred_check
      _
    $region119: #{_lambda_.1} parent=1 // pred_check_branch
      %247 = sbr.rel (0) target = $region121
    $region120: #{_lambda_.1} parent=1 // pred_region
      %s249 = ssub.s32 16, 16
      %250 = vsyncadd [#allocation30], %s249
      %s252 = sshll.u32 [#allocation29], 4
      %s253 = int_to_ptr.vmem [resolvable:$true] %s252
      %255 = dma.hbm_to_vmem [thread:$0]  %s59, 16, %s253, [#allocation30]
    $region121: #{_lambda_.1} parent=1 // pred_fallthru
      _
    // Predicated region
    $region122: #{_lambda_.1} parent=1 // pred_check
      _
    $region123: #{_lambda_.1} parent=1 // pred_check_branch
      %257 = sbr.rel (0) target = $region125
    $region124: #{_lambda_.1} parent=1 // pred_region
      _
    $region125: #{_lambda_.1} parent=1 // pred_fallthru
      _
    // Predicated region
    $region126: #{_lambda_.1} parent=1 // pred_check
      _
    $region127: #{_lambda_.1} parent=1 // pred_check_branch
      %259 = sbr.rel (0) target = $region129
    $region128: #{_lambda_.1} parent=1 // pred_region
      _
    $region129: #{_lambda_.1} parent=1 // pred_fallthru
      _
    // Predicated region
    $region130: #{_lambda_.1} parent=1 // pred_check
      _
    $region131: #{_lambda_.1} parent=1 // pred_check_branch
      %261 = sbr.rel (0) target = $region133
    $region132: #{_lambda_.1} parent=1 // pred_region
      _
    $region133: #{_lambda_.1} parent=1 // pred_fallthru
      _
    // Predicated region
    $region134: #{_lambda_.1} parent=1 // pred_check
      _
    $region135: #{_lambda_.1} parent=1 // pred_check_branch
      %263 = sbr.rel (0) target = $region137
    $region136: #{_lambda_.1} parent=1 // pred_region
      _
    $region137: #{_lambda_.1} parent=1 // pred_fallthru
      _
    // Predicated region
    $region138: #{_lambda_.1} parent=1 // pred_check
      _
    $region139: #{_lambda_.1} parent=1 // pred_check_branch
      %265 = sbr.rel (0) target = $region141
    $region140: #{_lambda_.1} parent=1 // pred_region
      %s267 = ssub.s32 2048, 2048
      %268 = vsyncadd [#allocation30], %s267
      %s269 = sshll.u32 [#allocation31], 4
      %s270 = int_to_ptr.vmem [resolvable:$true] %s269
      %275 = dma.hbm_to_vmem [thread:$0]  %s69, 2048, %s270, [#allocation30], 1024, 1024, 64
    $region141: #{_lambda_.1} parent=1 // pred_fallthru
      _
    // Predicated region
    $region142: #{_lambda_.1} parent=1 // pred_check
      _
    $region143: #{_lambda_.1} parent=1 // pred_check_branch
      %277 = sbr.rel (0) target = $region145
    $region144: #{_lambda_.1} parent=1 // pred_region
      %s279 = ssub.s32 128, 128
      %280 = vsyncadd [#allocation33], %s279
      %s282 = sshll.u32 [#allocation32], 4
      %s283 = int_to_ptr.vmem [resolvable:$true] %s282
      %285 = dma.hbm_to_vmem [thread:$0]  %s71, 128, %s283, [#allocation33]
    $region145: #{_lambda_.1} parent=1 // pred_fallthru
      _
    // Predicated region
    $region146: #{_lambda_.1} parent=1 // pred_check
      _
    $region147: #{_lambda_.1} parent=1 // pred_check_branch
      %287 = sbr.rel (0) target = $region149
    $region148: #{_lambda_.1} parent=1 // pred_region
      _
    $region149: #{_lambda_.1} parent=1 // pred_fallthru
      _
    // Predicated region
    $region150: #{_lambda_.1} parent=1 // pred_check
      _
    $region151: #{_lambda_.1} parent=1 // pred_check_branch
      %289 = sbr.rel (0) target = $region153
    $region152: #{_lambda_.1} parent=1 // pred_region
      %s291 = ssub.s32 1536, 1536
      %292 = vsyncadd [#allocation33], %s291
      %s293 = sshll.u32 [#allocation34], 4
      %s294 = int_to_ptr.vmem [resolvable:$true] %s293
      %299 = dma.hbm_to_vmem [thread:$0]  %s75, 1536, %s294, [#allocation33], 128, 128, 8
    $region153: #{_lambda_.1} parent=1 // pred_fallthru
      _
    // Predicated region
    $region154: #{_lambda_.1} parent=1 // pred_check
      _
    $region155: #{_lambda_.1} parent=1 // pred_check_branch
      %301 = sbr.rel (0) target = $region157
    $region156: #{_lambda_.1} parent=1 // pred_region
      %302 = dma.done [#allocation13], 256
    $region157: #{_lambda_.1} parent=1 // pred_fallthru
      _
    // Predicated region
    $region158: #{_lambda_.1} parent=1 // pred_check
      _
    $region159: #{_lambda_.1} parent=1 // pred_check_branch
      %304 = sbr.rel (0) target = $region161
    $region160: #{_lambda_.1} parent=1 // pred_region
      %305 = dma.done [#allocation15], 16
    $region161: #{_lambda_.1} parent=1 // pred_fallthru
      _
    // Predicated region
    $region162: #{_lambda_.1} parent=1 // pred_check
      _
    $region163: #{_lambda_.1} parent=1 // pred_check_branch
      %307 = sbr.rel (0) target = $region165
    $region164: #{_lambda_.1} parent=1 // pred_region
      %308 = dma.done [#allocation15], 128
    $region165: #{_lambda_.1} parent=1 // pred_fallthru
      _
    // Predicated region
    $region166: #{_lambda_.1} parent=1 // pred_check
      _
    $region167: #{_lambda_.1} parent=1 // pred_check_branch
      %310 = sbr.rel (0) target = $region169
    $region168: #{_lambda_.1} parent=1 // pred_region
      %311 = dma.done [#allocation18], 256
    $region169: #{_lambda_.1} parent=1 // pred_fallthru
      _
    // Predicated region
    $region170: #{_lambda_.1} parent=1 // pred_check
      _
    $region171: #{_lambda_.1} parent=1 // pred_check_branch
      %313 = sbr.rel (0) target = $region173
    $region172: #{_lambda_.1} parent=1 // pred_region
      %314 = dma.done [#allocation18], 16
    $region173: #{_lambda_.1} parent=1 // pred_fallthru
      _
    // Predicated region
    $region174: #{_lambda_.1} parent=1 // pred_check
      _
    $region175: #{_lambda_.1} parent=1 // pred_check_branch
      %316 = sbr.rel (0) target = $region177
    $region176: #{_lambda_.1} parent=1 // pred_region
      %317 = dma.done [#allocation21], 256
    $region177: #{_lambda_.1} parent=1 // pred_fallthru
      _
    // Predicated region
    $region178: #{_lambda_.1} parent=1 // pred_check
      _
    $region179: #{_lambda_.1} parent=1 // pred_check_branch
      %319 = sbr.rel (0) target = $region181
    $region180: #{_lambda_.1} parent=1 // pred_region
      %320 = dma.done [#allocation21], 256
    $region181: #{_lambda_.1} parent=1 // pred_fallthru
      _
    // Predicated region
    $region182: #{_lambda_.1} parent=1 // pred_check
      _
    $region183: #{_lambda_.1} parent=1 // pred_check_branch
      %322 = sbr.rel (0) target = $region185
    $region184: #{_lambda_.1} parent=1 // pred_region
      %323 = dma.done [#allocation24], 16
    $region185: #{_lambda_.1} parent=1 // pred_fallthru
      _
    // Predicated region
    $region186: #{_lambda_.1} parent=1 // pred_check
      _
    $region187: #{_lambda_.1} parent=1 // pred_check_branch
      %325 = sbr.rel (0) target = $region189
    $region188: #{_lambda_.1} parent=1 // pred_region
      %326 = dma.done [#allocation24], 16
    $region189: #{_lambda_.1} parent=1 // pred_fallthru
      _
    // Predicated region
    $region190: #{_lambda_.1} parent=1 // pred_check
      _
    $region191: #{_lambda_.1} parent=1 // pred_check_branch
      %328 = sbr.rel (0) target = $region193
    $region192: #{_lambda_.1} parent=1 // pred_region
      %329 = dma.done [#allocation27], 16
    $region193: #{_lambda_.1} parent=1 // pred_fallthru
      _
    // Predicated region
    $region194: #{_lambda_.1} parent=1 // pred_check
      _
    $region195: #{_lambda_.1} parent=1 // pred_check_branch
      %331 = sbr.rel (0) target = $region197
    $region196: #{_lambda_.1} parent=1 // pred_region
      %332 = dma.done [#allocation27], 512
    $region197: #{_lambda_.1} parent=1 // pred_fallthru
      _
    // Predicated region
    $region198: #{_lambda_.1} parent=1 // pred_check
      _
    $region199: #{_lambda_.1} parent=1 // pred_check_branch
      %334 = sbr.rel (0) target = $region201
    $region200: #{_lambda_.1} parent=1 // pred_region
      %335 = dma.done [#allocation30], 16
    $region201: #{_lambda_.1} parent=1 // pred_fallthru
      _
    // Predicated region
    $region202: #{_lambda_.1} parent=1 // pred_check
      _
    $region203: #{_lambda_.1} parent=1 // pred_check_branch
      %337 = sbr.rel (0) target = $region205
    $region204: #{_lambda_.1} parent=1 // pred_region
      %338 = dma.done [#allocation30], 2048
    $region205: #{_lambda_.1} parent=1 // pred_fallthru
      _
    // Predicated region
    $region206: #{_lambda_.1} parent=1 // pred_check
      _
    $region207: #{_lambda_.1} parent=1 // pred_check_branch
      %340 = sbr.rel (0) target = $region209
    $region208: #{_lambda_.1} parent=1 // pred_region
      %341 = dma.done [#allocation33], 128
    $region209: #{_lambda_.1} parent=1 // pred_fallthru
      _
    // Predicated region
    $region210: #{_lambda_.1} parent=1 // pred_check
      _
    $region211: #{_lambda_.1} parent=1 // pred_check_branch
      %343 = sbr.rel (0) target = $region213
    $region212: #{_lambda_.1} parent=1 // pred_region
      %344 = dma.done [#allocation33], 1536
    $region213: #{_lambda_.1} parent=1 // pred_fallthru
      _
    %v345 = vld [vmem:[%s9] sm:$0xff]
    %v346 = vld [vmem:[%s11] sm:$0xff]
    %v347 = vld [vmem:[%s11 + $0x8] sm:$0xff]
    %v348 = vld [vmem:[%s19] sm:$0xff]
    %v349 = vld [vmem:[%s19 + $0x8] sm:$0xff]
    %v350 = vld [vmem:[%s21] sm:$0xff]
    %v351 = vld [vmem:[%s21 + $0x8] sm:$0xff]
    %v352 = vld [vmem:[%s15] sm:$0x1]
    %v353 = vld [vmem:[%s17] sm:$0x1]
    %v354 = vld [vmem:[%s13] sm:$0x1]
    %v356 = vlaneseq
    %v357 = vshrl.u32 %v356, 7
    %v358 = vsub.s32 0, %v357
    %v359 = vrot.slane %v354, %v358
    %v361 = vld [vmem:[#allocation14] sm:$0x1]
    %v363 = vlaneseq
    %v364 = vshrl.u32 %v363, 7
    %v365 = vsub.s32 0, %v364
    %v366 = vrot.slane %v361, %v365
    %v368 = vlaneseq
    %v369 = vand.u32 %v368, 127
    %vm370 = vcmp.lt.s32.totalorder %v369, 0
    %v371 = vsub.s32 0, %v369
    %v372 = vsel %vm370, %v371, %v369
    %v373 = vshrl.u32 %v372, 4
    %v374 = vand.u32 %v372, 15
    %v375 = vsub.s32 0, %v374
    %v376 = vsel %vm370, %v375, %v374
    %vm377 = vcmp.ne.s32.totalorder %v376, 0
    %vm378 = vcmp.lt.s32.totalorder %v376, 0
    %vm379 = vmand %vm378, %vm377
    %v380 = vadd.s32 %v376, 16
    %v381 = vsel %vm379, %v380, %v376
    %vm382 = vcmp.lt.s32.totalorder %v381, 8
    loop: start=0, step=1, limit=8
    $region214: #{_lambda_.1} parent=1 // loop_pre_header
      _
    $region215: #{_lambda_.1} parent=1 // loop_header
      %s384 = sphi 0, %s388
      %p385 = scmp.ge.s32.totalorder %s384, 8
    $region216: #{_lambda_.1} parent=1 // loop_header_branch
      %387 = sbr.rel (%p385) target = $region220
    $region217: #{_lambda_.1} parent=1 // loop_body
      %s389 = smul.u32 %s384, 2
      %s390 = scalar_lea.vmem %s1, %s389
      %v391 = vld [vmem:[%s390] sm:$0x3]
      %vm392 = vcmask 64512
      %v394 = vsel %vm392, %v391, 0
      %396 = vmatprep.subr.mxu0 0.0
      %397 = vmatpush1.msra.mxu0 %v345
      %398 = vmatprep.subr.mxu0 0.0
      %399 = vmatpush1.msra.mxu0 0.0
      %400 = vmatprep.subr.mxu0 0.0
      %401 = vmatpush1.msra.mxu0 0.0
      %402 = vmatprep.subr.mxu0 0.0
      %403 = vmatpush1.msra.mxu0 0.0
      %404 = vmatprep.subr.mxu0 0.0
      %405 = vmatpush1.msra.mxu0 0.0
      %406 = vmatprep.subr.mxu0 0.0
      %407 = vmatpush1.msra.mxu0 0.0
      %408 = vmatprep.subr.mxu0 0.0
      %409 = vmatpush1.msra.mxu0 0.0
      %410 = vmatprep.subr.mxu0 0.0
      %411 = vmatpush1.msra.mxu0 0.0
      %412 = vmatprep.subr.mxu0 0.0
      %413 = vmatpush1.msra.mxu0 0.0
      %414 = vmatprep.subr.mxu0 0.0
      %415 = vmatpush1.msra.mxu0 0.0
      %416 = vmatprep.subr.mxu0 0.0
      %417 = vmatpush1.msra.mxu0 0.0
      %418 = vmatprep.subr.mxu0 0.0
      %419 = vmatpush1.msra.mxu0 0.0
      %420 = vmatprep.subr.mxu0 0.0
      %421 = vmatpush1.msra.mxu0 0.0
      %422 = vmatprep.subr.mxu0 0.0
      %423 = vmatpush1.msra.mxu0 0.0
      %424 = vmatprep.subr.mxu0 0.0
      %425 = vmatpush1.msra.mxu0 0.0
      %426 = vmatprep.subr.mxu0 0.0
      %427 = vmatpush1.msra.mxu0 0.0
      %428 = vmatprep.subr.mxu0 0.0
      %429 = vmatpush1.msra.mxu0 0.0
      %430 = vmatprep.subr.mxu0 0.0
      %431 = vmatpush1.msra.mxu0 0.0
      %432 = vmatprep.subr.mxu0 0.0
      %433 = vmatpush1.msra.mxu0 0.0
      %434 = vmatprep.subr.mxu0 0.0
      %435 = vmatpush1.msra.mxu0 0.0
      %436 = vmatprep.subr.mxu0 0.0
      %437 = vmatpush1.msra.mxu0 0.0
      %438 = vmatprep.subr.mxu0 0.0
      %439 = vmatpush1.msra.mxu0 0.0
      %440 = vmatprep.subr.mxu0 0.0
      %441 = vmatpush1.msra.mxu0 0.0
      %442 = vmatprep.subr.mxu0 0.0
      %443 = vmatpush1.msra.mxu0 0.0
      %444 = vmatprep.subr.mxu0 0.0
      %445 = vmatpush1.msra.mxu0 0.0
      %446 = vmatprep.subr.mxu0 0.0
      %447 = vmatpush1.msra.mxu0 0.0
      %448 = vmatprep.subr.mxu0 0.0
      %449 = vmatpush1.msra.mxu0 0.0
      %450 = vmatprep.subr.mxu0 0.0
      %451 = vmatpush1.msra.mxu0 0.0
      %452 = vmatprep.subr.mxu0 0.0
      %453 = vmatpush1.msra.mxu0 0.0
      %454 = vmatprep.subr.mxu0 0.0
      %455 = vmatpush1.msra.mxu0 0.0
      %456 = vmatprep.subr.mxu0 0.0
      %457 = vmatpush1.msra.mxu0 0.0
      %458 = vmatprep.subr.mxu0 0.0
      %459 = vmatpush1.msra.mxu0 0.0
      %460 = vmatprep.mubr.f32.mxu0 0.0
      %461 = vmatmul.mubr.f32.gmra.mrb[0].mxu0 %v394
      %v462 = vpop.f32.mrb[0].mxu0
      %v463 = vadd.f32 %v359, %v462
      %v464 = vpop.f32.mrb[0].mxu0
      %465 = vdwg.mxu0
      %s466 = scalar_lea.vmem [#allocation2], %s389
      %vm467 = vcmask 517120
      %468 = vst.msk [vmem:[%s466] sm:$0x3] %vm467, %v463
    $region218: #{_lambda_.1} parent=1 // loop_footer
      %s388 = sadd.s32 1, %s384
    $region219: #{_lambda_.1} parent=1 // loop_footer_branch
      %383 = sbr.rel target = $region215
    $region220: #{_lambda_.1} parent=1 // loop_exit
      _
    loop: start=0, step=1, limit=4
    $region221: #{_lambda_.1} parent=1 // loop_pre_header
      _
    $region222: #{_lambda_.1} parent=1 // loop_header
      %s470 = sphi 0, %s474
      %p471 = scmp.ge.s32.totalorder %s470, 4
    $region223: #{_lambda_.1} parent=1 // loop_header_branch
      %473 = sbr.rel (%p471) target = $region227
    $region224: #{_lambda_.1} parent=1 // loop_body
      %s475 = ssub.s32 7, %s470
      %s476 = smul.u32 %s470, 2
      %s477 = scalar_lea.vmem [#allocation2], %s476
      %v478 = vld [vmem:[%s477] sm:$0x3]
      %s479 = smul.u32 %s475, 2
      %s480 = scalar_lea.vmem [#allocation2], %s479
      %v481 = vld [vmem:[%s480] sm:$0x3]
      %v482 = vsel %vm382, 1, 0
      %vm483 = vcmp.eq.s32.totalorder %v482, 1
      %v484 = vsel %vm483, %v478, %v481
      %vm485 = vcmask 517120
      %486 = vst.msk [vmem:[%s477] sm:$0x3] %vm485, %v484
      %v487 = vsel %vm483, %v481, %v478
      %488 = vst.msk [vmem:[%s480] sm:$0x3] %vm485, %v487
    $region225: #{_lambda_.1} parent=1 // loop_footer
      %s474 = sadd.s32 1, %s470
    $region226: #{_lambda_.1} parent=1 // loop_footer_branch
      %469 = sbr.rel target = $region222
    $region227: #{_lambda_.1} parent=1 // loop_exit
      _
    %vm489 = vcmask 123904
    %490 = vst.msk [vmem:[#allocation5] sm:$0x3] %vm489, 0.0
    %491 = vst.msk [vmem:[#allocation6] sm:$0x3] %vm489, 0.0
    loop: start=0, step=1, limit=8
    $region228: #{_lambda_.1} parent=1 // loop_pre_header
      _
    $region229: #{_lambda_.1} parent=1 // loop_header
      %s493 = sphi 0, %s497
      %p494 = scmp.ge.s32.totalorder %s493, 8
    $region230: #{_lambda_.1} parent=1 // loop_header_branch
      %496 = sbr.rel (%p494) target = $region234
    $region231: #{_lambda_.1} parent=1 // loop_body
      %s498 = smul.u32 %s493, 2
      %s499 = scalar_lea.vmem [#allocation2], %s498
      %v500 = vld [vmem:[%s499] sm:$0x3]
      %v501 = vld [vmem:[#allocation5] sm:$0x3]
      %vm502 = vcmask 130048
      %v504 = vsel %vm502, %v501, 0
      %506 = vmatprep.subr.mxu0 0.0
      %507 = vmatpush1.msra.mxu0 %v346
      %508 = vmatprep.subr.mxu0 0.0
      %509 = vmatpush1.msra.mxu0 %v347
      %510 = vmatprep.subr.mxu0 0.0
      %511 = vmatpush1.msra.mxu0 0.0
      %512 = vmatprep.subr.mxu0 0.0
      %513 = vmatpush1.msra.mxu0 0.0
      %514 = vmatprep.subr.mxu0 0.0
      %515 = vmatpush1.msra.mxu0 0.0
      %516 = vmatprep.subr.mxu0 0.0
      %517 = vmatpush1.msra.mxu0 0.0
      %518 = vmatprep.subr.mxu0 0.0
      %519 = vmatpush1.msra.mxu0 0.0
      %520 = vmatprep.subr.mxu0 0.0
      %521 = vmatpush1.msra.mxu0 0.0
      %522 = vmatprep.subr.mxu0 0.0
      %523 = vmatpush1.msra.mxu0 0.0
      %524 = vmatprep.subr.mxu0 0.0
      %525 = vmatpush1.msra.mxu0 0.0
      %526 = vmatprep.subr.mxu0 0.0
      %527 = vmatpush1.msra.mxu0 0.0
      %528 = vmatprep.subr.mxu0 0.0
      %529 = vmatpush1.msra.mxu0 0.0
      %530 = vmatprep.subr.mxu0 0.0
      %531 = vmatpush1.msra.mxu0 0.0
      %532 = vmatprep.subr.mxu0 0.0
      %533 = vmatpush1.msra.mxu0 0.0
      %534 = vmatprep.subr.mxu0 0.0
      %535 = vmatpush1.msra.mxu0 0.0
      %536 = vmatprep.subr.mxu0 0.0
      %537 = vmatpush1.msra.mxu0 0.0
      %538 = vmatprep.subr.mxu0 0.0
      %539 = vmatpush1.msra.mxu0 0.0
      %540 = vmatprep.subr.mxu0 0.0
      %541 = vmatpush1.msra.mxu0 0.0
      %542 = vmatprep.subr.mxu0 0.0
      %543 = vmatpush1.msra.mxu0 0.0
      %544 = vmatprep.subr.mxu0 0.0
      %545 = vmatpush1.msra.mxu0 0.0
      %546 = vmatprep.subr.mxu0 0.0
      %547 = vmatpush1.msra.mxu0 0.0
      %548 = vmatprep.subr.mxu0 0.0
      %549 = vmatpush1.msra.mxu0 0.0
      %550 = vmatprep.subr.mxu0 0.0
      %551 = vmatpush1.msra.mxu0 0.0
      %552 = vmatprep.subr.mxu0 0.0
      %553 = vmatpush1.msra.mxu0 0.0
      %554 = vmatprep.subr.mxu0 0.0
      %555 = vmatpush1.msra.mxu0 0.0
      %556 = vmatprep.subr.mxu0 0.0
      %557 = vmatpush1.msra.mxu0 0.0
      %558 = vmatprep.subr.mxu0 0.0
      %559 = vmatpush1.msra.mxu0 0.0
      %560 = vmatprep.subr.mxu0 0.0
      %561 = vmatpush1.msra.mxu0 0.0
      %562 = vmatprep.subr.mxu0 0.0
      %563 = vmatpush1.msra.mxu0 0.0
      %564 = vmatprep.subr.mxu0 0.0
      %565 = vmatpush1.msra.mxu0 0.0
      %566 = vmatprep.subr.mxu0 0.0
      %567 = vmatpush1.msra.mxu0 0.0
      %568 = vmatprep.subr.mxu0 0.0
      %569 = vmatpush1.msra.mxu0 0.0
      %570 = vmatprep.mubr.f32.mxu0 0.0
      %571 = vmatmul.mubr.f32.gmra.mrb[0].mxu0 %v504
      %v572 = vpop.f32.mrb[0].mxu0
      %v573 = vadd.f32 0.0, %v572
      %v574 = vpop.f32.mrb[0].mxu0
      %575 = vdwg.mxu0
      %v576 = vadd.f32 %v500, %v573
      %v577 = vxor.u32 %v576, 2147483648
      %v578 = vmul.f32 %v577, 1.442695
      %v579 = vpow.pop %v578
      %v580 = vadd.f32 %v579, 1.0
      %v581 = vrcp.pop %v580
      %v582 = vmul.f32 1.0, %v581
      %v583 = vtanh.pop %v576
      %v584 = vld [vmem:[#allocation6] sm:$0x3]
      %586 = vrot.lane.b32.xlu0 %v584, 16
      %v587 = vpop.permute.xlu0 %586
      %v589 = vmul.f32 %v582, %v587
      %591 = vrot.lane.b32.xlu0 %v583, 96
      %v592 = vpop.permute.xlu0 %591
      %v594 = vmul.f32 %v582, %v592
      %596 = vrot.lane.b32.xlu0 %v594, 16
      %v597 = vpop.permute.xlu0 %596
      %v599 = vadd.f32 %v589, %v597
      %v600 = vtanh.pop %v599
      %602 = vrot.lane.b32.xlu0 %v600, 32
      %v603 = vpop.permute.xlu0 %602
      %v605 = vmul.f32 %v582, %v603
      %607 = vrot.lane.b32.xlu0 %v599, 112
      %v608 = vpop.permute.xlu0 %607
      %610 = vst.msk [vmem:[#allocation6] sm:$0x3] %vm489, %v608
      %612 = vrot.lane.b32.xlu0 %v605, 80
      %v613 = vpop.permute.xlu0 %612
      %615 = vst.msk [vmem:[#allocation5] sm:$0x3] %vm489, %v613
      %s616 = scalar_lea.vmem [#allocation3], %s498
      %vm617 = vcmask 58368
      %618 = vst.msk [vmem:[%s616] sm:$0x3] %vm617, %v613
      %s619 = ssub.s32 7, %s493
      %620 = vrot.lane.b32.xlu0 %v605, 72
      %v621 = vpop.permute.xlu0 %620
      %s623 = smul.u32 %s619, 2
      %s624 = scalar_lea.vmem [#allocation4], %s623
      %625 = vst.msk [vmem:[%s624] sm:$0x3] %vm617, %v621
    $region232: #{_lambda_.1} parent=1 // loop_footer
      %s497 = sadd.s32 1, %s493
    $region233: #{_lambda_.1} parent=1 // loop_footer_branch
      %492 = sbr.rel target = $region229
    $region234: #{_lambda_.1} parent=1 // loop_exit
      _
    %v626 = vld [vmem:[#allocation5] sm:$0x3]
    loop: start=0, step=1, limit=8
    $region235: #{_lambda_.1} parent=1 // loop_pre_header
      _
    $region236: #{_lambda_.1} parent=1 // loop_header
      %s628 = sphi 0, %s632
      %p629 = scmp.ge.s32.totalorder %s628, 8
    $region237: #{_lambda_.1} parent=1 // loop_header_branch
      %631 = sbr.rel (%p629) target = $region241
    $region238: #{_lambda_.1} parent=1 // loop_body
      %s633 = smul.u32 %s628, 2
      %s634 = scalar_lea.vmem [#allocation3], %s633
      %v635 = vld [vmem:[%s634] sm:$0x3]
      %s636 = scalar_lea.vmem [#allocation4], %s633
      %v637 = vld [vmem:[%s636] sm:$0x3]
      %639 = vrot.lane.b32.xlu0 %v637, 8
      %v640 = vpop.permute.xlu0 %639
      %vm642 = vcmask 64512
      %v643 = vsel %vm642, %v635, %v640
      %v644 = vsel %vm489, %v643, 0.0
      %645 = vadd.xlane.f32.xlu0 %v644
      %v646 = vpop.xlane.xlu0 %645
      %v647 = vrcp.pop 16.0
      %v648 = vmul.f32 %v646, %v647
      %v649 = vsub.f32 %v643, %v648
      %v650 = vmul.f32 %v649, %v649
      %v651 = vsel %vm489, %v650, 0.0
      %652 = vadd.xlane.f32.xlu0 %v651
      %v653 = vpop.xlane.xlu0 %652
      %v654 = vmul.f32 %v653, %v647
      %v655 = vadd.f32 %v654, 1e-05
      %v656 = vrsqrt.pop %v655
      %v657 = vmul.f32 %v649, %v656
      %v659 = vlaneseq
      %v660 = vshrl.u32 %v659, 7
      %v661 = vsub.s32 0, %v660
      %v662 = vrot.slane %v352, %v661
      %v664 = vmul.f32 %v657, %v662
      %v666 = vlaneseq
      %v667 = vshrl.u32 %v666, 7
      %v668 = vsub.s32 0, %v667
      %v669 = vrot.slane %v353, %v668
      %v671 = vadd.f32 %v664, %v669
      %vm672 = vcmask 130048
      %v674 = vsel %vm672, %v671, 0
      %676 = vmatprep.subr.mxu0 0.0
      %677 = vmatpush1.msra.mxu0 %v348
      %678 = vmatprep.subr.mxu0 0.0
      %679 = vmatpush1.msra.mxu0 %v349
      %680 = vmatprep.subr.mxu0 0.0
      %681 = vmatpush1.msra.mxu0 0.0
      %682 = vmatprep.subr.mxu0 0.0
      %683 = vmatpush1.msra.mxu0 0.0
      %684 = vmatprep.subr.mxu0 0.0
      %685 = vmatpush1.msra.mxu0 0.0
      %686 = vmatprep.subr.mxu0 0.0
      %687 = vmatpush1.msra.mxu0 0.0
      %688 = vmatprep.subr.mxu0 0.0
      %689 = vmatpush1.msra.mxu0 0.0
      %690 = vmatprep.subr.mxu0 0.0
      %691 = vmatpush1.msra.mxu0 0.0
      %692 = vmatprep.subr.mxu0 0.0
      %693 = vmatpush1.msra.mxu0 0.0
      %694 = vmatprep.subr.mxu0 0.0
      %695 = vmatpush1.msra.mxu0 0.0
      %696 = vmatprep.subr.mxu0 0.0
      %697 = vmatpush1.msra.mxu0 0.0
      %698 = vmatprep.subr.mxu0 0.0
      %699 = vmatpush1.msra.mxu0 0.0
      %700 = vmatprep.subr.mxu0 0.0
      %701 = vmatpush1.msra.mxu0 0.0
      %702 = vmatprep.subr.mxu0 0.0
      %703 = vmatpush1.msra.mxu0 0.0
      %704 = vmatprep.subr.mxu0 0.0
      %705 = vmatpush1.msra.mxu0 0.0
      %706 = vmatprep.subr.mxu0 0.0
      %707 = vmatpush1.msra.mxu0 0.0
      %708 = vmatprep.subr.mxu0 0.0
      %709 = vmatpush1.msra.mxu0 0.0
      %710 = vmatprep.subr.mxu0 0.0
      %711 = vmatpush1.msra.mxu0 0.0
      %712 = vmatprep.subr.mxu0 0.0
      %713 = vmatpush1.msra.mxu0 0.0
      %714 = vmatprep.subr.mxu0 0.0
      %715 = vmatpush1.msra.mxu0 0.0
      %716 = vmatprep.subr.mxu0 0.0
      %717 = vmatpush1.msra.mxu0 0.0
      %718 = vmatprep.subr.mxu0 0.0
      %719 = vmatpush1.msra.mxu0 0.0
      %720 = vmatprep.subr.mxu0 0.0
      %721 = vmatpush1.msra.mxu0 0.0
      %722 = vmatprep.subr.mxu0 0.0
      %723 = vmatpush1.msra.mxu0 0.0
      %724 = vmatprep.subr.mxu0 0.0
      %725 = vmatpush1.msra.mxu0 0.0
      %726 = vmatprep.subr.mxu0 0.0
      %727 = vmatpush1.msra.mxu0 0.0
      %728 = vmatprep.subr.mxu0 0.0
      %729 = vmatpush1.msra.mxu0 0.0
      %730 = vmatprep.subr.mxu0 0.0
      %731 = vmatpush1.msra.mxu0 0.0
      %732 = vmatprep.subr.mxu0 0.0
      %733 = vmatpush1.msra.mxu0 0.0
      %734 = vmatprep.subr.mxu0 0.0
      %735 = vmatpush1.msra.mxu0 0.0
      %736 = vmatprep.subr.mxu0 0.0
      %737 = vmatpush1.msra.mxu0 0.0
      %738 = vmatprep.subr.mxu0 0.0
      %739 = vmatpush1.msra.mxu0 0.0
      %740 = vmatprep.mubr.f32.mxu0 0.0
      %741 = vmatmul.mubr.f32.gmra.mrb[0].mxu0 %v674
      %v742 = vpop.f32.mrb[0].mxu0
      %v743 = vadd.f32 %v366, %v742
      %v744 = vpop.f32.mrb[0].mxu0
      %745 = vdwg.mxu0
      %s746 = scalar_lea.vmem [#allocation2], %s633
      %vm747 = vcmask 517120
      %748 = vst.msk [vmem:[%s746] sm:$0x3] %vm747, %v743
    $region239: #{_lambda_.1} parent=1 // loop_footer
      %s632 = sadd.s32 1, %s628
    $region240: #{_lambda_.1} parent=1 // loop_footer_branch
      %627 = sbr.rel target = $region236
    $region241: #{_lambda_.1} parent=1 // loop_exit
      _
    loop: start=0, step=1, limit=4
    $region242: #{_lambda_.1} parent=1 // loop_pre_header
      _
    $region243: #{_lambda_.1} parent=1 // loop_header
      %s750 = sphi 0, %s754
      %p751 = scmp.ge.s32.totalorder %s750, 4
    $region244: #{_lambda_.1} parent=1 // loop_header_branch
      %753 = sbr.rel (%p751) target = $region248
    $region245: #{_lambda_.1} parent=1 // loop_body
      %s755 = ssub.s32 7, %s750
      %s756 = smul.u32 %s750, 2
      %s757 = scalar_lea.vmem [#allocation2], %s756
      %v758 = vld [vmem:[%s757] sm:$0x3]
      %s759 = smul.u32 %s755, 2
      %s760 = scalar_lea.vmem [#allocation2], %s759
      %v761 = vld [vmem:[%s760] sm:$0x3]
      %v762 = vsel %vm382, 1, 0
      %vm763 = vcmp.eq.s32.totalorder %v762, 1
      %v764 = vsel %vm763, %v758, %v761
      %vm765 = vcmask 517120
      %766 = vst.msk [vmem:[%s757] sm:$0x3] %vm765, %v764
      %v767 = vsel %vm763, %v761, %v758
      %768 = vst.msk [vmem:[%s760] sm:$0x3] %vm765, %v767
    $region246: #{_lambda_.1} parent=1 // loop_footer
      %s754 = sadd.s32 1, %s750
    $region247: #{_lambda_.1} parent=1 // loop_footer_branch
      %749 = sbr.rel target = $region243
    $region248: #{_lambda_.1} parent=1 // loop_exit
      _
    %769 = vst.msk [vmem:[#allocation5] sm:$0x3] %vm489, 0.0
    %770 = vst.msk [vmem:[#allocation6] sm:$0x3] %vm489, 0.0
    loop: start=0, step=1, limit=8
    $region249: #{_lambda_.1} parent=1 // loop_pre_header
      _
    $region250: #{_lambda_.1} parent=1 // loop_header
      %s772 = sphi 0, %s776
      %p773 = scmp.ge.s32.totalorder %s772, 8
    $region251: #{_lambda_.1} parent=1 // loop_header_branch
      %775 = sbr.rel (%p773) target = $region255
    $region252: #{_lambda_.1} parent=1 // loop_body
      %s777 = smul.u32 %s772, 2
      %s778 = scalar_lea.vmem [#allocation2], %s777
      %v779 = vld [vmem:[%s778] sm:$0x3]
      %v780 = vld [vmem:[#allocation5] sm:$0x3]
      %vm781 = vcmask 130048
      %v783 = vsel %vm781, %v780, 0
      %785 = vmatprep.subr.mxu0 0.0
      %786 = vmatpush1.msra.mxu0 %v350
      %787 = vmatprep.subr.mxu0 0.0
      %788 = vmatpush1.msra.mxu0 %v351
      %789 = vmatprep.subr.mxu0 0.0
      %790 = vmatpush1.msra.mxu0 0.0
      %791 = vmatprep.subr.mxu0 0.0
      %792 = vmatpush1.msra.mxu0 0.0
      %793 = vmatprep.subr.mxu0 0.0
      %794 = vmatpush1.msra.mxu0 0.0
      %795 = vmatprep.subr.mxu0 0.0
      %796 = vmatpush1.msra.mxu0 0.0
      %797 = vmatprep.subr.mxu0 0.0
      %798 = vmatpush1.msra.mxu0 0.0
      %799 = vmatprep.subr.mxu0 0.0
      %800 = vmatpush1.msra.mxu0 0.0
      %801 = vmatprep.subr.mxu0 0.0
      %802 = vmatpush1.msra.mxu0 0.0
      %803 = vmatprep.subr.mxu0 0.0
      %804 = vmatpush1.msra.mxu0 0.0
      %805 = vmatprep.subr.mxu0 0.0
      %806 = vmatpush1.msra.mxu0 0.0
      %807 = vmatprep.subr.mxu0 0.0
      %808 = vmatpush1.msra.mxu0 0.0
      %809 = vmatprep.subr.mxu0 0.0
      %810 = vmatpush1.msra.mxu0 0.0
      %811 = vmatprep.subr.mxu0 0.0
      %812 = vmatpush1.msra.mxu0 0.0
      %813 = vmatprep.subr.mxu0 0.0
      %814 = vmatpush1.msra.mxu0 0.0
      %815 = vmatprep.subr.mxu0 0.0
      %816 = vmatpush1.msra.mxu0 0.0
      %817 = vmatprep.subr.mxu0 0.0
      %818 = vmatpush1.msra.mxu0 0.0
      %819 = vmatprep.subr.mxu0 0.0
      %820 = vmatpush1.msra.mxu0 0.0
      %821 = vmatprep.subr.mxu0 0.0
      %822 = vmatpush1.msra.mxu0 0.0
      %823 = vmatprep.subr.mxu0 0.0
      %824 = vmatpush1.msra.mxu0 0.0
      %825 = vmatprep.subr.mxu0 0.0
      %826 = vmatpush1.msra.mxu0 0.0
      %827 = vmatprep.subr.mxu0 0.0
      %828 = vmatpush1.msra.mxu0 0.0
      %829 = vmatprep.subr.mxu0 0.0
      %830 = vmatpush1.msra.mxu0 0.0
      %831 = vmatprep.subr.mxu0 0.0
      %832 = vmatpush1.msra.mxu0 0.0
      %833 = vmatprep.subr.mxu0 0.0
      %834 = vmatpush1.msra.mxu0 0.0
      %835 = vmatprep.subr.mxu0 0.0
      %836 = vmatpush1.msra.mxu0 0.0
      %837 = vmatprep.subr.mxu0 0.0
      %838 = vmatpush1.msra.mxu0 0.0
      %839 = vmatprep.subr.mxu0 0.0
      %840 = vmatpush1.msra.mxu0 0.0
      %841 = vmatprep.subr.mxu0 0.0
      %842 = vmatpush1.msra.mxu0 0.0
      %843 = vmatprep.subr.mxu0 0.0
      %844 = vmatpush1.msra.mxu0 0.0
      %845 = vmatprep.subr.mxu0 0.0
      %846 = vmatpush1.msra.mxu0 0.0
      %847 = vmatprep.subr.mxu0 0.0
      %848 = vmatpush1.msra.mxu0 0.0
      %849 = vmatprep.mubr.f32.mxu0 0.0
      %850 = vmatmul.mubr.f32.gmra.mrb[0].mxu0 %v783
      %v851 = vpop.f32.mrb[0].mxu0
      %v852 = vadd.f32 0.0, %v851
      %v853 = vpop.f32.mrb[0].mxu0
      %854 = vdwg.mxu0
      %v855 = vadd.f32 %v779, %v852
      %v856 = vxor.u32 %v855, 2147483648
      %v857 = vmul.f32 %v856, 1.442695
      %v858 = vpow.pop %v857
      %v859 = vadd.f32 %v858, 1.0
      %v860 = vrcp.pop %v859
      %v861 = vmul.f32 1.0, %v860
      %v862 = vtanh.pop %v855
      %v863 = vld [vmem:[#allocation6] sm:$0x3]
      %865 = vrot.lane.b32.xlu0 %v863, 16
      %v866 = vpop.permute.xlu0 %865
      %v868 = vmul.f32 %v861, %v866
      %870 = vrot.lane.b32.xlu0 %v862, 96
      %v871 = vpop.permute.xlu0 %870
      %v873 = vmul.f32 %v861, %v871
      %875 = vrot.lane.b32.xlu0 %v873, 16
      %v876 = vpop.permute.xlu0 %875
      %v878 = vadd.f32 %v868, %v876
      %v879 = vtanh.pop %v878
      %881 = vrot.lane.b32.xlu0 %v879, 32
      %v882 = vpop.permute.xlu0 %881
      %v884 = vmul.f32 %v861, %v882
      %886 = vrot.lane.b32.xlu0 %v878, 112
      %v887 = vpop.permute.xlu0 %886
      %889 = vst.msk [vmem:[#allocation6] sm:$0x3] %vm489, %v887
      %891 = vrot.lane.b32.xlu0 %v884, 80
      %v892 = vpop.permute.xlu0 %891
      %894 = vst.msk [vmem:[#allocation5] sm:$0x3] %vm489, %v892
    $region253: #{_lambda_.1} parent=1 // loop_footer
      %s776 = sadd.s32 1, %s772
    $region254: #{_lambda_.1} parent=1 // loop_footer_branch
      %771 = sbr.rel target = $region250
    $region255: #{_lambda_.1} parent=1 // loop_exit
      _
    %v895 = vld [vmem:[#allocation5] sm:$0x3]
    %897 = vrot.lane.b32.xlu0 %v895, 8
    %v898 = vpop.permute.xlu0 %897
    %901 = vrot.lane.b32.xlu0 %v626, 8
    %v902 = vpop.permute.xlu0 %901
    %904 = vrot.lane.b32.xlu0 %v895, 16
    %v905 = vpop.permute.xlu0 %904
    %vm907 = vcmask 64512
    %v908 = vsel %vm907, %v626, %v898
    %vm909 = vcmask 130048
    %v910 = vsel %vm909, %v908, %v902
    %vm911 = vcmask 195584
    %v912 = vsel %vm911, %v910, %v905
    %v913 = vld [vmem:[#allocation16] sm:$0xff]
    %v914 = vld [vmem:[#allocation17] sm:$0xff]
    %v915 = vld [vmem:[#allocation17 + $0x8] sm:$0xff]
    %v916 = vld [vmem:[#allocation20] sm:$0xff]
    %v917 = vld [vmem:[#allocation20 + $0x8] sm:$0xff]
    %v918 = vld [vmem:[#allocation22] sm:$0xff]
    %v919 = vld [vmem:[#allocation22 + $0x8] sm:$0xff]
    %v920 = vld [vmem:[%s31] sm:$0x1]
    %v921 = vld [vmem:[%s33] sm:$0x1]
    %v922 = vld [vmem:[#allocation19] sm:$0x1]
    %v924 = vlaneseq
    %v925 = vshrl.u32 %v924, 7
    %v926 = vsub.s32 0, %v925
    %v927 = vrot.slane %v922, %v926
    %v929 = vld [vmem:[#allocation23] sm:$0x1]
    %v931 = vlaneseq
    %v932 = vshrl.u32 %v931, 7
    %v933 = vsub.s32 0, %v932
    %v934 = vrot.slane %v929, %v933
    loop: start=0, step=1, limit=8
    $region256: #{_lambda_.1} parent=1 // loop_pre_header
      _
    $region257: #{_lambda_.1} parent=1 // loop_header
      %s937 = sphi 0, %s941
      %p938 = scmp.ge.s32.totalorder %s937, 8
    $region258: #{_lambda_.1} parent=1 // loop_header_branch
      %940 = sbr.rel (%p938) target = $region262
    $region259: #{_lambda_.1} parent=1 // loop_body
      %s942 = smul.u32 %s937, 2
      %s943 = scalar_lea.vmem [#allocation12], %s942
      %v944 = vld [vmem:[%s943] sm:$0x3]
      %v946 = vsel %vm907, %v944, 0
      %948 = vmatprep.subr.mxu0 0.0
      %949 = vmatpush1.msra.mxu0 %v913
      %950 = vmatprep.subr.mxu0 0.0
      %951 = vmatpush1.msra.mxu0 0.0
      %952 = vmatprep.subr.mxu0 0.0
      %953 = vmatpush1.msra.mxu0 0.0
      %954 = vmatprep.subr.mxu0 0.0
      %955 = vmatpush1.msra.mxu0 0.0
      %956 = vmatprep.subr.mxu0 0.0
      %957 = vmatpush1.msra.mxu0 0.0
      %958 = vmatprep.subr.mxu0 0.0
      %959 = vmatpush1.msra.mxu0 0.0
      %960 = vmatprep.subr.mxu0 0.0
      %961 = vmatpush1.msra.mxu0 0.0
      %962 = vmatprep.subr.mxu0 0.0
      %963 = vmatpush1.msra.mxu0 0.0
      %964 = vmatprep.subr.mxu0 0.0
      %965 = vmatpush1.msra.mxu0 0.0
      %966 = vmatprep.subr.mxu0 0.0
      %967 = vmatpush1.msra.mxu0 0.0
      %968 = vmatprep.subr.mxu0 0.0
      %969 = vmatpush1.msra.mxu0 0.0
      %970 = vmatprep.subr.mxu0 0.0
      %971 = vmatpush1.msra.mxu0 0.0
      %972 = vmatprep.subr.mxu0 0.0
      %973 = vmatpush1.msra.mxu0 0.0
      %974 = vmatprep.subr.mxu0 0.0
      %975 = vmatpush1.msra.mxu0 0.0
      %976 = vmatprep.subr.mxu0 0.0
      %977 = vmatpush1.msra.mxu0 0.0
      %978 = vmatprep.subr.mxu0 0.0
      %979 = vmatpush1.msra.mxu0 0.0
      %980 = vmatprep.subr.mxu0 0.0
      %981 = vmatpush1.msra.mxu0 0.0
      %982 = vmatprep.subr.mxu0 0.0
      %983 = vmatpush1.msra.mxu0 0.0
      %984 = vmatprep.subr.mxu0 0.0
      %985 = vmatpush1.msra.mxu0 0.0
      %986 = vmatprep.subr.mxu0 0.0
      %987 = vmatpush1.msra.mxu0 0.0
      %988 = vmatprep.subr.mxu0 0.0
      %989 = vmatpush1.msra.mxu0 0.0
      %990 = vmatprep.subr.mxu0 0.0
      %991 = vmatpush1.msra.mxu0 0.0
      %992 = vmatprep.subr.mxu0 0.0
      %993 = vmatpush1.msra.mxu0 0.0
      %994 = vmatprep.subr.mxu0 0.0
      %995 = vmatpush1.msra.mxu0 0.0
      %996 = vmatprep.subr.mxu0 0.0
      %997 = vmatpush1.msra.mxu0 0.0
      %998 = vmatprep.subr.mxu0 0.0
      %999 = vmatpush1.msra.mxu0 0.0
      %1000 = vmatprep.subr.mxu0 0.0
      %1001 = vmatpush1.msra.mxu0 0.0
      %1002 = vmatprep.subr.mxu0 0.0
      %1003 = vmatpush1.msra.mxu0 0.0
      %1004 = vmatprep.subr.mxu0 0.0
      %1005 = vmatpush1.msra.mxu0 0.0
      %1006 = vmatprep.subr.mxu0 0.0
      %1007 = vmatpush1.msra.mxu0 0.0
      %1008 = vmatprep.subr.mxu0 0.0
      %1009 = vmatpush1.msra.mxu0 0.0
      %1010 = vmatprep.subr.mxu0 0.0
      %1011 = vmatpush1.msra.mxu0 0.0
      %1012 = vmatprep.mubr.f32.mxu0 0.0
      %1013 = vmatmul.mubr.f32.gmra.mrb[0].mxu0 %v946
      %v1014 = vpop.f32.mrb[0].mxu0
      %v1015 = vadd.f32 %v927, %v1014
      %v1016 = vpop.f32.mrb[0].mxu0
      %1017 = vdwg.mxu0
      %s1018 = scalar_lea.vmem [#allocation7], %s942
      %vm1019 = vcmask 517120
      %1020 = vst.msk [vmem:[%s1018] sm:$0x3] %vm1019, %v1015
    $region260: #{_lambda_.1} parent=1 // loop_footer
      %s941 = sadd.s32 1, %s937
    $region261: #{_lambda_.1} parent=1 // loop_footer_branch
      %936 = sbr.rel target = $region257
    $region262: #{_lambda_.1} parent=1 // loop_exit
      _
    loop: start=0, step=1, limit=4
    $region263: #{_lambda_.1} parent=1 // loop_pre_header
      _
    $region264: #{_lambda_.1} parent=1 // loop_header
      %s1022 = sphi 0, %s1026
      %p1023 = scmp.ge.s32.totalorder %s1022, 4
    $region265: #{_lambda_.1} parent=1 // loop_header_branch
      %1025 = sbr.rel (%p1023) target = $region269
    $region266: #{_lambda_.1} parent=1 // loop_body
      %s1027 = ssub.s32 7, %s1022
      %s1028 = smul.u32 %s1022, 2
      %s1029 = scalar_lea.vmem [#allocation7], %s1028
      %v1030 = vld [vmem:[%s1029] sm:$0x3]
      %s1031 = smul.u32 %s1027, 2
      %s1032 = scalar_lea.vmem [#allocation7], %s1031
      %v1033 = vld [vmem:[%s1032] sm:$0x3]
      %v1034 = vsel %vm382, 1, 0
      %vm1035 = vcmp.eq.s32.totalorder %v1034, 1
      %v1036 = vsel %vm1035, %v1030, %v1033
      %vm1037 = vcmask 517120
      %1038 = vst.msk [vmem:[%s1029] sm:$0x3] %vm1037, %v1036
      %v1039 = vsel %vm1035, %v1033, %v1030
      %1040 = vst.msk [vmem:[%s1032] sm:$0x3] %vm1037, %v1039
    $region267: #{_lambda_.1} parent=1 // loop_footer
      %s1026 = sadd.s32 1, %s1022
    $region268: #{_lambda_.1} parent=1 // loop_footer_branch
      %1021 = sbr.rel target = $region264
    $region269: #{_lambda_.1} parent=1 // loop_exit
      _
    %1041 = vst.msk [vmem:[#allocation10] sm:$0x3] %vm489, 0.0
    %1042 = vst.msk [vmem:[#allocation11] sm:$0x3] %vm489, 0.0
    loop: start=0, step=1, limit=8
    $region270: #{_lambda_.1} parent=1 // loop_pre_header
      _
    $region271: #{_lambda_.1} parent=1 // loop_header
      %s1044 = sphi 0, %s1048
      %p1045 = scmp.ge.s32.totalorder %s1044, 8
    $region272: #{_lambda_.1} parent=1 // loop_header_branch
      %1047 = sbr.rel (%p1045) target = $region276
    $region273: #{_lambda_.1} parent=1 // loop_body
      %s1049 = smul.u32 %s1044, 2
      %s1050 = scalar_lea.vmem [#allocation7], %s1049
      %v1051 = vld [vmem:[%s1050] sm:$0x3]
      %v1052 = vld [vmem:[#allocation10] sm:$0x3]
      %v1054 = vsel %vm909, %v1052, 0
      %1056 = vmatprep.subr.mxu0 0.0
      %1057 = vmatpush1.msra.mxu0 %v914
      %1058 = vmatprep.subr.mxu0 0.0
      %1059 = vmatpush1.msra.mxu0 %v915
      %1060 = vmatprep.subr.mxu0 0.0
      %1061 = vmatpush1.msra.mxu0 0.0
      %1062 = vmatprep.subr.mxu0 0.0
      %1063 = vmatpush1.msra.mxu0 0.0
      %1064 = vmatprep.subr.mxu0 0.0
      %1065 = vmatpush1.msra.mxu0 0.0
      %1066 = vmatprep.subr.mxu0 0.0
      %1067 = vmatpush1.msra.mxu0 0.0
      %1068 = vmatprep.subr.mxu0 0.0
      %1069 = vmatpush1.msra.mxu0 0.0
      %1070 = vmatprep.subr.mxu0 0.0
      %1071 = vmatpush1.msra.mxu0 0.0
      %1072 = vmatprep.subr.mxu0 0.0
      %1073 = vmatpush1.msra.mxu0 0.0
      %1074 = vmatprep.subr.mxu0 0.0
      %1075 = vmatpush1.msra.mxu0 0.0
      %1076 = vmatprep.subr.mxu0 0.0
      %1077 = vmatpush1.msra.mxu0 0.0
      %1078 = vmatprep.subr.mxu0 0.0
      %1079 = vmatpush1.msra.mxu0 0.0
      %1080 = vmatprep.subr.mxu0 0.0
      %1081 = vmatpush1.msra.mxu0 0.0
      %1082 = vmatprep.subr.mxu0 0.0
      %1083 = vmatpush1.msra.mxu0 0.0
      %1084 = vmatprep.subr.mxu0 0.0
      %1085 = vmatpush1.msra.mxu0 0.0
      %1086 = vmatprep.subr.mxu0 0.0
      %1087 = vmatpush1.msra.mxu0 0.0
      %1088 = vmatprep.subr.mxu0 0.0
      %1089 = vmatpush1.msra.mxu0 0.0
      %1090 = vmatprep.subr.mxu0 0.0
      %1091 = vmatpush1.msra.mxu0 0.0
      %1092 = vmatprep.subr.mxu0 0.0
      %1093 = vmatpush1.msra.mxu0 0.0
      %1094 = vmatprep.subr.mxu0 0.0
      %1095 = vmatpush1.msra.mxu0 0.0
      %1096 = vmatprep.subr.mxu0 0.0
      %1097 = vmatpush1.msra.mxu0 0.0
      %1098 = vmatprep.subr.mxu0 0.0
      %1099 = vmatpush1.msra.mxu0 0.0
      %1100 = vmatprep.subr.mxu0 0.0
      %1101 = vmatpush1.msra.mxu0 0.0
      %1102 = vmatprep.subr.mxu0 0.0
      %1103 = vmatpush1.msra.mxu0 0.0
      %1104 = vmatprep.subr.mxu0 0.0
      %1105 = vmatpush1.msra.mxu0 0.0
      %1106 = vmatprep.subr.mxu0 0.0
      %1107 = vmatpush1.msra.mxu0 0.0
      %1108 = vmatprep.subr.mxu0 0.0
      %1109 = vmatpush1.msra.mxu0 0.0
      %1110 = vmatprep.subr.mxu0 0.0
      %1111 = vmatpush1.msra.mxu0 0.0
      %1112 = vmatprep.subr.mxu0 0.0
      %1113 = vmatpush1.msra.mxu0 0.0
      %1114 = vmatprep.subr.mxu0 0.0
      %1115 = vmatpush1.msra.mxu0 0.0
      %1116 = vmatprep.subr.mxu0 0.0
      %1117 = vmatpush1.msra.mxu0 0.0
      %1118 = vmatprep.subr.mxu0 0.0
      %1119 = vmatpush1.msra.mxu0 0.0
      %1120 = vmatprep.mubr.f32.mxu0 0.0
      %1121 = vmatmul.mubr.f32.gmra.mrb[0].mxu0 %v1054
      %v1122 = vpop.f32.mrb[0].mxu0
      %v1123 = vadd.f32 0.0, %v1122
      %v1124 = vpop.f32.mrb[0].mxu0
      %1125 = vdwg.mxu0
      %v1126 = vadd.f32 %v1051, %v1123
      %v1127 = vxor.u32 %v1126, 2147483648
      %v1128 = vmul.f32 %v1127, 1.442695
      %v1129 = vpow.pop %v1128
      %v1130 = vadd.f32 %v1129, 1.0
      %v1131 = vrcp.pop %v1130
      %v1132 = vmul.f32 1.0, %v1131
      %v1133 = vtanh.pop %v1126
      %v1134 = vld [vmem:[#allocation11] sm:$0x3]
      %1136 = vrot.lane.b32.xlu0 %v1134, 16
      %v1137 = vpop.permute.xlu0 %1136
      %v1139 = vmul.f32 %v1132, %v1137
      %1141 = vrot.lane.b32.xlu0 %v1133, 96
      %v1142 = vpop.permute.xlu0 %1141
      %v1144 = vmul.f32 %v1132, %v1142
      %1146 = vrot.lane.b32.xlu0 %v1144, 16
      %v1147 = vpop.permute.xlu0 %1146
      %v1149 = vadd.f32 %v1139, %v1147
      %v1150 = vtanh.pop %v1149
      %1152 = vrot.lane.b32.xlu0 %v1150, 32
      %v1153 = vpop.permute.xlu0 %1152
      %v1155 = vmul.f32 %v1132, %v1153
      %1157 = vrot.lane.b32.xlu0 %v1149, 112
      %v1158 = vpop.permute.xlu0 %1157
      %1160 = vst.msk [vmem:[#allocation11] sm:$0x3] %vm489, %v1158
      %1162 = vrot.lane.b32.xlu0 %v1155, 80
      %v1163 = vpop.permute.xlu0 %1162
      %1165 = vst.msk [vmem:[#allocation10] sm:$0x3] %vm489, %v1163
      %s1166 = scalar_lea.vmem [#allocation8], %s1049
      %vm1167 = vcmask 58368
      %1168 = vst.msk [vmem:[%s1166] sm:$0x3] %vm1167, %v1163
      %s1169 = ssub.s32 7, %s1044
      %1170 = vrot.lane.b32.xlu0 %v1155, 72
      %v1171 = vpop.permute.xlu0 %1170
      %s1173 = smul.u32 %s1169, 2
      %s1174 = scalar_lea.vmem [#allocation9], %s1173
      %1175 = vst.msk [vmem:[%s1174] sm:$0x3] %vm1167, %v1171
    $region274: #{_lambda_.1} parent=1 // loop_footer
      %s1048 = sadd.s32 1, %s1044
    $region275: #{_lambda_.1} parent=1 // loop_footer_branch
      %1043 = sbr.rel target = $region271
    $region276: #{_lambda_.1} parent=1 // loop_exit
      _
    %v1176 = vld [vmem:[#allocation10] sm:$0x3]
    loop: start=0, step=1, limit=8
    $region277: #{_lambda_.1} parent=1 // loop_pre_header
      _
    $region278: #{_lambda_.1} parent=1 // loop_header
      %s1178 = sphi 0, %s1182
      %p1179 = scmp.ge.s32.totalorder %s1178, 8
    $region279: #{_lambda_.1} parent=1 // loop_header_branch
      %1181 = sbr.rel (%p1179) target = $region283
    $region280: #{_lambda_.1} parent=1 // loop_body
      %s1183 = smul.u32 %s1178, 2
      %s1184 = scalar_lea.vmem [#allocation8], %s1183
      %v1185 = vld [vmem:[%s1184] sm:$0x3]
      %s1186 = scalar_lea.vmem [#allocation9], %s1183
      %v1187 = vld [vmem:[%s1186] sm:$0x3]
      %1189 = vrot.lane.b32.xlu0 %v1187, 8
      %v1190 = vpop.permute.xlu0 %1189
      %v1192 = vsel %vm907, %v1185, %v1190
      %v1193 = vsel %vm489, %v1192, 0.0
      %1194 = vadd.xlane.f32.xlu0 %v1193
      %v1195 = vpop.xlane.xlu0 %1194
      %v1196 = vrcp.pop 16.0
      %v1197 = vmul.f32 %v1195, %v1196
      %v1198 = vsub.f32 %v1192, %v1197
      %v1199 = vmul.f32 %v1198, %v1198
      %v1200 = vsel %vm489, %v1199, 0.0
      %1201 = vadd.xlane.f32.xlu0 %v1200
      %v1202 = vpop.xlane.xlu0 %1201
      %v1203 = vmul.f32 %v1202, %v1196
      %v1204 = vadd.f32 %v1203, 1e-05
      %v1205 = vrsqrt.pop %v1204
      %v1206 = vmul.f32 %v1198, %v1205
      %v1208 = vlaneseq
      %v1209 = vshrl.u32 %v1208, 7
      %v1210 = vsub.s32 0, %v1209
      %v1211 = vrot.slane %v920, %v1210
      %v1213 = vmul.f32 %v1206, %v1211
      %v1215 = vlaneseq
      %v1216 = vshrl.u32 %v1215, 7
      %v1217 = vsub.s32 0, %v1216
      %v1218 = vrot.slane %v921, %v1217
      %v1220 = vadd.f32 %v1213, %v1218
      %v1222 = vsel %vm909, %v1220, 0
      %1224 = vmatprep.subr.mxu0 0.0
      %1225 = vmatpush1.msra.mxu0 %v916
      %1226 = vmatprep.subr.mxu0 0.0
      %1227 = vmatpush1.msra.mxu0 %v917
      %1228 = vmatprep.subr.mxu0 0.0
      %1229 = vmatpush1.msra.mxu0 0.0
      %1230 = vmatprep.subr.mxu0 0.0
      %1231 = vmatpush1.msra.mxu0 0.0
      %1232 = vmatprep.subr.mxu0 0.0
      %1233 = vmatpush1.msra.mxu0 0.0
      %1234 = vmatprep.subr.mxu0 0.0
      %1235 = vmatpush1.msra.mxu0 0.0
      %1236 = vmatprep.subr.mxu0 0.0
      %1237 = vmatpush1.msra.mxu0 0.0
      %1238 = vmatprep.subr.mxu0 0.0
      %1239 = vmatpush1.msra.mxu0 0.0
      %1240 = vmatprep.subr.mxu0 0.0
      %1241 = vmatpush1.msra.mxu0 0.0
      %1242 = vmatprep.subr.mxu0 0.0
      %1243 = vmatpush1.msra.mxu0 0.0
      %1244 = vmatprep.subr.mxu0 0.0
      %1245 = vmatpush1.msra.mxu0 0.0
      %1246 = vmatprep.subr.mxu0 0.0
      %1247 = vmatpush1.msra.mxu0 0.0
      %1248 = vmatprep.subr.mxu0 0.0
      %1249 = vmatpush1.msra.mxu0 0.0
      %1250 = vmatprep.subr.mxu0 0.0
      %1251 = vmatpush1.msra.mxu0 0.0
      %1252 = vmatprep.subr.mxu0 0.0
      %1253 = vmatpush1.msra.mxu0 0.0
      %1254 = vmatprep.subr.mxu0 0.0
      %1255 = vmatpush1.msra.mxu0 0.0
      %1256 = vmatprep.subr.mxu0 0.0
      %1257 = vmatpush1.msra.mxu0 0.0
      %1258 = vmatprep.subr.mxu0 0.0
      %1259 = vmatpush1.msra.mxu0 0.0
      %1260 = vmatprep.subr.mxu0 0.0
      %1261 = vmatpush1.msra.mxu0 0.0
      %1262 = vmatprep.subr.mxu0 0.0
      %1263 = vmatpush1.msra.mxu0 0.0
      %1264 = vmatprep.subr.mxu0 0.0
      %1265 = vmatpush1.msra.mxu0 0.0
      %1266 = vmatprep.subr.mxu0 0.0
      %1267 = vmatpush1.msra.mxu0 0.0
      %1268 = vmatprep.subr.mxu0 0.0
      %1269 = vmatpush1.msra.mxu0 0.0
      %1270 = vmatprep.subr.mxu0 0.0
      %1271 = vmatpush1.msra.mxu0 0.0
      %1272 = vmatprep.subr.mxu0 0.0
      %1273 = vmatpush1.msra.mxu0 0.0
      %1274 = vmatprep.subr.mxu0 0.0
      %1275 = vmatpush1.msra.mxu0 0.0
      %1276 = vmatprep.subr.mxu0 0.0
      %1277 = vmatpush1.msra.mxu0 0.0
      %1278 = vmatprep.subr.mxu0 0.0
      %1279 = vmatpush1.msra.mxu0 0.0
      %1280 = vmatprep.subr.mxu0 0.0
      %1281 = vmatpush1.msra.mxu0 0.0
      %1282 = vmatprep.subr.mxu0 0.0
      %1283 = vmatpush1.msra.mxu0 0.0
      %1284 = vmatprep.subr.mxu0 0.0
      %1285 = vmatpush1.msra.mxu0 0.0
      %1286 = vmatprep.subr.mxu0 0.0
      %1287 = vmatpush1.msra.mxu0 0.0
      %1288 = vmatprep.mubr.f32.mxu0 0.0
      %1289 = vmatmul.mubr.f32.gmra.mrb[0].mxu0 %v1222
      %v1290 = vpop.f32.mrb[0].mxu0
      %v1291 = vadd.f32 %v934, %v1290
      %v1292 = vpop.f32.mrb[0].mxu0
      %1293 = vdwg.mxu0
      %s1294 = scalar_lea.vmem [#allocation7], %s1183
      %vm1295 = vcmask 517120
      %1296 = vst.msk [vmem:[%s1294] sm:$0x3] %vm1295, %v1291
    $region281: #{_lambda_.1} parent=1 // loop_footer
      %s1182 = sadd.s32 1, %s1178
    $region282: #{_lambda_.1} parent=1 // loop_footer_branch
      %1177 = sbr.rel target = $region278
    $region283: #{_lambda_.1} parent=1 // loop_exit
      _
    loop: start=0, step=1, limit=4
    $region284: #{_lambda_.1} parent=1 // loop_pre_header
      _
    $region285: #{_lambda_.1} parent=1 // loop_header
      %s1298 = sphi 0, %s1302
      %p1299 = scmp.ge.s32.totalorder %s1298, 4
    $region286: #{_lambda_.1} parent=1 // loop_header_branch
      %1301 = sbr.rel (%p1299) target = $region290
    $region287: #{_lambda_.1} parent=1 // loop_body
      %s1303 = ssub.s32 7, %s1298
      %s1304 = smul.u32 %s1298, 2
      %s1305 = scalar_lea.vmem [#allocation7], %s1304
      %v1306 = vld [vmem:[%s1305] sm:$0x3]
      %s1307 = smul.u32 %s1303, 2
      %s1308 = scalar_lea.vmem [#allocation7], %s1307
      %v1309 = vld [vmem:[%s1308] sm:$0x3]
      %v1310 = vsel %vm382, 1, 0
      %vm1311 = vcmp.eq.s32.totalorder %v1310, 1
      %v1312 = vsel %vm1311, %v1306, %v1309
      %vm1313 = vcmask 517120
      %1314 = vst.msk [vmem:[%s1305] sm:$0x3] %vm1313, %v1312
      %v1315 = vsel %vm1311, %v1309, %v1306
      %1316 = vst.msk [vmem:[%s1308] sm:$0x3] %vm1313, %v1315
    $region288: #{_lambda_.1} parent=1 // loop_footer
      %s1302 = sadd.s32 1, %s1298
    $region289: #{_lambda_.1} parent=1 // loop_footer_branch
      %1297 = sbr.rel target = $region285
    $region290: #{_lambda_.1} parent=1 // loop_exit
      _
    %1317 = vst.msk [vmem:[#allocation10] sm:$0x3] %vm489, 0.0
    %1318 = vst.msk [vmem:[#allocation11] sm:$0x3] %vm489, 0.0
    loop: start=0, step=1, limit=8
    $region291: #{_lambda_.1} parent=1 // loop_pre_header
      _
    $region292: #{_lambda_.1} parent=1 // loop_header
      %s1320 = sphi 0, %s1324
      %p1321 = scmp.ge.s32.totalorder %s1320, 8
    $region293: #{_lambda_.1} parent=1 // loop_header_branch
      %1323 = sbr.rel (%p1321) target = $region297
    $region294: #{_lambda_.1} parent=1 // loop_body
      %s1325 = smul.u32 %s1320, 2
      %s1326 = scalar_lea.vmem [#allocation7], %s1325
      %v1327 = vld [vmem:[%s1326] sm:$0x3]
      %v1328 = vld [vmem:[#allocation10] sm:$0x3]
      %v1330 = vsel %vm909, %v1328, 0
      %1332 = vmatprep.subr.mxu0 0.0
      %1333 = vmatpush1.msra.mxu0 %v918
      %1334 = vmatprep.subr.mxu0 0.0
      %1335 = vmatpush1.msra.mxu0 %v919
      %1336 = vmatprep.subr.mxu0 0.0
      %1337 = vmatpush1.msra.mxu0 0.0
      %1338 = vmatprep.subr.mxu0 0.0
      %1339 = vmatpush1.msra.mxu0 0.0
      %1340 = vmatprep.subr.mxu0 0.0
      %1341 = vmatpush1.msra.mxu0 0.0
      %1342 = vmatprep.subr.mxu0 0.0
      %1343 = vmatpush1.msra.mxu0 0.0
      %1344 = vmatprep.subr.mxu0 0.0
      %1345 = vmatpush1.msra.mxu0 0.0
      %1346 = vmatprep.subr.mxu0 0.0
      %1347 = vmatpush1.msra.mxu0 0.0
      %1348 = vmatprep.subr.mxu0 0.0
      %1349 = vmatpush1.msra.mxu0 0.0
      %1350 = vmatprep.subr.mxu0 0.0
      %1351 = vmatpush1.msra.mxu0 0.0
      %1352 = vmatprep.subr.mxu0 0.0
      %1353 = vmatpush1.msra.mxu0 0.0
      %1354 = vmatprep.subr.mxu0 0.0
      %1355 = vmatpush1.msra.mxu0 0.0
      %1356 = vmatprep.subr.mxu0 0.0
      %1357 = vmatpush1.msra.mxu0 0.0
      %1358 = vmatprep.subr.mxu0 0.0
      %1359 = vmatpush1.msra.mxu0 0.0
      %1360 = vmatprep.subr.mxu0 0.0
      %1361 = vmatpush1.msra.mxu0 0.0
      %1362 = vmatprep.subr.mxu0 0.0
      %1363 = vmatpush1.msra.mxu0 0.0
      %1364 = vmatprep.subr.mxu0 0.0
      %1365 = vmatpush1.msra.mxu0 0.0
      %1366 = vmatprep.subr.mxu0 0.0
      %1367 = vmatpush1.msra.mxu0 0.0
      %1368 = vmatprep.subr.mxu0 0.0
      %1369 = vmatpush1.msra.mxu0 0.0
      %1370 = vmatprep.subr.mxu0 0.0
      %1371 = vmatpush1.msra.mxu0 0.0
      %1372 = vmatprep.subr.mxu0 0.0
      %1373 = vmatpush1.msra.mxu0 0.0
      %1374 = vmatprep.subr.mxu0 0.0
      %1375 = vmatpush1.msra.mxu0 0.0
      %1376 = vmatprep.subr.mxu0 0.0
      %1377 = vmatpush1.msra.mxu0 0.0
      %1378 = vmatprep.subr.mxu0 0.0
      %1379 = vmatpush1.msra.mxu0 0.0
      %1380 = vmatprep.subr.mxu0 0.0
      %1381 = vmatpush1.msra.mxu0 0.0
      %1382 = vmatprep.subr.mxu0 0.0
      %1383 = vmatpush1.msra.mxu0 0.0
      %1384 = vmatprep.subr.mxu0 0.0
      %1385 = vmatpush1.msra.mxu0 0.0
      %1386 = vmatprep.subr.mxu0 0.0
      %1387 = vmatpush1.msra.mxu0 0.0
      %1388 = vmatprep.subr.mxu0 0.0
      %1389 = vmatpush1.msra.mxu0 0.0
      %1390 = vmatprep.subr.mxu0 0.0
      %1391 = vmatpush1.msra.mxu0 0.0
      %1392 = vmatprep.subr.mxu0 0.0
      %1393 = vmatpush1.msra.mxu0 0.0
      %1394 = vmatprep.subr.mxu0 0.0
      %1395 = vmatpush1.msra.mxu0 0.0
      %1396 = vmatprep.mubr.f32.mxu0 0.0
      %1397 = vmatmul.mubr.f32.gmra.mrb[0].mxu0 %v1330
      %v1398 = vpop.f32.mrb[0].mxu0
      %v1399 = vadd.f32 0.0, %v1398
      %v1400 = vpop.f32.mrb[0].mxu0
      %1401 = vdwg.mxu0
      %v1402 = vadd.f32 %v1327, %v1399
      %v1403 = vxor.u32 %v1402, 2147483648
      %v1404 = vmul.f32 %v1403, 1.442695
      %v1405 = vpow.pop %v1404
      %v1406 = vadd.f32 %v1405, 1.0
      %v1407 = vrcp.pop %v1406
      %v1408 = vmul.f32 1.0, %v1407
      %v1409 = vtanh.pop %v1402
      %v1410 = vld [vmem:[#allocation11] sm:$0x3]
      %1412 = vrot.lane.b32.xlu0 %v1410, 16
      %v1413 = vpop.permute.xlu0 %1412
      %v1415 = vmul.f32 %v1408, %v1413
      %1417 = vrot.lane.b32.xlu0 %v1409, 96
      %v1418 = vpop.permute.xlu0 %1417
      %v1420 = vmul.f32 %v1408, %v1418
      %1422 = vrot.lane.b32.xlu0 %v1420, 16
      %v1423 = vpop.permute.xlu0 %1422
      %v1425 = vadd.f32 %v1415, %v1423
      %v1426 = vtanh.pop %v1425
      %1428 = vrot.lane.b32.xlu0 %v1426, 32
      %v1429 = vpop.permute.xlu0 %1428
      %v1431 = vmul.f32 %v1408, %v1429
      %1433 = vrot.lane.b32.xlu0 %v1425, 112
      %v1434 = vpop.permute.xlu0 %1433
      %1436 = vst.msk [vmem:[#allocation11] sm:$0x3] %vm489, %v1434
      %1438 = vrot.lane.b32.xlu0 %v1431, 80
      %v1439 = vpop.permute.xlu0 %1438
      %1441 = vst.msk [vmem:[#allocation10] sm:$0x3] %vm489, %v1439
    $region295: #{_lambda_.1} parent=1 // loop_footer
      %s1324 = sadd.s32 1, %s1320
    $region296: #{_lambda_.1} parent=1 // loop_footer_branch
      %1319 = sbr.rel target = $region292
    $region297: #{_lambda_.1} parent=1 // loop_exit
      _
    %v1442 = vld [vmem:[#allocation10] sm:$0x3]
    %1444 = vrot.lane.b32.xlu0 %v1442, 8
    %v1445 = vpop.permute.xlu0 %1444
    %1448 = vrot.lane.b32.xlu0 %v1176, 8
    %v1449 = vpop.permute.xlu0 %1448
    %1451 = vrot.lane.b32.xlu0 %v1442, 16
    %v1452 = vpop.permute.xlu0 %1451
    %v1454 = vsel %vm907, %v1176, %v1445
    %v1455 = vsel %vm909, %v1454, %v1449
    %v1456 = vsel %vm911, %v1455, %v1452
    %v1457 = vld [vmem:[%s5] sm:$0xff]
    %v1458 = vld [vmem:[%s5 + $0x8] sm:$0xff]
    %v1459 = vld [vmem:[%s5 + $0x10] sm:$0xff]
    %v1460 = vld [vmem:[%s5 + $0x18] sm:$0xff]
    %v1461 = vld [vmem:[%s5 + $0x20] sm:$0xff]
    %v1462 = vld [vmem:[%s5 + $0x28] sm:$0xff]
    %v1463 = vld [vmem:[%s5 + $0x30] sm:$0xff]
    %v1464 = vld [vmem:[%s5 + $0x38] sm:$0xff]
    %v1465 = vld [vmem:[%s5 + $0x40] sm:$0xff]
    %v1466 = vld [vmem:[%s5 + $0x48] sm:$0xff]
    %v1467 = vld [vmem:[%s5 + $0x50] sm:$0xff]
    %v1468 = vld [vmem:[%s5 + $0x58] sm:$0xff]
    %v1469 = vld [vmem:[%s7] sm:$0x3]
    %v1470 = vlaneseq
    %v1471 = vshrl.u32 %v1470, 7
    %v1472 = vsub.s32 0, %v1471
    %v1473 = vrot.slane %v1469, %v1472
    %1475 = vbcast.lane.b32.xlu0 %v1473, 256
    %v1476 = vpop.permute.xlu0 %1475
    %v1477 = vlaneseq
    %v1478 = vshrl.u32 %v1477, 7
    %v1479 = vsub.s32 1, %v1478
    %v1480 = vrot.slane %v1469, %v1479
    %1482 = vbcast.lane.b32.xlu0 %v1480, 256
    %v1483 = vpop.permute.xlu0 %1482
    %v1484 = vmul.f32 %v1457, %v1476
    %v1485 = vmul.f32 %v1458, %v1476
    %v1486 = vmul.f32 %v1459, %v1476
    %v1487 = vmul.f32 %v1460, %v1476
    %v1488 = vmul.f32 %v1461, %v1476
    %v1489 = vmul.f32 %v1462, %v1476
    %v1490 = vmul.f32 %v1463, %v1483
    %v1491 = vmul.f32 %v1464, %v1483
    %v1492 = vmul.f32 %v1465, %v1483
    %v1493 = vmul.f32 %v1466, %v1483
    %v1494 = vmul.f32 %v1467, %v1483
    %v1495 = vmul.f32 %v1468, %v1483
    %v1496 = vrot.slane %v1484, 4
    %v1497 = vadd.f32 %v1484, %v1496
    %v1498 = vrot.slane %v1497, 2
    %v1499 = vadd.f32 %v1497, %v1498
    %v1500 = vrot.slane %v1499, 1
    %v1501 = vadd.f32 %v1499, %v1500
    %v1502 = vrot.slane %v1485, 4
    %v1503 = vadd.f32 %v1485, %v1502
    %v1504 = vrot.slane %v1503, 2
    %v1505 = vadd.f32 %v1503, %v1504
    %v1506 = vrot.slane %v1505, 1
    %v1507 = vadd.f32 %v1505, %v1506
    %v1508 = vrot.slane %v1486, 4
    %v1509 = vadd.f32 %v1486, %v1508
    %v1510 = vrot.slane %v1509, 2
    %v1511 = vadd.f32 %v1509, %v1510
    %v1512 = vrot.slane %v1511, 1
    %v1513 = vadd.f32 %v1511, %v1512
    %v1514 = vrot.slane %v1487, 4
    %v1515 = vadd.f32 %v1487, %v1514
    %v1516 = vrot.slane %v1515, 2
    %v1517 = vadd.f32 %v1515, %v1516
    %v1518 = vrot.slane %v1517, 1
    %v1519 = vadd.f32 %v1517, %v1518
    %v1520 = vrot.slane %v1488, 4
    %v1521 = vadd.f32 %v1488, %v1520
    %v1522 = vrot.slane %v1521, 2
    %v1523 = vadd.f32 %v1521, %v1522
    %v1524 = vrot.slane %v1523, 1
    %v1525 = vadd.f32 %v1523, %v1524
    %v1526 = vrot.slane %v1489, 4
    %v1527 = vadd.f32 %v1489, %v1526
    %v1528 = vrot.slane %v1527, 2
    %v1529 = vadd.f32 %v1527, %v1528
    %v1530 = vrot.slane %v1529, 1
    %v1531 = vadd.f32 %v1529, %v1530
    %v1532 = vrot.slane %v1490, 4
    %v1533 = vadd.f32 %v1490, %v1532
    %v1534 = vrot.slane %v1533, 2
    %v1535 = vadd.f32 %v1533, %v1534
    %v1536 = vrot.slane %v1535, 1
    %v1537 = vadd.f32 %v1535, %v1536
    %v1538 = vrot.slane %v1491, 4
    %v1539 = vadd.f32 %v1491, %v1538
    %v1540 = vrot.slane %v1539, 2
    %v1541 = vadd.f32 %v1539, %v1540
    %v1542 = vrot.slane %v1541, 1
    %v1543 = vadd.f32 %v1541, %v1542
    %v1544 = vrot.slane %v1492, 4
    %v1545 = vadd.f32 %v1492, %v1544
    %v1546 = vrot.slane %v1545, 2
    %v1547 = vadd.f32 %v1545, %v1546
    %v1548 = vrot.slane %v1547, 1
    %v1549 = vadd.f32 %v1547, %v1548
    %v1550 = vrot.slane %v1493, 4
    %v1551 = vadd.f32 %v1493, %v1550
    %v1552 = vrot.slane %v1551, 2
    %v1553 = vadd.f32 %v1551, %v1552
    %v1554 = vrot.slane %v1553, 1
    %v1555 = vadd.f32 %v1553, %v1554
    %v1556 = vrot.slane %v1494, 4
    %v1557 = vadd.f32 %v1494, %v1556
    %v1558 = vrot.slane %v1557, 2
    %v1559 = vadd.f32 %v1557, %v1558
    %v1560 = vrot.slane %v1559, 1
    %v1561 = vadd.f32 %v1559, %v1560
    %v1562 = vrot.slane %v1495, 4
    %v1563 = vadd.f32 %v1495, %v1562
    %v1564 = vrot.slane %v1563, 2
    %v1565 = vadd.f32 %v1563, %v1564
    %v1566 = vrot.slane %v1565, 1
    %v1567 = vadd.f32 %v1565, %v1566
    %vm1568 = vcmask 58368
    %v1569 = vsel %vm1568, %v1469, 0.0
    %1570 = vadd.xlane.f32.xlu0 %v1569
    %v1571 = vpop.xlane.xlu0 %1570
    %v1573 = vrot.slane %v1571, 1
    %v1576 = vrcp.pop %v1571
    %v1577 = vmul.f32 %v1501, %v1576
    %v1578 = vmul.f32 %v1507, %v1576
    %v1579 = vmul.f32 %v1513, %v1576
    %v1580 = vmul.f32 %v1519, %v1576
    %v1581 = vmul.f32 %v1525, %v1576
    %v1582 = vmul.f32 %v1531, %v1576
    %v1583 = vrcp.pop %v1573
    %v1584 = vmul.f32 %v1537, %v1583
    %v1585 = vmul.f32 %v1543, %v1583
    %v1586 = vmul.f32 %v1549, %v1583
    %v1587 = vmul.f32 %v1555, %v1583
    %v1588 = vmul.f32 %v1561, %v1583
    %v1589 = vmul.f32 %v1567, %v1583
    %v1590 = vld [vmem:[%s41] sm:$0xff]
    %v1591 = vld [vmem:[%s41 + $0x8] sm:$0xff]
    %v1592 = vld [vmem:[%s41 + $0x10] sm:$0xff]
    %v1593 = vld [vmem:[%s41 + $0x18] sm:$0xff]
    %v1594 = vld [vmem:[%s41 + $0x20] sm:$0xff]
    %v1595 = vld [vmem:[%s41 + $0x28] sm:$0xff]
    %v1596 = vld [vmem:[%s41 + $0x30] sm:$0xff]
    %v1597 = vld [vmem:[%s41 + $0x38] sm:$0xff]
    %v1598 = vld [vmem:[%s41 + $0x40] sm:$0xff]
    %v1599 = vld [vmem:[%s41 + $0x48] sm:$0xff]
    %v1600 = vld [vmem:[%s41 + $0x50] sm:$0xff]
    %v1601 = vld [vmem:[%s41 + $0x58] sm:$0xff]
    %v1602 = vld [vmem:[%s41 + $0x60] sm:$0xff]
    %v1603 = vld [vmem:[%s41 + $0x68] sm:$0xff]
    %v1604 = vld [vmem:[%s41 + $0x70] sm:$0xff]
    %v1605 = vld [vmem:[%s41 + $0x78] sm:$0xff]
    %v1606 = vld [vmem:[%s41 + $0x80] sm:$0xff]
    %v1607 = vld [vmem:[%s41 + $0x88] sm:$0xff]
    %v1608 = vld [vmem:[%s41 + $0x90] sm:$0xff]
    %v1609 = vld [vmem:[%s41 + $0x98] sm:$0xff]
    %v1610 = vld [vmem:[%s41 + $0xa0] sm:$0xff]
    %v1611 = vld [vmem:[%s41 + $0xa8] sm:$0xff]
    %v1612 = vld [vmem:[%s41 + $0xb0] sm:$0xff]
    %v1613 = vld [vmem:[%s41 + $0xb8] sm:$0xff]
    %v1614 = vld [vmem:[%s41 + $0xc0] sm:$0xff]
    %v1615 = vld [vmem:[%s41 + $0xc8] sm:$0xff]
    %v1616 = vld [vmem:[%s41 + $0xd0] sm:$0xff]
    %v1617 = vld [vmem:[%s41 + $0xd8] sm:$0xff]
    %v1618 = vld [vmem:[%s41 + $0xe0] sm:$0xff]
    %v1619 = vld [vmem:[%s41 + $0xe8] sm:$0xff]
    %v1620 = vld [vmem:[%s41 + $0xf0] sm:$0xff]
    %v1621 = vld [vmem:[%s41 + $0xf8] sm:$0xff]
    %v1622 = vld [vmem:[%s41 + $0x100] sm:$0xff]
    %v1623 = vld [vmem:[%s41 + $0x108] sm:$0xff]
    %v1624 = vld [vmem:[%s41 + $0x110] sm:$0xff]
    %v1625 = vld [vmem:[%s41 + $0x118] sm:$0xff]
    %v1626 = vld [vmem:[%s41 + $0x120] sm:$0xff]
    %v1627 = vld [vmem:[%s41 + $0x128] sm:$0xff]
    %v1628 = vld [vmem:[%s41 + $0x130] sm:$0xff]
    %v1629 = vld [vmem:[%s41 + $0x138] sm:$0xff]
    %v1630 = vld [vmem:[%s41 + $0x140] sm:$0xff]
    %v1631 = vld [vmem:[%s41 + $0x148] sm:$0xff]
    %v1632 = vld [vmem:[%s41 + $0x150] sm:$0xff]
    %v1633 = vld [vmem:[%s41 + $0x158] sm:$0xff]
    %v1634 = vld [vmem:[%s41 + $0x160] sm:$0xff]
    %v1635 = vld [vmem:[%s41 + $0x168] sm:$0xff]
    %v1636 = vld [vmem:[%s41 + $0x170] sm:$0xff]
    %v1637 = vld [vmem:[%s41 + $0x178] sm:$0xff]
    %v1638 = vld [vmem:[%s41 + $0x180] sm:$0xff]
    %v1639 = vld [vmem:[%s41 + $0x188] sm:$0xff]
    %v1640 = vld [vmem:[%s41 + $0x190] sm:$0xff]
    %v1641 = vld [vmem:[%s41 + $0x198] sm:$0xff]
    %v1642 = vld [vmem:[%s41 + $0x1a0] sm:$0xff]
    %v1643 = vld [vmem:[%s41 + $0x1a8] sm:$0xff]
    %v1644 = vld [vmem:[%s41 + $0x1b0] sm:$0xff]
    %v1645 = vld [vmem:[%s41 + $0x1b8] sm:$0xff]
    %v1646 = vld [vmem:[%s41 + $0x1c0] sm:$0xff]
    %v1647 = vld [vmem:[%s41 + $0x1c8] sm:$0xff]
    %v1648 = vld [vmem:[%s41 + $0x1d0] sm:$0xff]
    %v1649 = vld [vmem:[%s41 + $0x1d8] sm:$0xff]
    %v1650 = vld [vmem:[%s41 + $0x1e0] sm:$0xff]
    %v1651 = vld [vmem:[%s41 + $0x1e8] sm:$0xff]
    %v1652 = vld [vmem:[%s41 + $0x1f0] sm:$0xff]
    %v1653 = vld [vmem:[%s41 + $0x1f8] sm:$0xff]
    %v1654 = vld [vmem:[%s41 + $0x200] sm:$0xff]
    %v1655 = vld [vmem:[%s41 + $0x208] sm:$0xff]
    %v1656 = vld [vmem:[%s41 + $0x210] sm:$0xff]
    %v1657 = vld [vmem:[%s41 + $0x218] sm:$0xff]
    %v1658 = vld [vmem:[%s41 + $0x220] sm:$0xff]
    %v1659 = vld [vmem:[%s41 + $0x228] sm:$0xff]
    %v1660 = vld [vmem:[%s41 + $0x230] sm:$0xff]
    %v1661 = vld [vmem:[%s41 + $0x238] sm:$0xff]
    %v1662 = vld [vmem:[%s41 + $0x240] sm:$0xff]
    %v1663 = vld [vmem:[%s41 + $0x248] sm:$0xff]
    %v1664 = vld [vmem:[%s41 + $0x250] sm:$0xff]
    %v1665 = vld [vmem:[%s41 + $0x258] sm:$0xff]
    %v1666 = vld [vmem:[%s41 + $0x260] sm:$0xff]
    %v1667 = vld [vmem:[%s41 + $0x268] sm:$0xff]
    %v1668 = vld [vmem:[%s41 + $0x270] sm:$0xff]
    %v1669 = vld [vmem:[%s41 + $0x278] sm:$0xff]
    %v1670 = vld [vmem:[%s41 + $0x280] sm:$0xff]
    %v1671 = vld [vmem:[%s41 + $0x288] sm:$0xff]
    %v1672 = vld [vmem:[%s41 + $0x290] sm:$0xff]
    %v1673 = vld [vmem:[%s41 + $0x298] sm:$0xff]
    %v1674 = vld [vmem:[%s41 + $0x2a0] sm:$0xff]
    %v1675 = vld [vmem:[%s41 + $0x2a8] sm:$0xff]
    %v1676 = vld [vmem:[%s41 + $0x2b0] sm:$0xff]
    %v1677 = vld [vmem:[%s41 + $0x2b8] sm:$0xff]
    %v1678 = vld [vmem:[%s41 + $0x2c0] sm:$0xff]
    %v1679 = vld [vmem:[%s41 + $0x2c8] sm:$0xff]
    %v1680 = vld [vmem:[%s41 + $0x2d0] sm:$0xff]
    %v1681 = vld [vmem:[%s41 + $0x2d8] sm:$0xff]
    %v1682 = vld [vmem:[%s41 + $0x2e0] sm:$0xff]
    %v1683 = vld [vmem:[%s41 + $0x2e8] sm:$0xff]
    %v1684 = vld [vmem:[%s41 + $0x2f0] sm:$0xff]
    %v1685 = vld [vmem:[%s41 + $0x2f8] sm:$0xff]
    %v1686 = vld [vmem:[#allocation25] sm:$0x1]
    %v1687 = vld [vmem:[%s45] sm:$0x1]
    %v1688 = vld [vmem:[%s47] sm:$0x1]
    %v1690 = vlaneseq
    %v1691 = vshrl.u32 %v1690, 7
    %v1692 = vsub.s32 0, %v1691
    %v1693 = vrot.slane %v1686, %v1692
    %v1707 = vrot.slane %v1584, 7
    %vm1708 = vcmask 1041409
    %v1709 = vsel %vm1708, %v1707, %v1577
    %v1710 = vrot.slane %v1585, 7
    %v1711 = vsel %vm1708, %v1710, %v1578
    %v1712 = vrot.slane %v1586, 7
    %v1713 = vsel %vm1708, %v1712, %v1579
    %v1714 = vrot.slane %v1587, 7
    %v1715 = vsel %vm1708, %v1714, %v1580
    %v1716 = vrot.slane %v1588, 7
    %v1717 = vsel %vm1708, %v1716, %v1581
    %v1718 = vrot.slane %v1589, 7
    %v1719 = vsel %vm1708, %v1718, %v1582
    %1726 = vmatprep.subr.mxu0 0.0
    %1727 = vmatpush1.msra.mxu0 %v1590
    %1728 = vmatprep.subr.mxu0 0.0
    %1729 = vmatpush1.msra.mxu0 %v1591
    %1730 = vmatprep.subr.mxu0 0.0
    %1731 = vmatpush1.msra.mxu0 %v1592
    %1732 = vmatprep.subr.mxu0 0.0
    %1733 = vmatpush1.msra.mxu0 %v1593
    %1734 = vmatprep.subr.mxu0 0.0
    %1735 = vmatpush1.msra.mxu0 %v1594
    %1736 = vmatprep.subr.mxu0 0.0
    %1737 = vmatpush1.msra.mxu0 %v1595
    %1738 = vmatprep.subr.mxu0 0.0
    %1739 = vmatpush1.msra.mxu0 %v1596
    %1740 = vmatprep.subr.mxu0 0.0
    %1741 = vmatpush1.msra.mxu0 %v1597
    %1742 = vmatprep.subr.mxu0 0.0
    %1743 = vmatpush1.msra.mxu0 %v1598
    %1744 = vmatprep.subr.mxu0 0.0
    %1745 = vmatpush1.msra.mxu0 %v1599
    %1746 = vmatprep.subr.mxu0 0.0
    %1747 = vmatpush1.msra.mxu0 %v1600
    %1748 = vmatprep.subr.mxu0 0.0
    %1749 = vmatpush1.msra.mxu0 %v1601
    %1750 = vmatprep.subr.mxu0 0.0
    %1751 = vmatpush1.msra.mxu0 %v1602
    %1752 = vmatprep.subr.mxu0 0.0
    %1753 = vmatpush1.msra.mxu0 %v1603
    %1754 = vmatprep.subr.mxu0 0.0
    %1755 = vmatpush1.msra.mxu0 %v1604
    %1756 = vmatprep.subr.mxu0 0.0
    %1757 = vmatpush1.msra.mxu0 %v1605
    %1758 = vmatprep.subr.mxu0 0.0
    %1759 = vmatpush1.msra.mxu0 %v1606
    %1760 = vmatprep.subr.mxu0 0.0
    %1761 = vmatpush1.msra.mxu0 %v1607
    %1762 = vmatprep.subr.mxu0 0.0
    %1763 = vmatpush1.msra.mxu0 %v1608
    %1764 = vmatprep.subr.mxu0 0.0
    %1765 = vmatpush1.msra.mxu0 %v1609
    %1766 = vmatprep.subr.mxu0 0.0
    %1767 = vmatpush1.msra.mxu0 %v1610
    %1768 = vmatprep.subr.mxu0 0.0
    %1769 = vmatpush1.msra.mxu0 %v1611
    %1770 = vmatprep.subr.mxu0 0.0
    %1771 = vmatpush1.msra.mxu0 %v1612
    %1772 = vmatprep.subr.mxu0 0.0
    %1773 = vmatpush1.msra.mxu0 %v1613
    %1774 = vmatprep.subr.mxu0 0.0
    %1775 = vmatpush1.msra.mxu0 %v1614
    %1776 = vmatprep.subr.mxu0 0.0
    %1777 = vmatpush1.msra.mxu0 %v1615
    %1778 = vmatprep.subr.mxu0 0.0
    %1779 = vmatpush1.msra.mxu0 %v1616
    %1780 = vmatprep.subr.mxu0 0.0
    %1781 = vmatpush1.msra.mxu0 %v1617
    %1782 = vmatprep.subr.mxu0 0.0
    %1783 = vmatpush1.msra.mxu0 %v1618
    %1784 = vmatprep.subr.mxu0 0.0
    %1785 = vmatpush1.msra.mxu0 %v1619
    %1786 = vmatprep.subr.mxu0 0.0
    %1787 = vmatpush1.msra.mxu0 %v1620
    %1788 = vmatprep.subr.mxu0 0.0
    %1789 = vmatpush1.msra.mxu0 %v1621
    %1790 = vmatprep.mubr.f32.mxu0 %v1711
    %1791 = vmatmul.mubr.f32.gmra.mrb[0].mxu0 %v1709
    %v1792 = vpop.f32.mrb[0].mxu0
    %v1793 = vadd.f32 %v1693, %v1792
    %v1794 = vpop.f32.mrb[0].mxu0
    %1795 = vdwg.mxu0
    %1796 = vmatprep.subr.mxu0 0.0
    %1797 = vmatpush1.msra.mxu0 %v1622
    %1798 = vmatprep.subr.mxu0 0.0
    %1799 = vmatpush1.msra.mxu0 %v1623
    %1800 = vmatprep.subr.mxu0 0.0
    %1801 = vmatpush1.msra.mxu0 %v1624
    %1802 = vmatprep.subr.mxu0 0.0
    %1803 = vmatpush1.msra.mxu0 %v1625
    %1804 = vmatprep.subr.mxu0 0.0
    %1805 = vmatpush1.msra.mxu0 %v1626
    %1806 = vmatprep.subr.mxu0 0.0
    %1807 = vmatpush1.msra.mxu0 %v1627
    %1808 = vmatprep.subr.mxu0 0.0
    %1809 = vmatpush1.msra.mxu0 %v1628
    %1810 = vmatprep.subr.mxu0 0.0
    %1811 = vmatpush1.msra.mxu0 %v1629
    %1812 = vmatprep.subr.mxu0 0.0
    %1813 = vmatpush1.msra.mxu0 %v1630
    %1814 = vmatprep.subr.mxu0 0.0
    %1815 = vmatpush1.msra.mxu0 %v1631
    %1816 = vmatprep.subr.mxu0 0.0
    %1817 = vmatpush1.msra.mxu0 %v1632
    %1818 = vmatprep.subr.mxu0 0.0
    %1819 = vmatpush1.msra.mxu0 %v1633
    %1820 = vmatprep.subr.mxu0 0.0
    %1821 = vmatpush1.msra.mxu0 %v1634
    %1822 = vmatprep.subr.mxu0 0.0
    %1823 = vmatpush1.msra.mxu0 %v1635
    %1824 = vmatprep.subr.mxu0 0.0
    %1825 = vmatpush1.msra.mxu0 %v1636
    %1826 = vmatprep.subr.mxu0 0.0
    %1827 = vmatpush1.msra.mxu0 %v1637
    %1828 = vmatprep.subr.mxu0 0.0
    %1829 = vmatpush1.msra.mxu0 %v1638
    %1830 = vmatprep.subr.mxu0 0.0
    %1831 = vmatpush1.msra.mxu0 %v1639
    %1832 = vmatprep.subr.mxu0 0.0
    %1833 = vmatpush1.msra.mxu0 %v1640
    %1834 = vmatprep.subr.mxu0 0.0
    %1835 = vmatpush1.msra.mxu0 %v1641
    %1836 = vmatprep.subr.mxu0 0.0
    %1837 = vmatpush1.msra.mxu0 %v1642
    %1838 = vmatprep.subr.mxu0 0.0
    %1839 = vmatpush1.msra.mxu0 %v1643
    %1840 = vmatprep.subr.mxu0 0.0
    %1841 = vmatpush1.msra.mxu0 %v1644
    %1842 = vmatprep.subr.mxu0 0.0
    %1843 = vmatpush1.msra.mxu0 %v1645
    %1844 = vmatprep.subr.mxu0 0.0
    %1845 = vmatpush1.msra.mxu0 %v1646
    %1846 = vmatprep.subr.mxu0 0.0
    %1847 = vmatpush1.msra.mxu0 %v1647
    %1848 = vmatprep.subr.mxu0 0.0
    %1849 = vmatpush1.msra.mxu0 %v1648
    %1850 = vmatprep.subr.mxu0 0.0
    %1851 = vmatpush1.msra.mxu0 %v1649
    %1852 = vmatprep.subr.mxu0 0.0
    %1853 = vmatpush1.msra.mxu0 %v1650
    %1854 = vmatprep.subr.mxu0 0.0
    %1855 = vmatpush1.msra.mxu0 %v1651
    %1856 = vmatprep.subr.mxu0 0.0
    %1857 = vmatpush1.msra.mxu0 %v1652
    %1858 = vmatprep.subr.mxu0 0.0
    %1859 = vmatpush1.msra.mxu0 %v1653
    %1860 = vmatprep.mubr.f32.mxu0 %v1715
    %1861 = vmatmul.mubr.f32.gmra.mrb[0].mxu0 %v1713
    %v1862 = vpop.f32.mrb[0].mxu0
    %v1863 = vadd.f32 %v1793, %v1862
    %v1864 = vpop.f32.mrb[0].mxu0
    %1865 = vdwg.mxu0
    %1866 = vmatprep.subr.mxu0 0.0
    %1867 = vmatpush1.msra.mxu0 %v1654
    %1868 = vmatprep.subr.mxu0 0.0
    %1869 = vmatpush1.msra.mxu0 %v1655
    %1870 = vmatprep.subr.mxu0 0.0
    %1871 = vmatpush1.msra.mxu0 %v1656
    %1872 = vmatprep.subr.mxu0 0.0
    %1873 = vmatpush1.msra.mxu0 %v1657
    %1874 = vmatprep.subr.mxu0 0.0
    %1875 = vmatpush1.msra.mxu0 %v1658
    %1876 = vmatprep.subr.mxu0 0.0
    %1877 = vmatpush1.msra.mxu0 %v1659
    %1878 = vmatprep.subr.mxu0 0.0
    %1879 = vmatpush1.msra.mxu0 %v1660
    %1880 = vmatprep.subr.mxu0 0.0
    %1881 = vmatpush1.msra.mxu0 %v1661
    %1882 = vmatprep.subr.mxu0 0.0
    %1883 = vmatpush1.msra.mxu0 %v1662
    %1884 = vmatprep.subr.mxu0 0.0
    %1885 = vmatpush1.msra.mxu0 %v1663
    %1886 = vmatprep.subr.mxu0 0.0
    %1887 = vmatpush1.msra.mxu0 %v1664
    %1888 = vmatprep.subr.mxu0 0.0
    %1889 = vmatpush1.msra.mxu0 %v1665
    %1890 = vmatprep.subr.mxu0 0.0
    %1891 = vmatpush1.msra.mxu0 %v1666
    %1892 = vmatprep.subr.mxu0 0.0
    %1893 = vmatpush1.msra.mxu0 %v1667
    %1894 = vmatprep.subr.mxu0 0.0
    %1895 = vmatpush1.msra.mxu0 %v1668
    %1896 = vmatprep.subr.mxu0 0.0
    %1897 = vmatpush1.msra.mxu0 %v1669
    %1898 = vmatprep.subr.mxu0 0.0
    %1899 = vmatpush1.msra.mxu0 %v1670
    %1900 = vmatprep.subr.mxu0 0.0
    %1901 = vmatpush1.msra.mxu0 %v1671
    %1902 = vmatprep.subr.mxu0 0.0
    %1903 = vmatpush1.msra.mxu0 %v1672
    %1904 = vmatprep.subr.mxu0 0.0
    %1905 = vmatpush1.msra.mxu0 %v1673
    %1906 = vmatprep.subr.mxu0 0.0
    %1907 = vmatpush1.msra.mxu0 %v1674
    %1908 = vmatprep.subr.mxu0 0.0
    %1909 = vmatpush1.msra.mxu0 %v1675
    %1910 = vmatprep.subr.mxu0 0.0
    %1911 = vmatpush1.msra.mxu0 %v1676
    %1912 = vmatprep.subr.mxu0 0.0
    %1913 = vmatpush1.msra.mxu0 %v1677
    %1914 = vmatprep.subr.mxu0 0.0
    %1915 = vmatpush1.msra.mxu0 %v1678
    %1916 = vmatprep.subr.mxu0 0.0
    %1917 = vmatpush1.msra.mxu0 %v1679
    %1918 = vmatprep.subr.mxu0 0.0
    %1919 = vmatpush1.msra.mxu0 %v1680
    %1920 = vmatprep.subr.mxu0 0.0
    %1921 = vmatpush1.msra.mxu0 %v1681
    %1922 = vmatprep.subr.mxu0 0.0
    %1923 = vmatpush1.msra.mxu0 %v1682
    %1924 = vmatprep.subr.mxu0 0.0
    %1925 = vmatpush1.msra.mxu0 %v1683
    %1926 = vmatprep.subr.mxu0 0.0
    %1927 = vmatpush1.msra.mxu0 %v1684
    %1928 = vmatprep.subr.mxu0 0.0
    %1929 = vmatpush1.msra.mxu0 %v1685
    %1930 = vmatprep.mubr.f32.mxu0 %v1719
    %1931 = vmatmul.mubr.f32.gmra.mrb[0].mxu0 %v1717
    %v1932 = vpop.f32.mrb[0].mxu0
    %v1933 = vadd.f32 %v1863, %v1932
    %v1934 = vpop.f32.mrb[0].mxu0
    %1935 = vdwg.mxu0
    %v1936 = vmax.f32 %v1933, 0.0
    %v1937 = vsel %vm489, %v1936, 0.0
    %1938 = vadd.xlane.f32.xlu0 %v1937
    %v1939 = vpop.xlane.xlu0 %1938
    %v1940 = vrcp.pop 16.0
    %v1941 = vmul.f32 %v1939, %v1940
    %v1942 = vsub.f32 %v1936, %v1941
    %v1943 = vmul.f32 %v1942, %v1942
    %v1944 = vsel %vm489, %v1943, 0.0
    %1945 = vadd.xlane.f32.xlu0 %v1944
    %v1946 = vpop.xlane.xlu0 %1945
    %v1947 = vmul.f32 %v1946, %v1940
    %v1948 = vadd.f32 %v1947, 1e-05
    %v1949 = vrsqrt.pop %v1948
    %v1950 = vmul.f32 %v1942, %v1949
    %v1952 = vlaneseq
    %v1953 = vshrl.u32 %v1952, 7
    %v1954 = vsub.s32 0, %v1953
    %v1955 = vrot.slane %v1687, %v1954
    %v1957 = vmul.f32 %v1950, %v1955
    %v1959 = vlaneseq
    %v1960 = vshrl.u32 %v1959, 7
    %v1961 = vsub.s32 0, %v1960
    %v1962 = vrot.slane %v1688, %v1961
    %v1964 = vadd.f32 %v1957, %v1962
    %v1965 = vld [vmem:[%s49] sm:$0xff]
    %v1966 = vld [vmem:[%s49 + $0x8] sm:$0xff]
    %v1967 = vld [vmem:[%s49 + $0x10] sm:$0xff]
    %v1968 = vld [vmem:[%s49 + $0x18] sm:$0xff]
    %v1969 = vld [vmem:[#allocation26] sm:$0x1]
    %v1970 = vld [vmem:[%s53] sm:$0x1]
    %v1971 = vld [vmem:[%s55] sm:$0x1]
    %v1973 = vlaneseq
    %v1974 = vshrl.u32 %v1973, 7
    %v1975 = vsub.s32 0, %v1974
    %v1976 = vrot.slane %v1969, %v1975
    %vm1978 = vcmask 261120
    %v1980 = vsel %vm1978, %v912, 0
    %1982 = vmatprep.subr.mxu0 0.0
    %1983 = vmatpush1.msra.mxu0 %v1965
    %1984 = vmatprep.subr.mxu0 0.0
    %1985 = vmatpush1.msra.mxu0 %v1966
    %1986 = vmatprep.subr.mxu0 0.0
    %1987 = vmatpush1.msra.mxu0 %v1967
    %1988 = vmatprep.subr.mxu0 0.0
    %1989 = vmatpush1.msra.mxu0 %v1968
    %1990 = vmatprep.subr.mxu0 0.0
    %1991 = vmatpush1.msra.mxu0 0.0
    %1992 = vmatprep.subr.mxu0 0.0
    %1993 = vmatpush1.msra.mxu0 0.0
    %1994 = vmatprep.subr.mxu0 0.0
    %1995 = vmatpush1.msra.mxu0 0.0
    %1996 = vmatprep.subr.mxu0 0.0
    %1997 = vmatpush1.msra.mxu0 0.0
    %1998 = vmatprep.subr.mxu0 0.0
    %1999 = vmatpush1.msra.mxu0 0.0
    %2000 = vmatprep.subr.mxu0 0.0
    %2001 = vmatpush1.msra.mxu0 0.0
    %2002 = vmatprep.subr.mxu0 0.0
    %2003 = vmatpush1.msra.mxu0 0.0
    %2004 = vmatprep.subr.mxu0 0.0
    %2005 = vmatpush1.msra.mxu0 0.0
    %2006 = vmatprep.subr.mxu0 0.0
    %2007 = vmatpush1.msra.mxu0 0.0
    %2008 = vmatprep.subr.mxu0 0.0
    %2009 = vmatpush1.msra.mxu0 0.0
    %2010 = vmatprep.subr.mxu0 0.0
    %2011 = vmatpush1.msra.mxu0 0.0
    %2012 = vmatprep.subr.mxu0 0.0
    %2013 = vmatpush1.msra.mxu0 0.0
    %2014 = vmatprep.subr.mxu0 0.0
    %2015 = vmatpush1.msra.mxu0 0.0
    %2016 = vmatprep.subr.mxu0 0.0
    %2017 = vmatpush1.msra.mxu0 0.0
    %2018 = vmatprep.subr.mxu0 0.0
    %2019 = vmatpush1.msra.mxu0 0.0
    %2020 = vmatprep.subr.mxu0 0.0
    %2021 = vmatpush1.msra.mxu0 0.0
    %2022 = vmatprep.subr.mxu0 0.0
    %2023 = vmatpush1.msra.mxu0 0.0
    %2024 = vmatprep.subr.mxu0 0.0
    %2025 = vmatpush1.msra.mxu0 0.0
    %2026 = vmatprep.subr.mxu0 0.0
    %2027 = vmatpush1.msra.mxu0 0.0
    %2028 = vmatprep.subr.mxu0 0.0
    %2029 = vmatpush1.msra.mxu0 0.0
    %2030 = vmatprep.subr.mxu0 0.0
    %2031 = vmatpush1.msra.mxu0 0.0
    %2032 = vmatprep.subr.mxu0 0.0
    %2033 = vmatpush1.msra.mxu0 0.0
    %2034 = vmatprep.subr.mxu0 0.0
    %2035 = vmatpush1.msra.mxu0 0.0
    %2036 = vmatprep.subr.mxu0 0.0
    %2037 = vmatpush1.msra.mxu0 0.0
    %2038 = vmatprep.subr.mxu0 0.0
    %2039 = vmatpush1.msra.mxu0 0.0
    %2040 = vmatprep.subr.mxu0 0.0
    %2041 = vmatpush1.msra.mxu0 0.0
    %2042 = vmatprep.subr.mxu0 0.0
    %2043 = vmatpush1.msra.mxu0 0.0
    %2044 = vmatprep.subr.mxu0 0.0
    %2045 = vmatpush1.msra.mxu0 0.0
    %2046 = vmatprep.mubr.f32.mxu0 0.0
    %2047 = vmatmul.mubr.f32.gmra.mrb[0].mxu0 %v1980
    %v2048 = vpop.f32.mrb[0].mxu0
    %v2049 = vadd.f32 %v1976, %v2048
    %v2050 = vpop.f32.mrb[0].mxu0
    %2051 = vdwg.mxu0
    %v2052 = vmax.f32 %v2049, 0.0
    %v2053 = vsel %vm489, %v2052, 0.0
    %2054 = vadd.xlane.f32.xlu0 %v2053
    %v2055 = vpop.xlane.xlu0 %2054
    %v2056 = vmul.f32 %v2055, %v1940
    %v2057 = vsub.f32 %v2052, %v2056
    %v2058 = vmul.f32 %v2057, %v2057
    %v2059 = vsel %vm489, %v2058, 0.0
    %2060 = vadd.xlane.f32.xlu0 %v2059
    %v2061 = vpop.xlane.xlu0 %2060
    %v2062 = vmul.f32 %v2061, %v1940
    %v2063 = vadd.f32 %v2062, 1e-05
    %v2064 = vrsqrt.pop %v2063
    %v2065 = vmul.f32 %v2057, %v2064
    %v2067 = vlaneseq
    %v2068 = vshrl.u32 %v2067, 7
    %v2069 = vsub.s32 0, %v2068
    %v2070 = vrot.slane %v1970, %v2069
    %v2072 = vmul.f32 %v2065, %v2070
    %v2074 = vlaneseq
    %v2075 = vshrl.u32 %v2074, 7
    %v2076 = vsub.s32 0, %v2075
    %v2077 = vrot.slane %v1971, %v2076
    %v2079 = vadd.f32 %v2072, %v2077
    %v2080 = vld [vmem:[#allocation28] sm:$0xff]
    %v2081 = vld [vmem:[#allocation28 + $0x8] sm:$0xff]
    %v2082 = vld [vmem:[#allocation28 + $0x10] sm:$0xff]
    %v2083 = vld [vmem:[#allocation28 + $0x18] sm:$0xff]
    %v2084 = vld [vmem:[#allocation29] sm:$0x1]
    %v2085 = vld [vmem:[%s61] sm:$0x1]
    %v2086 = vld [vmem:[%s63] sm:$0x1]
    %v2088 = vlaneseq
    %v2089 = vshrl.u32 %v2088, 7
    %v2090 = vsub.s32 0, %v2089
    %v2091 = vrot.slane %v2084, %v2090
    %v2094 = vsel %vm1978, %v1456, 0
    %2096 = vmatprep.subr.mxu0 0.0
    %2097 = vmatpush1.msra.mxu0 %v2080
    %2098 = vmatprep.subr.mxu0 0.0
    %2099 = vmatpush1.msra.mxu0 %v2081
    %2100 = vmatprep.subr.mxu0 0.0
    %2101 = vmatpush1.msra.mxu0 %v2082
    %2102 = vmatprep.subr.mxu0 0.0
    %2103 = vmatpush1.msra.mxu0 %v2083
    %2104 = vmatprep.subr.mxu0 0.0
    %2105 = vmatpush1.msra.mxu0 0.0
    %2106 = vmatprep.subr.mxu0 0.0
    %2107 = vmatpush1.msra.mxu0 0.0
    %2108 = vmatprep.subr.mxu0 0.0
    %2109 = vmatpush1.msra.mxu0 0.0
    %2110 = vmatprep.subr.mxu0 0.0
    %2111 = vmatpush1.msra.mxu0 0.0
    %2112 = vmatprep.subr.mxu0 0.0
    %2113 = vmatpush1.msra.mxu0 0.0
    %2114 = vmatprep.subr.mxu0 0.0
    %2115 = vmatpush1.msra.mxu0 0.0
    %2116 = vmatprep.subr.mxu0 0.0
    %2117 = vmatpush1.msra.mxu0 0.0
    %2118 = vmatprep.subr.mxu0 0.0
    %2119 = vmatpush1.msra.mxu0 0.0
    %2120 = vmatprep.subr.mxu0 0.0
    %2121 = vmatpush1.msra.mxu0 0.0
    %2122 = vmatprep.subr.mxu0 0.0
    %2123 = vmatpush1.msra.mxu0 0.0
    %2124 = vmatprep.subr.mxu0 0.0
    %2125 = vmatpush1.msra.mxu0 0.0
    %2126 = vmatprep.subr.mxu0 0.0
    %2127 = vmatpush1.msra.mxu0 0.0
    %2128 = vmatprep.subr.mxu0 0.0
    %2129 = vmatpush1.msra.mxu0 0.0
    %2130 = vmatprep.subr.mxu0 0.0
    %2131 = vmatpush1.msra.mxu0 0.0
    %2132 = vmatprep.subr.mxu0 0.0
    %2133 = vmatpush1.msra.mxu0 0.0
    %2134 = vmatprep.subr.mxu0 0.0
    %2135 = vmatpush1.msra.mxu0 0.0
    %2136 = vmatprep.subr.mxu0 0.0
    %2137 = vmatpush1.msra.mxu0 0.0
    %2138 = vmatprep.subr.mxu0 0.0
    %2139 = vmatpush1.msra.mxu0 0.0
    %2140 = vmatprep.subr.mxu0 0.0
    %2141 = vmatpush1.msra.mxu0 0.0
    %2142 = vmatprep.subr.mxu0 0.0
    %2143 = vmatpush1.msra.mxu0 0.0
    %2144 = vmatprep.subr.mxu0 0.0
    %2145 = vmatpush1.msra.mxu0 0.0
    %2146 = vmatprep.subr.mxu0 0.0
    %2147 = vmatpush1.msra.mxu0 0.0
    %2148 = vmatprep.subr.mxu0 0.0
    %2149 = vmatpush1.msra.mxu0 0.0
    %2150 = vmatprep.subr.mxu0 0.0
    %2151 = vmatpush1.msra.mxu0 0.0
    %2152 = vmatprep.subr.mxu0 0.0
    %2153 = vmatpush1.msra.mxu0 0.0
    %2154 = vmatprep.subr.mxu0 0.0
    %2155 = vmatpush1.msra.mxu0 0.0
    %2156 = vmatprep.subr.mxu0 0.0
    %2157 = vmatpush1.msra.mxu0 0.0
    %2158 = vmatprep.subr.mxu0 0.0
    %2159 = vmatpush1.msra.mxu0 0.0
    %2160 = vmatprep.mubr.f32.mxu0 0.0
    %2161 = vmatmul.mubr.f32.gmra.mrb[0].mxu0 %v2094
    %v2162 = vpop.f32.mrb[0].mxu0
    %v2163 = vadd.f32 %v2091, %v2162
    %v2164 = vpop.f32.mrb[0].mxu0
    %2165 = vdwg.mxu0
    %v2166 = vmax.f32 %v2163, 0.0
    %v2167 = vsel %vm489, %v2166, 0.0
    %2168 = vadd.xlane.f32.xlu0 %v2167
    %v2169 = vpop.xlane.xlu0 %2168
    %v2170 = vmul.f32 %v2169, %v1940
    %v2171 = vsub.f32 %v2166, %v2170
    %v2172 = vmul.f32 %v2171, %v2171
    %v2173 = vsel %vm489, %v2172, 0.0
    %2174 = vadd.xlane.f32.xlu0 %v2173
    %v2175 = vpop.xlane.xlu0 %2174
    %v2176 = vmul.f32 %v2175, %v1940
    %v2177 = vadd.f32 %v2176, 1e-05
    %v2178 = vrsqrt.pop %v2177
    %v2179 = vmul.f32 %v2171, %v2178
    %v2181 = vlaneseq
    %v2182 = vshrl.u32 %v2181, 7
    %v2183 = vsub.s32 0, %v2182
    %v2184 = vrot.slane %v2085, %v2183
    %v2186 = vmul.f32 %v2179, %v2184
    %v2188 = vlaneseq
    %v2189 = vshrl.u32 %v2188, 7
    %v2190 = vsub.s32 0, %v2189
    %v2191 = vrot.slane %v2086, %v2190
    %v2193 = vadd.f32 %v2186, %v2191
    %v2194 = vld [vmem:[%s65] sm:$0xff]
    %v2195 = vld [vmem:[%s65 + $0x8] sm:$0xff]
    %v2196 = vld [vmem:[%s65 + $0x10] sm:$0xff]
    %v2197 = vld [vmem:[%s65 + $0x18] sm:$0xff]
    %v2198 = vld [vmem:[%s65 + $0x20] sm:$0xff]
    %v2199 = vld [vmem:[%s65 + $0x28] sm:$0xff]
    %v2200 = vld [vmem:[%s65 + $0x30] sm:$0xff]
    %v2201 = vld [vmem:[%s65 + $0x38] sm:$0xff]
    %v2202 = vld [vmem:[%s65 + $0x40] sm:$0xff]
    %v2203 = vld [vmem:[%s65 + $0x48] sm:$0xff]
    %v2204 = vld [vmem:[%s65 + $0x50] sm:$0xff]
    %v2205 = vld [vmem:[%s65 + $0x58] sm:$0xff]
    %v2206 = vld [vmem:[%s65 + $0x60] sm:$0xff]
    %v2207 = vld [vmem:[%s65 + $0x68] sm:$0xff]
    %v2208 = vld [vmem:[%s65 + $0x70] sm:$0xff]
    %v2209 = vld [vmem:[%s65 + $0x78] sm:$0xff]
    %v2210 = vld [vmem:[%s67] sm:$0xff]
    %v2211 = vld [vmem:[%s67 + $0x8] sm:$0xff]
    %v2212 = vld [vmem:[%s67 + $0x10] sm:$0xff]
    %v2213 = vld [vmem:[%s67 + $0x18] sm:$0xff]
    %v2214 = vld [vmem:[%s67 + $0x20] sm:$0xff]
    %v2215 = vld [vmem:[%s67 + $0x28] sm:$0xff]
    %v2216 = vld [vmem:[%s67 + $0x30] sm:$0xff]
    %v2217 = vld [vmem:[%s67 + $0x38] sm:$0xff]
    %v2218 = vld [vmem:[%s67 + $0x40] sm:$0xff]
    %v2219 = vld [vmem:[%s67 + $0x48] sm:$0xff]
    %v2220 = vld [vmem:[%s67 + $0x50] sm:$0xff]
    %v2221 = vld [vmem:[%s67 + $0x58] sm:$0xff]
    %v2222 = vld [vmem:[%s67 + $0x60] sm:$0xff]
    %v2223 = vld [vmem:[%s67 + $0x68] sm:$0xff]
    %v2224 = vld [vmem:[%s67 + $0x70] sm:$0xff]
    %v2225 = vld [vmem:[%s67 + $0x78] sm:$0xff]
    %v2227 = vsel %vm909, %v2079, 0
    %2229 = vmatprep.subr.mxu0 %v2211
    %2230 = vmatpush1.msra.mxu0 %v2210
    %2231 = vmatprep.subr.mxu0 %v2219
    %2232 = vmatpush1.msra.mxu0 %v2218
    %2233 = vmatprep.subr.mxu0 0.0
    %2234 = vmatpush1.msra.mxu0 0.0
    %2235 = vmatprep.subr.mxu0 0.0
    %2236 = vmatpush1.msra.mxu0 0.0
    %2237 = vmatprep.subr.mxu0 0.0
    %2238 = vmatpush1.msra.mxu0 0.0
    %2239 = vmatprep.subr.mxu0 0.0
    %2240 = vmatpush1.msra.mxu0 0.0
    %2241 = vmatprep.subr.mxu0 0.0
    %2242 = vmatpush1.msra.mxu0 0.0
    %2243 = vmatprep.subr.mxu0 0.0
    %2244 = vmatpush1.msra.mxu0 0.0
    %2245 = vmatprep.subr.mxu0 0.0
    %2246 = vmatpush1.msra.mxu0 0.0
    %2247 = vmatprep.subr.mxu0 0.0
    %2248 = vmatpush1.msra.mxu0 0.0
    %2249 = vmatprep.subr.mxu0 0.0
    %2250 = vmatpush1.msra.mxu0 0.0
    %2251 = vmatprep.subr.mxu0 0.0
    %2252 = vmatpush1.msra.mxu0 0.0
    %2253 = vmatprep.subr.mxu0 0.0
    %2254 = vmatpush1.msra.mxu0 0.0
    %2255 = vmatprep.subr.mxu0 0.0
    %2256 = vmatpush1.msra.mxu0 0.0
    %2257 = vmatprep.subr.mxu0 0.0
    %2258 = vmatpush1.msra.mxu0 0.0
    %2259 = vmatprep.subr.mxu0 0.0
    %2260 = vmatpush1.msra.mxu0 0.0
    %2261 = vmatprep.subr.mxu0 0.0
    %2262 = vmatpush1.msra.mxu0 0.0
    %2263 = vmatprep.subr.mxu0 0.0
    %2264 = vmatpush1.msra.mxu0 0.0
    %2265 = vmatprep.subr.mxu0 0.0
    %2266 = vmatpush1.msra.mxu0 0.0
    %2267 = vmatprep.subr.mxu0 0.0
    %2268 = vmatpush1.msra.mxu0 0.0
    %2269 = vmatprep.subr.mxu0 0.0
    %2270 = vmatpush1.msra.mxu0 0.0
    %2271 = vmatprep.subr.mxu0 0.0
    %2272 = vmatpush1.msra.mxu0 0.0
    %2273 = vmatprep.subr.mxu0 0.0
    %2274 = vmatpush1.msra.mxu0 0.0
    %2275 = vmatprep.subr.mxu0 0.0
    %2276 = vmatpush1.msra.mxu0 0.0
    %2277 = vmatprep.subr.mxu0 0.0
    %2278 = vmatpush1.msra.mxu0 0.0
    %2279 = vmatprep.subr.mxu0 0.0
    %2280 = vmatpush1.msra.mxu0 0.0
    %2281 = vmatprep.subr.mxu0 0.0
    %2282 = vmatpush1.msra.mxu0 0.0
    %2283 = vmatprep.subr.mxu0 0.0
    %2284 = vmatpush1.msra.mxu0 0.0
    %2285 = vmatprep.subr.mxu0 0.0
    %2286 = vmatpush1.msra.mxu0 0.0
    %2287 = vmatprep.subr.mxu0 0.0
    %2288 = vmatpush1.msra.mxu0 0.0
    %2289 = vmatprep.subr.mxu0 0.0
    %2290 = vmatpush1.msra.mxu0 0.0
    %2291 = vmatprep.subr.mxu0 0.0
    %2292 = vmatpush1.msra.mxu0 0.0
    %2293 = vmatprep.mubr.f32.mxu0 0.0
    %2294 = vmatmul.mubr.f32.gmra.mrb[0].mxu0 %v2227
    %v2295 = vpop.f32.mrb[0].mxu0
    %v2296 = vadd.f32 0.0, %v2295
    %v2297 = vpop.f32.mrb[0].mxu0
    %v2298 = vadd.f32 0.0, %v2297
    %2299 = vdwg.mxu0
    %2300 = vmatprep.subr.mxu0 %v2213
    %2301 = vmatpush1.msra.mxu0 %v2212
    %2302 = vmatprep.subr.mxu0 %v2221
    %2303 = vmatpush1.msra.mxu0 %v2220
    %2304 = vmatprep.subr.mxu0 0.0
    %2305 = vmatpush1.msra.mxu0 0.0
    %2306 = vmatprep.subr.mxu0 0.0
    %2307 = vmatpush1.msra.mxu0 0.0
    %2308 = vmatprep.subr.mxu0 0.0
    %2309 = vmatpush1.msra.mxu0 0.0
    %2310 = vmatprep.subr.mxu0 0.0
    %2311 = vmatpush1.msra.mxu0 0.0
    %2312 = vmatprep.subr.mxu0 0.0
    %2313 = vmatpush1.msra.mxu0 0.0
    %2314 = vmatprep.subr.mxu0 0.0
    %2315 = vmatpush1.msra.mxu0 0.0
    %2316 = vmatprep.subr.mxu0 0.0
    %2317 = vmatpush1.msra.mxu0 0.0
    %2318 = vmatprep.subr.mxu0 0.0
    %2319 = vmatpush1.msra.mxu0 0.0
    %2320 = vmatprep.subr.mxu0 0.0
    %2321 = vmatpush1.msra.mxu0 0.0
    %2322 = vmatprep.subr.mxu0 0.0
    %2323 = vmatpush1.msra.mxu0 0.0
    %2324 = vmatprep.subr.mxu0 0.0
    %2325 = vmatpush1.msra.mxu0 0.0
    %2326 = vmatprep.subr.mxu0 0.0
    %2327 = vmatpush1.msra.mxu0 0.0
    %2328 = vmatprep.subr.mxu0 0.0
    %2329 = vmatpush1.msra.mxu0 0.0
    %2330 = vmatprep.subr.mxu0 0.0
    %2331 = vmatpush1.msra.mxu0 0.0
    %2332 = vmatprep.subr.mxu0 0.0
    %2333 = vmatpush1.msra.mxu0 0.0
    %2334 = vmatprep.subr.mxu0 0.0
    %2335 = vmatpush1.msra.mxu0 0.0
    %2336 = vmatprep.subr.mxu0 0.0
    %2337 = vmatpush1.msra.mxu0 0.0
    %2338 = vmatprep.subr.mxu0 0.0
    %2339 = vmatpush1.msra.mxu0 0.0
    %2340 = vmatprep.subr.mxu0 0.0
    %2341 = vmatpush1.msra.mxu0 0.0
    %2342 = vmatprep.subr.mxu0 0.0
    %2343 = vmatpush1.msra.mxu0 0.0
    %2344 = vmatprep.subr.mxu0 0.0
    %2345 = vmatpush1.msra.mxu0 0.0
    %2346 = vmatprep.subr.mxu0 0.0
    %2347 = vmatpush1.msra.mxu0 0.0
    %2348 = vmatprep.subr.mxu0 0.0
    %2349 = vmatpush1.msra.mxu0 0.0
    %2350 = vmatprep.subr.mxu0 0.0
    %2351 = vmatpush1.msra.mxu0 0.0
    %2352 = vmatprep.subr.mxu0 0.0
    %2353 = vmatpush1.msra.mxu0 0.0
    %2354 = vmatprep.subr.mxu0 0.0
    %2355 = vmatpush1.msra.mxu0 0.0
    %2356 = vmatprep.subr.mxu0 0.0
    %2357 = vmatpush1.msra.mxu0 0.0
    %2358 = vmatprep.subr.mxu0 0.0
    %2359 = vmatpush1.msra.mxu0 0.0
    %2360 = vmatprep.subr.mxu0 0.0
    %2361 = vmatpush1.msra.mxu0 0.0
    %2362 = vmatprep.subr.mxu0 0.0
    %2363 = vmatpush1.msra.mxu0 0.0
    %2364 = vmatprep.mubr.f32.mxu0 0.0
    %2365 = vmatmul.mubr.f32.gmra.mrb[0].mxu0 %v2227
    %v2366 = vpop.f32.mrb[0].mxu0
    %v2367 = vadd.f32 0.0, %v2366
    %v2368 = vpop.f32.mrb[0].mxu0
    %v2369 = vadd.f32 0.0, %v2368
    %2370 = vdwg.mxu0
    %2371 = vmatprep.subr.mxu0 %v2215
    %2372 = vmatpush1.msra.mxu0 %v2214
    %2373 = vmatprep.subr.mxu0 %v2223
    %2374 = vmatpush1.msra.mxu0 %v2222
    %2375 = vmatprep.subr.mxu0 0.0
    %2376 = vmatpush1.msra.mxu0 0.0
    %2377 = vmatprep.subr.mxu0 0.0
    %2378 = vmatpush1.msra.mxu0 0.0
    %2379 = vmatprep.subr.mxu0 0.0
    %2380 = vmatpush1.msra.mxu0 0.0
    %2381 = vmatprep.subr.mxu0 0.0
    %2382 = vmatpush1.msra.mxu0 0.0
    %2383 = vmatprep.subr.mxu0 0.0
    %2384 = vmatpush1.msra.mxu0 0.0
    %2385 = vmatprep.subr.mxu0 0.0
    %2386 = vmatpush1.msra.mxu0 0.0
    %2387 = vmatprep.subr.mxu0 0.0
    %2388 = vmatpush1.msra.mxu0 0.0
    %2389 = vmatprep.subr.mxu0 0.0
    %2390 = vmatpush1.msra.mxu0 0.0
    %2391 = vmatprep.subr.mxu0 0.0
    %2392 = vmatpush1.msra.mxu0 0.0
    %2393 = vmatprep.subr.mxu0 0.0
    %2394 = vmatpush1.msra.mxu0 0.0
    %2395 = vmatprep.subr.mxu0 0.0
    %2396 = vmatpush1.msra.mxu0 0.0
    %2397 = vmatprep.subr.mxu0 0.0
    %2398 = vmatpush1.msra.mxu0 0.0
    %2399 = vmatprep.subr.mxu0 0.0
    %2400 = vmatpush1.msra.mxu0 0.0
    %2401 = vmatprep.subr.mxu0 0.0
    %2402 = vmatpush1.msra.mxu0 0.0
    %2403 = vmatprep.subr.mxu0 0.0
    %2404 = vmatpush1.msra.mxu0 0.0
    %2405 = vmatprep.subr.mxu0 0.0
    %2406 = vmatpush1.msra.mxu0 0.0
    %2407 = vmatprep.subr.mxu0 0.0
    %2408 = vmatpush1.msra.mxu0 0.0
    %2409 = vmatprep.subr.mxu0 0.0
    %2410 = vmatpush1.msra.mxu0 0.0
    %2411 = vmatprep.subr.mxu0 0.0
    %2412 = vmatpush1.msra.mxu0 0.0
    %2413 = vmatprep.subr.mxu0 0.0
    %2414 = vmatpush1.msra.mxu0 0.0
    %2415 = vmatprep.subr.mxu0 0.0
    %2416 = vmatpush1.msra.mxu0 0.0
    %2417 = vmatprep.subr.mxu0 0.0
    %2418 = vmatpush1.msra.mxu0 0.0
    %2419 = vmatprep.subr.mxu0 0.0
    %2420 = vmatpush1.msra.mxu0 0.0
    %2421 = vmatprep.subr.mxu0 0.0
    %2422 = vmatpush1.msra.mxu0 0.0
    %2423 = vmatprep.subr.mxu0 0.0
    %2424 = vmatpush1.msra.mxu0 0.0
    %2425 = vmatprep.subr.mxu0 0.0
    %2426 = vmatpush1.msra.mxu0 0.0
    %2427 = vmatprep.subr.mxu0 0.0
    %2428 = vmatpush1.msra.mxu0 0.0
    %2429 = vmatprep.subr.mxu0 0.0
    %2430 = vmatpush1.msra.mxu0 0.0
    %2431 = vmatprep.subr.mxu0 0.0
    %2432 = vmatpush1.msra.mxu0 0.0
    %2433 = vmatprep.subr.mxu0 0.0
    %2434 = vmatpush1.msra.mxu0 0.0
    %2435 = vmatprep.mubr.f32.mxu0 0.0
    %2436 = vmatmul.mubr.f32.gmra.mrb[0].mxu0 %v2227
    %v2437 = vpop.f32.mrb[0].mxu0
    %v2438 = vadd.f32 0.0, %v2437
    %v2439 = vpop.f32.mrb[0].mxu0
    %v2440 = vadd.f32 0.0, %v2439
    %2441 = vdwg.mxu0
    %2442 = vmatprep.subr.mxu0 %v2217
    %2443 = vmatpush1.msra.mxu0 %v2216
    %2444 = vmatprep.subr.mxu0 %v2225
    %2445 = vmatpush1.msra.mxu0 %v2224
    %2446 = vmatprep.subr.mxu0 0.0
    %2447 = vmatpush1.msra.mxu0 0.0
    %2448 = vmatprep.subr.mxu0 0.0
    %2449 = vmatpush1.msra.mxu0 0.0
    %2450 = vmatprep.subr.mxu0 0.0
    %2451 = vmatpush1.msra.mxu0 0.0
    %2452 = vmatprep.subr.mxu0 0.0
    %2453 = vmatpush1.msra.mxu0 0.0
    %2454 = vmatprep.subr.mxu0 0.0
    %2455 = vmatpush1.msra.mxu0 0.0
    %2456 = vmatprep.subr.mxu0 0.0
    %2457 = vmatpush1.msra.mxu0 0.0
    %2458 = vmatprep.subr.mxu0 0.0
    %2459 = vmatpush1.msra.mxu0 0.0
    %2460 = vmatprep.subr.mxu0 0.0
    %2461 = vmatpush1.msra.mxu0 0.0
    %2462 = vmatprep.subr.mxu0 0.0
    %2463 = vmatpush1.msra.mxu0 0.0
    %2464 = vmatprep.subr.mxu0 0.0
    %2465 = vmatpush1.msra.mxu0 0.0
    %2466 = vmatprep.subr.mxu0 0.0
    %2467 = vmatpush1.msra.mxu0 0.0
    %2468 = vmatprep.subr.mxu0 0.0
    %2469 = vmatpush1.msra.mxu0 0.0
    %2470 = vmatprep.subr.mxu0 0.0
    %2471 = vmatpush1.msra.mxu0 0.0
    %2472 = vmatprep.subr.mxu0 0.0
    %2473 = vmatpush1.msra.mxu0 0.0
    %2474 = vmatprep.subr.mxu0 0.0
    %2475 = vmatpush1.msra.mxu0 0.0
    %2476 = vmatprep.subr.mxu0 0.0
    %2477 = vmatpush1.msra.mxu0 0.0
    %2478 = vmatprep.subr.mxu0 0.0
    %2479 = vmatpush1.msra.mxu0 0.0
    %2480 = vmatprep.subr.mxu0 0.0
    %2481 = vmatpush1.msra.mxu0 0.0
    %2482 = vmatprep.subr.mxu0 0.0
    %2483 = vmatpush1.msra.mxu0 0.0
    %2484 = vmatprep.subr.mxu0 0.0
    %2485 = vmatpush1.msra.mxu0 0.0
    %2486 = vmatprep.subr.mxu0 0.0
    %2487 = vmatpush1.msra.mxu0 0.0
    %2488 = vmatprep.subr.mxu0 0.0
    %2489 = vmatpush1.msra.mxu0 0.0
    %2490 = vmatprep.subr.mxu0 0.0
    %2491 = vmatpush1.msra.mxu0 0.0
    %2492 = vmatprep.subr.mxu0 0.0
    %2493 = vmatpush1.msra.mxu0 0.0
    %2494 = vmatprep.subr.mxu0 0.0
    %2495 = vmatpush1.msra.mxu0 0.0
    %2496 = vmatprep.subr.mxu0 0.0
    %2497 = vmatpush1.msra.mxu0 0.0
    %2498 = vmatprep.subr.mxu0 0.0
    %2499 = vmatpush1.msra.mxu0 0.0
    %2500 = vmatprep.subr.mxu0 0.0
    %2501 = vmatpush1.msra.mxu0 0.0
    %2502 = vmatprep.subr.mxu0 0.0
    %2503 = vmatpush1.msra.mxu0 0.0
    %2504 = vmatprep.subr.mxu0 0.0
    %2505 = vmatpush1.msra.mxu0 0.0
    %2506 = vmatprep.mubr.f32.mxu0 0.0
    %2507 = vmatmul.mubr.f32.gmra.mrb[0].mxu0 %v2227
    %v2508 = vpop.f32.mrb[0].mxu0
    %v2509 = vadd.f32 0.0, %v2508
    %v2510 = vpop.f32.mrb[0].mxu0
    %v2511 = vadd.f32 0.0, %v2510
    %2512 = vdwg.mxu0
    %v2514 = vsel %vm909, %v1964, 0
    %2516 = vmatprep.subr.mxu0 %v2195
    %2517 = vmatpush1.msra.mxu0 %v2194
    %2518 = vmatprep.subr.mxu0 %v2203
    %2519 = vmatpush1.msra.mxu0 %v2202
    %2520 = vmatprep.subr.mxu0 0.0
    %2521 = vmatpush1.msra.mxu0 0.0
    %2522 = vmatprep.subr.mxu0 0.0
    %2523 = vmatpush1.msra.mxu0 0.0
    %2524 = vmatprep.subr.mxu0 0.0
    %2525 = vmatpush1.msra.mxu0 0.0
    %2526 = vmatprep.subr.mxu0 0.0
    %2527 = vmatpush1.msra.mxu0 0.0
    %2528 = vmatprep.subr.mxu0 0.0
    %2529 = vmatpush1.msra.mxu0 0.0
    %2530 = vmatprep.subr.mxu0 0.0
    %2531 = vmatpush1.msra.mxu0 0.0
    %2532 = vmatprep.subr.mxu0 0.0
    %2533 = vmatpush1.msra.mxu0 0.0
    %2534 = vmatprep.subr.mxu0 0.0
    %2535 = vmatpush1.msra.mxu0 0.0
    %2536 = vmatprep.subr.mxu0 0.0
    %2537 = vmatpush1.msra.mxu0 0.0
    %2538 = vmatprep.subr.mxu0 0.0
    %2539 = vmatpush1.msra.mxu0 0.0
    %2540 = vmatprep.subr.mxu0 0.0
    %2541 = vmatpush1.msra.mxu0 0.0
    %2542 = vmatprep.subr.mxu0 0.0
    %2543 = vmatpush1.msra.mxu0 0.0
    %2544 = vmatprep.subr.mxu0 0.0
    %2545 = vmatpush1.msra.mxu0 0.0
    %2546 = vmatprep.subr.mxu0 0.0
    %2547 = vmatpush1.msra.mxu0 0.0
    %2548 = vmatprep.subr.mxu0 0.0
    %2549 = vmatpush1.msra.mxu0 0.0
    %2550 = vmatprep.subr.mxu0 0.0
    %2551 = vmatpush1.msra.mxu0 0.0
    %2552 = vmatprep.subr.mxu0 0.0
    %2553 = vmatpush1.msra.mxu0 0.0
    %2554 = vmatprep.subr.mxu0 0.0
    %2555 = vmatpush1.msra.mxu0 0.0
    %2556 = vmatprep.subr.mxu0 0.0
    %2557 = vmatpush1.msra.mxu0 0.0
    %2558 = vmatprep.subr.mxu0 0.0
    %2559 = vmatpush1.msra.mxu0 0.0
    %2560 = vmatprep.subr.mxu0 0.0
    %2561 = vmatpush1.msra.mxu0 0.0
    %2562 = vmatprep.subr.mxu0 0.0
    %2563 = vmatpush1.msra.mxu0 0.0
    %2564 = vmatprep.subr.mxu0 0.0
    %2565 = vmatpush1.msra.mxu0 0.0
    %2566 = vmatprep.subr.mxu0 0.0
    %2567 = vmatpush1.msra.mxu0 0.0
    %2568 = vmatprep.subr.mxu0 0.0
    %2569 = vmatpush1.msra.mxu0 0.0
    %2570 = vmatprep.subr.mxu0 0.0
    %2571 = vmatpush1.msra.mxu0 0.0
    %2572 = vmatprep.subr.mxu0 0.0
    %2573 = vmatpush1.msra.mxu0 0.0
    %2574 = vmatprep.subr.mxu0 0.0
    %2575 = vmatpush1.msra.mxu0 0.0
    %2576 = vmatprep.subr.mxu0 0.0
    %2577 = vmatpush1.msra.mxu0 0.0
    %2578 = vmatprep.subr.mxu0 0.0
    %2579 = vmatpush1.msra.mxu0 0.0
    %2580 = vmatprep.mubr.f32.mxu0 0.0
    %2581 = vmatmul.mubr.f32.gmra.mrb[0].mxu0 %v2514
    %v2582 = vpop.f32.mrb[0].mxu0
    %v2583 = vadd.f32 %v2296, %v2582
    %v2584 = vpop.f32.mrb[0].mxu0
    %v2585 = vadd.f32 %v2298, %v2584
    %2586 = vdwg.mxu0
    %2587 = vmatprep.subr.mxu0 %v2197
    %2588 = vmatpush1.msra.mxu0 %v2196
    %2589 = vmatprep.subr.mxu0 %v2205
    %2590 = vmatpush1.msra.mxu0 %v2204
    %2591 = vmatprep.subr.mxu0 0.0
    %2592 = vmatpush1.msra.mxu0 0.0
    %2593 = vmatprep.subr.mxu0 0.0
    %2594 = vmatpush1.msra.mxu0 0.0
    %2595 = vmatprep.subr.mxu0 0.0
    %2596 = vmatpush1.msra.mxu0 0.0
    %2597 = vmatprep.subr.mxu0 0.0
    %2598 = vmatpush1.msra.mxu0 0.0
    %2599 = vmatprep.subr.mxu0 0.0
    %2600 = vmatpush1.msra.mxu0 0.0
    %2601 = vmatprep.subr.mxu0 0.0
    %2602 = vmatpush1.msra.mxu0 0.0
    %2603 = vmatprep.subr.mxu0 0.0
    %2604 = vmatpush1.msra.mxu0 0.0
    %2605 = vmatprep.subr.mxu0 0.0
    %2606 = vmatpush1.msra.mxu0 0.0
    %2607 = vmatprep.subr.mxu0 0.0
    %2608 = vmatpush1.msra.mxu0 0.0
    %2609 = vmatprep.subr.mxu0 0.0
    %2610 = vmatpush1.msra.mxu0 0.0
    %2611 = vmatprep.subr.mxu0 0.0
    %2612 = vmatpush1.msra.mxu0 0.0
    %2613 = vmatprep.subr.mxu0 0.0
    %2614 = vmatpush1.msra.mxu0 0.0
    %2615 = vmatprep.subr.mxu0 0.0
    %2616 = vmatpush1.msra.mxu0 0.0
    %2617 = vmatprep.subr.mxu0 0.0
    %2618 = vmatpush1.msra.mxu0 0.0
    %2619 = vmatprep.subr.mxu0 0.0
    %2620 = vmatpush1.msra.mxu0 0.0
    %2621 = vmatprep.subr.mxu0 0.0
    %2622 = vmatpush1.msra.mxu0 0.0
    %2623 = vmatprep.subr.mxu0 0.0
    %2624 = vmatpush1.msra.mxu0 0.0
    %2625 = vmatprep.subr.mxu0 0.0
    %2626 = vmatpush1.msra.mxu0 0.0
    %2627 = vmatprep.subr.mxu0 0.0
    %2628 = vmatpush1.msra.mxu0 0.0
    %2629 = vmatprep.subr.mxu0 0.0
    %2630 = vmatpush1.msra.mxu0 0.0
    %2631 = vmatprep.subr.mxu0 0.0
    %2632 = vmatpush1.msra.mxu0 0.0
    %2633 = vmatprep.subr.mxu0 0.0
    %2634 = vmatpush1.msra.mxu0 0.0
    %2635 = vmatprep.subr.mxu0 0.0
    %2636 = vmatpush1.msra.mxu0 0.0
    %2637 = vmatprep.subr.mxu0 0.0
    %2638 = vmatpush1.msra.mxu0 0.0
    %2639 = vmatprep.subr.mxu0 0.0
    %2640 = vmatpush1.msra.mxu0 0.0
    %2641 = vmatprep.subr.mxu0 0.0
    %2642 = vmatpush1.msra.mxu0 0.0
    %2643 = vmatprep.subr.mxu0 0.0
    %2644 = vmatpush1.msra.mxu0 0.0
    %2645 = vmatprep.subr.mxu0 0.0
    %2646 = vmatpush1.msra.mxu0 0.0
    %2647 = vmatprep.subr.mxu0 0.0
    %2648 = vmatpush1.msra.mxu0 0.0
    %2649 = vmatprep.subr.mxu0 0.0
    %2650 = vmatpush1.msra.mxu0 0.0
    %2651 = vmatprep.mubr.f32.mxu0 0.0
    %2652 = vmatmul.mubr.f32.gmra.mrb[0].mxu0 %v2514
    %v2653 = vpop.f32.mrb[0].mxu0
    %v2654 = vadd.f32 %v2367, %v2653
    %v2655 = vpop.f32.mrb[0].mxu0
    %v2656 = vadd.f32 %v2369, %v2655
    %2657 = vdwg.mxu0
    %2658 = vmatprep.subr.mxu0 %v2199
    %2659 = vmatpush1.msra.mxu0 %v2198
    %2660 = vmatprep.subr.mxu0 %v2207
    %2661 = vmatpush1.msra.mxu0 %v2206
    %2662 = vmatprep.subr.mxu0 0.0
    %2663 = vmatpush1.msra.mxu0 0.0
    %2664 = vmatprep.subr.mxu0 0.0
    %2665 = vmatpush1.msra.mxu0 0.0
    %2666 = vmatprep.subr.mxu0 0.0
    %2667 = vmatpush1.msra.mxu0 0.0
    %2668 = vmatprep.subr.mxu0 0.0
    %2669 = vmatpush1.msra.mxu0 0.0
    %2670 = vmatprep.subr.mxu0 0.0
    %2671 = vmatpush1.msra.mxu0 0.0
    %2672 = vmatprep.subr.mxu0 0.0
    %2673 = vmatpush1.msra.mxu0 0.0
    %2674 = vmatprep.subr.mxu0 0.0
    %2675 = vmatpush1.msra.mxu0 0.0
    %2676 = vmatprep.subr.mxu0 0.0
    %2677 = vmatpush1.msra.mxu0 0.0
    %2678 = vmatprep.subr.mxu0 0.0
    %2679 = vmatpush1.msra.mxu0 0.0
    %2680 = vmatprep.subr.mxu0 0.0
    %2681 = vmatpush1.msra.mxu0 0.0
    %2682 = vmatprep.subr.mxu0 0.0
    %2683 = vmatpush1.msra.mxu0 0.0
    %2684 = vmatprep.subr.mxu0 0.0
    %2685 = vmatpush1.msra.mxu0 0.0
    %2686 = vmatprep.subr.mxu0 0.0
    %2687 = vmatpush1.msra.mxu0 0.0
    %2688 = vmatprep.subr.mxu0 0.0
    %2689 = vmatpush1.msra.mxu0 0.0
    %2690 = vmatprep.subr.mxu0 0.0
    %2691 = vmatpush1.msra.mxu0 0.0
    %2692 = vmatprep.subr.mxu0 0.0
    %2693 = vmatpush1.msra.mxu0 0.0
    %2694 = vmatprep.subr.mxu0 0.0
    %2695 = vmatpush1.msra.mxu0 0.0
    %2696 = vmatprep.subr.mxu0 0.0
    %2697 = vmatpush1.msra.mxu0 0.0
    %2698 = vmatprep.subr.mxu0 0.0
    %2699 = vmatpush1.msra.mxu0 0.0
    %2700 = vmatprep.subr.mxu0 0.0
    %2701 = vmatpush1.msra.mxu0 0.0
    %2702 = vmatprep.subr.mxu0 0.0
    %2703 = vmatpush1.msra.mxu0 0.0
    %2704 = vmatprep.subr.mxu0 0.0
    %2705 = vmatpush1.msra.mxu0 0.0
    %2706 = vmatprep.subr.mxu0 0.0
    %2707 = vmatpush1.msra.mxu0 0.0
    %2708 = vmatprep.subr.mxu0 0.0
    %2709 = vmatpush1.msra.mxu0 0.0
    %2710 = vmatprep.subr.mxu0 0.0
    %2711 = vmatpush1.msra.mxu0 0.0
    %2712 = vmatprep.subr.mxu0 0.0
    %2713 = vmatpush1.msra.mxu0 0.0
    %2714 = vmatprep.subr.mxu0 0.0
    %2715 = vmatpush1.msra.mxu0 0.0
    %2716 = vmatprep.subr.mxu0 0.0
    %2717 = vmatpush1.msra.mxu0 0.0
    %2718 = vmatprep.subr.mxu0 0.0
    %2719 = vmatpush1.msra.mxu0 0.0
    %2720 = vmatprep.subr.mxu0 0.0
    %2721 = vmatpush1.msra.mxu0 0.0
    %2722 = vmatprep.mubr.f32.mxu0 0.0
    %2723 = vmatmul.mubr.f32.gmra.mrb[0].mxu0 %v2514
    %v2724 = vpop.f32.mrb[0].mxu0
    %v2725 = vadd.f32 %v2438, %v2724
    %v2726 = vpop.f32.mrb[0].mxu0
    %v2727 = vadd.f32 %v2440, %v2726
    %2728 = vdwg.mxu0
    %2729 = vmatprep.subr.mxu0 %v2201
    %2730 = vmatpush1.msra.mxu0 %v2200
    %2731 = vmatprep.subr.mxu0 %v2209
    %2732 = vmatpush1.msra.mxu0 %v2208
    %2733 = vmatprep.subr.mxu0 0.0
    %2734 = vmatpush1.msra.mxu0 0.0
    %2735 = vmatprep.subr.mxu0 0.0
    %2736 = vmatpush1.msra.mxu0 0.0
    %2737 = vmatprep.subr.mxu0 0.0
    %2738 = vmatpush1.msra.mxu0 0.0
    %2739 = vmatprep.subr.mxu0 0.0
    %2740 = vmatpush1.msra.mxu0 0.0
    %2741 = vmatprep.subr.mxu0 0.0
    %2742 = vmatpush1.msra.mxu0 0.0
    %2743 = vmatprep.subr.mxu0 0.0
    %2744 = vmatpush1.msra.mxu0 0.0
    %2745 = vmatprep.subr.mxu0 0.0
    %2746 = vmatpush1.msra.mxu0 0.0
    %2747 = vmatprep.subr.mxu0 0.0
    %2748 = vmatpush1.msra.mxu0 0.0
    %2749 = vmatprep.subr.mxu0 0.0
    %2750 = vmatpush1.msra.mxu0 0.0
    %2751 = vmatprep.subr.mxu0 0.0
    %2752 = vmatpush1.msra.mxu0 0.0
    %2753 = vmatprep.subr.mxu0 0.0
    %2754 = vmatpush1.msra.mxu0 0.0
    %2755 = vmatprep.subr.mxu0 0.0
    %2756 = vmatpush1.msra.mxu0 0.0
    %2757 = vmatprep.subr.mxu0 0.0
    %2758 = vmatpush1.msra.mxu0 0.0
    %2759 = vmatprep.subr.mxu0 0.0
    %2760 = vmatpush1.msra.mxu0 0.0
    %2761 = vmatprep.subr.mxu0 0.0
    %2762 = vmatpush1.msra.mxu0 0.0
    %2763 = vmatprep.subr.mxu0 0.0
    %2764 = vmatpush1.msra.mxu0 0.0
    %2765 = vmatprep.subr.mxu0 0.0
    %2766 = vmatpush1.msra.mxu0 0.0
    %2767 = vmatprep.subr.mxu0 0.0
    %2768 = vmatpush1.msra.mxu0 0.0
    %2769 = vmatprep.subr.mxu0 0.0
    %2770 = vmatpush1.msra.mxu0 0.0
    %2771 = vmatprep.subr.mxu0 0.0
    %2772 = vmatpush1.msra.mxu0 0.0
    %2773 = vmatprep.subr.mxu0 0.0
    %2774 = vmatpush1.msra.mxu0 0.0
    %2775 = vmatprep.subr.mxu0 0.0
    %2776 = vmatpush1.msra.mxu0 0.0
    %2777 = vmatprep.subr.mxu0 0.0
    %2778 = vmatpush1.msra.mxu0 0.0
    %2779 = vmatprep.subr.mxu0 0.0
    %2780 = vmatpush1.msra.mxu0 0.0
    %2781 = vmatprep.subr.mxu0 0.0
    %2782 = vmatpush1.msra.mxu0 0.0
    %2783 = vmatprep.subr.mxu0 0.0
    %2784 = vmatpush1.msra.mxu0 0.0
    %2785 = vmatprep.subr.mxu0 0.0
    %2786 = vmatpush1.msra.mxu0 0.0
    %2787 = vmatprep.subr.mxu0 0.0
    %2788 = vmatpush1.msra.mxu0 0.0
    %2789 = vmatprep.subr.mxu0 0.0
    %2790 = vmatpush1.msra.mxu0 0.0
    %2791 = vmatprep.subr.mxu0 0.0
    %2792 = vmatpush1.msra.mxu0 0.0
    %2793 = vmatprep.mubr.f32.mxu0 0.0
    %2794 = vmatmul.mubr.f32.gmra.mrb[0].mxu0 %v2514
    %v2795 = vpop.f32.mrb[0].mxu0
    %v2796 = vadd.f32 %v2509, %v2795
    %v2797 = vpop.f32.mrb[0].mxu0
    %v2798 = vadd.f32 %v2511, %v2797
    %2799 = vdwg.mxu0
    %v2800 = vld [vmem:[#allocation31] sm:$0xff]
    %v2801 = vld [vmem:[#allocation31 + $0x8] sm:$0xff]
    %v2802 = vld [vmem:[#allocation31 + $0x10] sm:$0xff]
    %v2803 = vld [vmem:[#allocation31 + $0x18] sm:$0xff]
    %v2804 = vld [vmem:[#allocation31 + $0x20] sm:$0xff]
    %v2805 = vld [vmem:[#allocation31 + $0x28] sm:$0xff]
    %v2806 = vld [vmem:[#allocation31 + $0x30] sm:$0xff]
    %v2807 = vld [vmem:[#allocation31 + $0x38] sm:$0xff]
    %v2808 = vld [vmem:[#allocation31 + $0x40] sm:$0xff]
    %v2809 = vld [vmem:[#allocation31 + $0x48] sm:$0xff]
    %v2810 = vld [vmem:[#allocation31 + $0x50] sm:$0xff]
    %v2811 = vld [vmem:[#allocation31 + $0x58] sm:$0xff]
    %v2812 = vld [vmem:[#allocation31 + $0x60] sm:$0xff]
    %v2813 = vld [vmem:[#allocation31 + $0x68] sm:$0xff]
    %v2814 = vld [vmem:[#allocation31 + $0x70] sm:$0xff]
    %v2815 = vld [vmem:[#allocation31 + $0x78] sm:$0xff]
    %v2817 = vsel %vm909, %v2193, 0
    %2819 = vmatprep.subr.mxu0 %v2801
    %2820 = vmatpush1.msra.mxu0 %v2800
    %2821 = vmatprep.subr.mxu0 %v2809
    %2822 = vmatpush1.msra.mxu0 %v2808
    %2823 = vmatprep.subr.mxu0 0.0
    %2824 = vmatpush1.msra.mxu0 0.0
    %2825 = vmatprep.subr.mxu0 0.0
    %2826 = vmatpush1.msra.mxu0 0.0
    %2827 = vmatprep.subr.mxu0 0.0
    %2828 = vmatpush1.msra.mxu0 0.0
    %2829 = vmatprep.subr.mxu0 0.0
    %2830 = vmatpush1.msra.mxu0 0.0
    %2831 = vmatprep.subr.mxu0 0.0
    %2832 = vmatpush1.msra.mxu0 0.0
    %2833 = vmatprep.subr.mxu0 0.0
    %2834 = vmatpush1.msra.mxu0 0.0
    %2835 = vmatprep.subr.mxu0 0.0
    %2836 = vmatpush1.msra.mxu0 0.0
    %2837 = vmatprep.subr.mxu0 0.0
    %2838 = vmatpush1.msra.mxu0 0.0
    %2839 = vmatprep.subr.mxu0 0.0
    %2840 = vmatpush1.msra.mxu0 0.0
    %2841 = vmatprep.subr.mxu0 0.0
    %2842 = vmatpush1.msra.mxu0 0.0
    %2843 = vmatprep.subr.mxu0 0.0
    %2844 = vmatpush1.msra.mxu0 0.0
    %2845 = vmatprep.subr.mxu0 0.0
    %2846 = vmatpush1.msra.mxu0 0.0
    %2847 = vmatprep.subr.mxu0 0.0
    %2848 = vmatpush1.msra.mxu0 0.0
    %2849 = vmatprep.subr.mxu0 0.0
    %2850 = vmatpush1.msra.mxu0 0.0
    %2851 = vmatprep.subr.mxu0 0.0
    %2852 = vmatpush1.msra.mxu0 0.0
    %2853 = vmatprep.subr.mxu0 0.0
    %2854 = vmatpush1.msra.mxu0 0.0
    %2855 = vmatprep.subr.mxu0 0.0
    %2856 = vmatpush1.msra.mxu0 0.0
    %2857 = vmatprep.subr.mxu0 0.0
    %2858 = vmatpush1.msra.mxu0 0.0
    %2859 = vmatprep.subr.mxu0 0.0
    %2860 = vmatpush1.msra.mxu0 0.0
    %2861 = vmatprep.subr.mxu0 0.0
    %2862 = vmatpush1.msra.mxu0 0.0
    %2863 = vmatprep.subr.mxu0 0.0
    %2864 = vmatpush1.msra.mxu0 0.0
    %2865 = vmatprep.subr.mxu0 0.0
    %2866 = vmatpush1.msra.mxu0 0.0
    %2867 = vmatprep.subr.mxu0 0.0
    %2868 = vmatpush1.msra.mxu0 0.0
    %2869 = vmatprep.subr.mxu0 0.0
    %2870 = vmatpush1.msra.mxu0 0.0
    %2871 = vmatprep.subr.mxu0 0.0
    %2872 = vmatpush1.msra.mxu0 0.0
    %2873 = vmatprep.subr.mxu0 0.0
    %2874 = vmatpush1.msra.mxu0 0.0
    %2875 = vmatprep.subr.mxu0 0.0
    %2876 = vmatpush1.msra.mxu0 0.0
    %2877 = vmatprep.subr.mxu0 0.0
    %2878 = vmatpush1.msra.mxu0 0.0
    %2879 = vmatprep.subr.mxu0 0.0
    %2880 = vmatpush1.msra.mxu0 0.0
    %2881 = vmatprep.subr.mxu0 0.0
    %2882 = vmatpush1.msra.mxu0 0.0
    %2883 = vmatprep.mubr.f32.mxu0 0.0
    %2884 = vmatmul.mubr.f32.gmra.mrb[0].mxu0 %v2817
    %v2885 = vpop.f32.mrb[0].mxu0
    %v2886 = vadd.f32 0.0, %v2885
    %v2887 = vpop.f32.mrb[0].mxu0
    %v2888 = vadd.f32 0.0, %v2887
    %2889 = vdwg.mxu0
    %2890 = vmatprep.subr.mxu0 %v2803
    %2891 = vmatpush1.msra.mxu0 %v2802
    %2892 = vmatprep.subr.mxu0 %v2811
    %2893 = vmatpush1.msra.mxu0 %v2810
    %2894 = vmatprep.subr.mxu0 0.0
    %2895 = vmatpush1.msra.mxu0 0.0
    %2896 = vmatprep.subr.mxu0 0.0
    %2897 = vmatpush1.msra.mxu0 0.0
    %2898 = vmatprep.subr.mxu0 0.0
    %2899 = vmatpush1.msra.mxu0 0.0
    %2900 = vmatprep.subr.mxu0 0.0
    %2901 = vmatpush1.msra.mxu0 0.0
    %2902 = vmatprep.subr.mxu0 0.0
    %2903 = vmatpush1.msra.mxu0 0.0
    %2904 = vmatprep.subr.mxu0 0.0
    %2905 = vmatpush1.msra.mxu0 0.0
    %2906 = vmatprep.subr.mxu0 0.0
    %2907 = vmatpush1.msra.mxu0 0.0
    %2908 = vmatprep.subr.mxu0 0.0
    %2909 = vmatpush1.msra.mxu0 0.0
    %2910 = vmatprep.subr.mxu0 0.0
    %2911 = vmatpush1.msra.mxu0 0.0
    %2912 = vmatprep.subr.mxu0 0.0
    %2913 = vmatpush1.msra.mxu0 0.0
    %2914 = vmatprep.subr.mxu0 0.0
    %2915 = vmatpush1.msra.mxu0 0.0
    %2916 = vmatprep.subr.mxu0 0.0
    %2917 = vmatpush1.msra.mxu0 0.0
    %2918 = vmatprep.subr.mxu0 0.0
    %2919 = vmatpush1.msra.mxu0 0.0
    %2920 = vmatprep.subr.mxu0 0.0
    %2921 = vmatpush1.msra.mxu0 0.0
    %2922 = vmatprep.subr.mxu0 0.0
    %2923 = vmatpush1.msra.mxu0 0.0
    %2924 = vmatprep.subr.mxu0 0.0
    %2925 = vmatpush1.msra.mxu0 0.0
    %2926 = vmatprep.subr.mxu0 0.0
    %2927 = vmatpush1.msra.mxu0 0.0
    %2928 = vmatprep.subr.mxu0 0.0
    %2929 = vmatpush1.msra.mxu0 0.0
    %2930 = vmatprep.subr.mxu0 0.0
    %2931 = vmatpush1.msra.mxu0 0.0
    %2932 = vmatprep.subr.mxu0 0.0
    %2933 = vmatpush1.msra.mxu0 0.0
    %2934 = vmatprep.subr.mxu0 0.0
    %2935 = vmatpush1.msra.mxu0 0.0
    %2936 = vmatprep.subr.mxu0 0.0
    %2937 = vmatpush1.msra.mxu0 0.0
    %2938 = vmatprep.subr.mxu0 0.0
    %2939 = vmatpush1.msra.mxu0 0.0
    %2940 = vmatprep.subr.mxu0 0.0
    %2941 = vmatpush1.msra.mxu0 0.0
    %2942 = vmatprep.subr.mxu0 0.0
    %2943 = vmatpush1.msra.mxu0 0.0
    %2944 = vmatprep.subr.mxu0 0.0
    %2945 = vmatpush1.msra.mxu0 0.0
    %2946 = vmatprep.subr.mxu0 0.0
    %2947 = vmatpush1.msra.mxu0 0.0
    %2948 = vmatprep.subr.mxu0 0.0
    %2949 = vmatpush1.msra.mxu0 0.0
    %2950 = vmatprep.subr.mxu0 0.0
    %2951 = vmatpush1.msra.mxu0 0.0
    %2952 = vmatprep.subr.mxu0 0.0
    %2953 = vmatpush1.msra.mxu0 0.0
    %2954 = vmatprep.mubr.f32.mxu0 0.0
    %2955 = vmatmul.mubr.f32.gmra.mrb[0].mxu0 %v2817
    %v2956 = vpop.f32.mrb[0].mxu0
    %v2957 = vadd.f32 0.0, %v2956
    %v2958 = vpop.f32.mrb[0].mxu0
    %v2959 = vadd.f32 0.0, %v2958
    %2960 = vdwg.mxu0
    %2961 = vmatprep.subr.mxu0 %v2805
    %2962 = vmatpush1.msra.mxu0 %v2804
    %2963 = vmatprep.subr.mxu0 %v2813
    %2964 = vmatpush1.msra.mxu0 %v2812
    %2965 = vmatprep.subr.mxu0 0.0
    %2966 = vmatpush1.msra.mxu0 0.0
    %2967 = vmatprep.subr.mxu0 0.0
    %2968 = vmatpush1.msra.mxu0 0.0
    %2969 = vmatprep.subr.mxu0 0.0
    %2970 = vmatpush1.msra.mxu0 0.0
    %2971 = vmatprep.subr.mxu0 0.0
    %2972 = vmatpush1.msra.mxu0 0.0
    %2973 = vmatprep.subr.mxu0 0.0
    %2974 = vmatpush1.msra.mxu0 0.0
    %2975 = vmatprep.subr.mxu0 0.0
    %2976 = vmatpush1.msra.mxu0 0.0
    %2977 = vmatprep.subr.mxu0 0.0
    %2978 = vmatpush1.msra.mxu0 0.0
    %2979 = vmatprep.subr.mxu0 0.0
    %2980 = vmatpush1.msra.mxu0 0.0
    %2981 = vmatprep.subr.mxu0 0.0
    %2982 = vmatpush1.msra.mxu0 0.0
    %2983 = vmatprep.subr.mxu0 0.0
    %2984 = vmatpush1.msra.mxu0 0.0
    %2985 = vmatprep.subr.mxu0 0.0
    %2986 = vmatpush1.msra.mxu0 0.0
    %2987 = vmatprep.subr.mxu0 0.0
    %2988 = vmatpush1.msra.mxu0 0.0
    %2989 = vmatprep.subr.mxu0 0.0
    %2990 = vmatpush1.msra.mxu0 0.0
    %2991 = vmatprep.subr.mxu0 0.0
    %2992 = vmatpush1.msra.mxu0 0.0
    %2993 = vmatprep.subr.mxu0 0.0
    %2994 = vmatpush1.msra.mxu0 0.0
    %2995 = vmatprep.subr.mxu0 0.0
    %2996 = vmatpush1.msra.mxu0 0.0
    %2997 = vmatprep.subr.mxu0 0.0
    %2998 = vmatpush1.msra.mxu0 0.0
    %2999 = vmatprep.subr.mxu0 0.0
    %3000 = vmatpush1.msra.mxu0 0.0
    %3001 = vmatprep.subr.mxu0 0.0
    %3002 = vmatpush1.msra.mxu0 0.0
    %3003 = vmatprep.subr.mxu0 0.0
    %3004 = vmatpush1.msra.mxu0 0.0
    %3005 = vmatprep.subr.mxu0 0.0
    %3006 = vmatpush1.msra.mxu0 0.0
    %3007 = vmatprep.subr.mxu0 0.0
    %3008 = vmatpush1.msra.mxu0 0.0
    %3009 = vmatprep.subr.mxu0 0.0
    %3010 = vmatpush1.msra.mxu0 0.0
    %3011 = vmatprep.subr.mxu0 0.0
    %3012 = vmatpush1.msra.mxu0 0.0
    %3013 = vmatprep.subr.mxu0 0.0
    %3014 = vmatpush1.msra.mxu0 0.0
    %3015 = vmatprep.subr.mxu0 0.0
    %3016 = vmatpush1.msra.mxu0 0.0
    %3017 = vmatprep.subr.mxu0 0.0
    %3018 = vmatpush1.msra.mxu0 0.0
    %3019 = vmatprep.subr.mxu0 0.0
    %3020 = vmatpush1.msra.mxu0 0.0
    %3021 = vmatprep.subr.mxu0 0.0
    %3022 = vmatpush1.msra.mxu0 0.0
    %3023 = vmatprep.subr.mxu0 0.0
    %3024 = vmatpush1.msra.mxu0 0.0
    %3025 = vmatprep.mubr.f32.mxu0 0.0
    %3026 = vmatmul.mubr.f32.gmra.mrb[0].mxu0 %v2817
    %v3027 = vpop.f32.mrb[0].mxu0
    %v3028 = vadd.f32 0.0, %v3027
    %v3029 = vpop.f32.mrb[0].mxu0
    %v3030 = vadd.f32 0.0, %v3029
    %3031 = vdwg.mxu0
    %3032 = vmatprep.subr.mxu0 %v2807
    %3033 = vmatpush1.msra.mxu0 %v2806
    %3034 = vmatprep.subr.mxu0 %v2815
    %3035 = vmatpush1.msra.mxu0 %v2814
    %3036 = vmatprep.subr.mxu0 0.0
    %3037 = vmatpush1.msra.mxu0 0.0
    %3038 = vmatprep.subr.mxu0 0.0
    %3039 = vmatpush1.msra.mxu0 0.0
    %3040 = vmatprep.subr.mxu0 0.0
    %3041 = vmatpush1.msra.mxu0 0.0
    %3042 = vmatprep.subr.mxu0 0.0
    %3043 = vmatpush1.msra.mxu0 0.0
    %3044 = vmatprep.subr.mxu0 0.0
    %3045 = vmatpush1.msra.mxu0 0.0
    %3046 = vmatprep.subr.mxu0 0.0
    %3047 = vmatpush1.msra.mxu0 0.0
    %3048 = vmatprep.subr.mxu0 0.0
    %3049 = vmatpush1.msra.mxu0 0.0
    %3050 = vmatprep.subr.mxu0 0.0
    %3051 = vmatpush1.msra.mxu0 0.0
    %3052 = vmatprep.subr.mxu0 0.0
    %3053 = vmatpush1.msra.mxu0 0.0
    %3054 = vmatprep.subr.mxu0 0.0
    %3055 = vmatpush1.msra.mxu0 0.0
    %3056 = vmatprep.subr.mxu0 0.0
    %3057 = vmatpush1.msra.mxu0 0.0
    %3058 = vmatprep.subr.mxu0 0.0
    %3059 = vmatpush1.msra.mxu0 0.0
    %3060 = vmatprep.subr.mxu0 0.0
    %3061 = vmatpush1.msra.mxu0 0.0
    %3062 = vmatprep.subr.mxu0 0.0
    %3063 = vmatpush1.msra.mxu0 0.0
    %3064 = vmatprep.subr.mxu0 0.0
    %3065 = vmatpush1.msra.mxu0 0.0
    %3066 = vmatprep.subr.mxu0 0.0
    %3067 = vmatpush1.msra.mxu0 0.0
    %3068 = vmatprep.subr.mxu0 0.0
    %3069 = vmatpush1.msra.mxu0 0.0
    %3070 = vmatprep.subr.mxu0 0.0
    %3071 = vmatpush1.msra.mxu0 0.0
    %3072 = vmatprep.subr.mxu0 0.0
    %3073 = vmatpush1.msra.mxu0 0.0
    %3074 = vmatprep.subr.mxu0 0.0
    %3075 = vmatpush1.msra.mxu0 0.0
    %3076 = vmatprep.subr.mxu0 0.0
    %3077 = vmatpush1.msra.mxu0 0.0
    %3078 = vmatprep.subr.mxu0 0.0
    %3079 = vmatpush1.msra.mxu0 0.0
    %3080 = vmatprep.subr.mxu0 0.0
    %3081 = vmatpush1.msra.mxu0 0.0
    %3082 = vmatprep.subr.mxu0 0.0
    %3083 = vmatpush1.msra.mxu0 0.0
    %3084 = vmatprep.subr.mxu0 0.0
    %3085 = vmatpush1.msra.mxu0 0.0
    %3086 = vmatprep.subr.mxu0 0.0
    %3087 = vmatpush1.msra.mxu0 0.0
    %3088 = vmatprep.subr.mxu0 0.0
    %3089 = vmatpush1.msra.mxu0 0.0
    %3090 = vmatprep.subr.mxu0 0.0
    %3091 = vmatpush1.msra.mxu0 0.0
    %3092 = vmatprep.subr.mxu0 0.0
    %3093 = vmatpush1.msra.mxu0 0.0
    %3094 = vmatprep.subr.mxu0 0.0
    %3095 = vmatpush1.msra.mxu0 0.0
    %3096 = vmatprep.mubr.f32.mxu0 0.0
    %3097 = vmatmul.mubr.f32.gmra.mrb[0].mxu0 %v2817
    %v3098 = vpop.f32.mrb[0].mxu0
    %v3099 = vadd.f32 0.0, %v3098
    %v3100 = vpop.f32.mrb[0].mxu0
    %v3101 = vadd.f32 0.0, %v3100
    %3102 = vdwg.mxu0
    %v3103 = vadd.f32 %v2583, %v2886
    %v3104 = vadd.f32 %v2585, %v2888
    %v3105 = vadd.f32 %v2654, %v2957
    %v3106 = vadd.f32 %v2656, %v2959
    %v3107 = vadd.f32 %v2725, %v3028
    %v3108 = vadd.f32 %v2727, %v3030
    %v3109 = vadd.f32 %v2796, %v3099
    %v3110 = vadd.f32 %v2798, %v3101
    %v3111 = vld [vmem:[#allocation32] sm:$0xff]
    %v3113 = vlaneseq
    %v3114 = vshrl.u32 %v3113, 7
    %v3115 = vsub.s32 0, %v3114
    %v3116 = vrot.slane %v3111, %v3115
    %v3117 = vlaneseq
    %v3118 = vshrl.u32 %v3117, 7
    %v3119 = vsub.s32 1, %v3118
    %v3120 = vrot.slane %v3111, %v3119
    %v3121 = vlaneseq
    %v3122 = vshrl.u32 %v3121, 7
    %v3123 = vsub.s32 2, %v3122
    %v3124 = vrot.slane %v3111, %v3123
    %v3125 = vlaneseq
    %v3126 = vshrl.u32 %v3125, 7
    %v3127 = vsub.s32 3, %v3126
    %v3128 = vrot.slane %v3111, %v3127
    %v3129 = vlaneseq
    %v3130 = vshrl.u32 %v3129, 7
    %v3131 = vsub.s32 4, %v3130
    %v3132 = vrot.slane %v3111, %v3131
    %v3133 = vlaneseq
    %v3134 = vshrl.u32 %v3133, 7
    %v3135 = vsub.s32 5, %v3134
    %v3136 = vrot.slane %v3111, %v3135
    %v3137 = vlaneseq
    %v3138 = vshrl.u32 %v3137, 7
    %v3139 = vsub.s32 6, %v3138
    %v3140 = vrot.slane %v3111, %v3139
    %v3141 = vlaneseq
    %v3142 = vshrl.u32 %v3141, 7
    %v3143 = vsub.s32 7, %v3142
    %v3144 = vrot.slane %v3111, %v3143
    %v3153 = vadd.f32 %v3103, %v3116
    %v3154 = vadd.f32 %v3104, %v3120
    %v3155 = vadd.f32 %v3105, %v3124
    %v3156 = vadd.f32 %v3106, %v3128
    %v3157 = vadd.f32 %v3107, %v3132
    %v3158 = vadd.f32 %v3108, %v3136
    %v3159 = vadd.f32 %v3109, %v3140
    %v3160 = vadd.f32 %v3110, %v3144
    %v3161 = vld [vmem:[%s73] sm:$0xff]
    %v3162 = vld [vmem:[%s73 + $0x8] sm:$0xff]
    %v3163 = vld [vmem:[%s73 + $0x10] sm:$0xff]
    %v3164 = vld [vmem:[%s73 + $0x18] sm:$0xff]
    %v3165 = vld [vmem:[%s73 + $0x20] sm:$0xff]
    %v3166 = vld [vmem:[%s73 + $0x28] sm:$0xff]
    %v3167 = vld [vmem:[%s73 + $0x30] sm:$0xff]
    %v3168 = vld [vmem:[%s73 + $0x38] sm:$0xff]
    %v3169 = vld [vmem:[%s73 + $0x40] sm:$0xff]
    %v3170 = vld [vmem:[%s73 + $0x48] sm:$0xff]
    %v3171 = vld [vmem:[%s73 + $0x50] sm:$0xff]
    %v3172 = vld [vmem:[%s73 + $0x58] sm:$0xff]
    %v3173 = vld [vmem:[%s73 + $0x60] sm:$0xff]
    %v3174 = vld [vmem:[%s73 + $0x68] sm:$0xff]
    %v3175 = vld [vmem:[%s73 + $0x70] sm:$0xff]
    %v3176 = vld [vmem:[%s73 + $0x78] sm:$0xff]
    %v3177 = vld [vmem:[%s73 + $0x80] sm:$0xff]
    %v3178 = vld [vmem:[%s73 + $0x88] sm:$0xff]
    %v3179 = vld [vmem:[%s73 + $0x90] sm:$0xff]
    %v3180 = vld [vmem:[%s73 + $0x98] sm:$0xff]
    %v3181 = vld [vmem:[%s73 + $0xa0] sm:$0xff]
    %v3182 = vld [vmem:[%s73 + $0xa8] sm:$0xff]
    %v3183 = vld [vmem:[%s73 + $0xb0] sm:$0xff]
    %v3184 = vld [vmem:[%s73 + $0xb8] sm:$0xff]
    %v3185 = vld [vmem:[%s73 + $0xc0] sm:$0xff]
    %v3186 = vld [vmem:[%s73 + $0xc8] sm:$0xff]
    %v3187 = vld [vmem:[%s73 + $0xd0] sm:$0xff]
    %v3188 = vld [vmem:[%s73 + $0xd8] sm:$0xff]
    %v3189 = vld [vmem:[%s73 + $0xe0] sm:$0xff]
    %v3190 = vld [vmem:[%s73 + $0xe8] sm:$0xff]
    %v3191 = vld [vmem:[%s73 + $0xf0] sm:$0xff]
    %v3192 = vld [vmem:[%s73 + $0xf8] sm:$0xff]
    %v3193 = vld [vmem:[%s73 + $0x100] sm:$0xff]
    %v3194 = vld [vmem:[%s73 + $0x108] sm:$0xff]
    %v3195 = vld [vmem:[%s73 + $0x110] sm:$0xff]
    %v3196 = vld [vmem:[%s73 + $0x118] sm:$0xff]
    %v3197 = vld [vmem:[%s73 + $0x120] sm:$0xff]
    %v3198 = vld [vmem:[%s73 + $0x128] sm:$0xff]
    %v3199 = vld [vmem:[%s73 + $0x130] sm:$0xff]
    %v3200 = vld [vmem:[%s73 + $0x138] sm:$0xff]
    %v3201 = vld [vmem:[%s73 + $0x140] sm:$0xff]
    %v3202 = vld [vmem:[%s73 + $0x148] sm:$0xff]
    %v3203 = vld [vmem:[%s73 + $0x150] sm:$0xff]
    %v3204 = vld [vmem:[%s73 + $0x158] sm:$0xff]
    %v3205 = vld [vmem:[%s73 + $0x160] sm:$0xff]
    %v3206 = vld [vmem:[%s73 + $0x168] sm:$0xff]
    %v3207 = vld [vmem:[%s73 + $0x170] sm:$0xff]
    %v3208 = vld [vmem:[%s73 + $0x178] sm:$0xff]
    %v3209 = vld [vmem:[%s73 + $0x180] sm:$0xff]
    %v3210 = vld [vmem:[%s73 + $0x188] sm:$0xff]
    %v3211 = vld [vmem:[%s73 + $0x190] sm:$0xff]
    %v3212 = vld [vmem:[%s73 + $0x198] sm:$0xff]
    %v3213 = vld [vmem:[%s73 + $0x1a0] sm:$0xff]
    %v3214 = vld [vmem:[%s73 + $0x1a8] sm:$0xff]
    %v3215 = vld [vmem:[%s73 + $0x1b0] sm:$0xff]
    %v3216 = vld [vmem:[%s73 + $0x1b8] sm:$0xff]
    %v3217 = vld [vmem:[%s73 + $0x1c0] sm:$0xff]
    %v3218 = vld [vmem:[%s73 + $0x1c8] sm:$0xff]
    %v3219 = vld [vmem:[%s73 + $0x1d0] sm:$0xff]
    %v3220 = vld [vmem:[%s73 + $0x1d8] sm:$0xff]
    %v3221 = vld [vmem:[%s73 + $0x1e0] sm:$0xff]
    %v3222 = vld [vmem:[%s73 + $0x1e8] sm:$0xff]
    %v3223 = vld [vmem:[%s73 + $0x1f0] sm:$0xff]
    %v3224 = vld [vmem:[%s73 + $0x1f8] sm:$0xff]
    %v3225 = vld [vmem:[%s73 + $0x200] sm:$0xff]
    %v3226 = vld [vmem:[%s73 + $0x208] sm:$0xff]
    %v3227 = vld [vmem:[%s73 + $0x210] sm:$0xff]
    %v3228 = vld [vmem:[%s73 + $0x218] sm:$0xff]
    %v3229 = vld [vmem:[%s73 + $0x220] sm:$0xff]
    %v3230 = vld [vmem:[%s73 + $0x228] sm:$0xff]
    %v3231 = vld [vmem:[%s73 + $0x230] sm:$0xff]
    %v3232 = vld [vmem:[%s73 + $0x238] sm:$0xff]
    %v3233 = vld [vmem:[%s73 + $0x240] sm:$0xff]
    %v3234 = vld [vmem:[%s73 + $0x248] sm:$0xff]
    %v3235 = vld [vmem:[%s73 + $0x250] sm:$0xff]
    %v3236 = vld [vmem:[%s73 + $0x258] sm:$0xff]
    %v3237 = vld [vmem:[%s73 + $0x260] sm:$0xff]
    %v3238 = vld [vmem:[%s73 + $0x268] sm:$0xff]
    %v3239 = vld [vmem:[%s73 + $0x270] sm:$0xff]
    %v3240 = vld [vmem:[%s73 + $0x278] sm:$0xff]
    %v3241 = vld [vmem:[%s73 + $0x280] sm:$0xff]
    %v3242 = vld [vmem:[%s73 + $0x288] sm:$0xff]
    %v3243 = vld [vmem:[%s73 + $0x290] sm:$0xff]
    %v3244 = vld [vmem:[%s73 + $0x298] sm:$0xff]
    %v3245 = vld [vmem:[%s73 + $0x2a0] sm:$0xff]
    %v3246 = vld [vmem:[%s73 + $0x2a8] sm:$0xff]
    %v3247 = vld [vmem:[%s73 + $0x2b0] sm:$0xff]
    %v3248 = vld [vmem:[%s73 + $0x2b8] sm:$0xff]
    %v3249 = vld [vmem:[%s73 + $0x2c0] sm:$0xff]
    %v3250 = vld [vmem:[%s73 + $0x2c8] sm:$0xff]
    %v3251 = vld [vmem:[%s73 + $0x2d0] sm:$0xff]
    %v3252 = vld [vmem:[%s73 + $0x2d8] sm:$0xff]
    %v3253 = vld [vmem:[%s73 + $0x2e0] sm:$0xff]
    %v3254 = vld [vmem:[%s73 + $0x2e8] sm:$0xff]
    %v3255 = vld [vmem:[%s73 + $0x2f0] sm:$0xff]
    %v3256 = vld [vmem:[%s73 + $0x2f8] sm:$0xff]
    %v3257 = vld [vmem:[%s73 + $0x300] sm:$0xff]
    %v3258 = vld [vmem:[%s73 + $0x308] sm:$0xff]
    %v3259 = vld [vmem:[%s73 + $0x310] sm:$0xff]
    %v3260 = vld [vmem:[%s73 + $0x318] sm:$0xff]
    %v3261 = vld [vmem:[%s73 + $0x320] sm:$0xff]
    %v3262 = vld [vmem:[%s73 + $0x328] sm:$0xff]
    %v3263 = vld [vmem:[%s73 + $0x330] sm:$0xff]
    %v3264 = vld [vmem:[%s73 + $0x338] sm:$0xff]
    %v3265 = vld [vmem:[%s73 + $0x340] sm:$0xff]
    %v3266 = vld [vmem:[%s73 + $0x348] sm:$0xff]
    %v3267 = vld [vmem:[%s73 + $0x350] sm:$0xff]
    %v3268 = vld [vmem:[%s73 + $0x358] sm:$0xff]
    %v3269 = vld [vmem:[%s73 + $0x360] sm:$0xff]
    %v3270 = vld [vmem:[%s73 + $0x368] sm:$0xff]
    %v3271 = vld [vmem:[%s73 + $0x370] sm:$0xff]
    %v3272 = vld [vmem:[%s73 + $0x378] sm:$0xff]
    %v3273 = vld [vmem:[%s73 + $0x380] sm:$0xff]
    %v3274 = vld [vmem:[%s73 + $0x388] sm:$0xff]
    %v3275 = vld [vmem:[%s73 + $0x390] sm:$0xff]
    %v3276 = vld [vmem:[%s73 + $0x398] sm:$0xff]
    %v3277 = vld [vmem:[%s73 + $0x3a0] sm:$0xff]
    %v3278 = vld [vmem:[%s73 + $0x3a8] sm:$0xff]
    %v3279 = vld [vmem:[%s73 + $0x3b0] sm:$0xff]
    %v3280 = vld [vmem:[%s73 + $0x3b8] sm:$0xff]
    %v3281 = vld [vmem:[%s73 + $0x3c0] sm:$0xff]
    %v3282 = vld [vmem:[%s73 + $0x3c8] sm:$0xff]
    %v3283 = vld [vmem:[%s73 + $0x3d0] sm:$0xff]
    %v3284 = vld [vmem:[%s73 + $0x3d8] sm:$0xff]
    %v3285 = vld [vmem:[%s73 + $0x3e0] sm:$0xff]
    %vm3286 = vcmask 850944
    %v3288 = vsel %vm3286, %v3160, 0
    %3290 = vmatprep.subr.mxu0 0.0
    %3291 = vmatpush1.msra.mxu0 %v3161
    %3292 = vmatprep.subr.mxu0 0.0
    %3293 = vmatpush1.msra.mxu0 %v3162
    %3294 = vmatprep.subr.mxu0 0.0
    %3295 = vmatpush1.msra.mxu0 %v3163
    %3296 = vmatprep.subr.mxu0 0.0
    %3297 = vmatpush1.msra.mxu0 %v3164
    %3298 = vmatprep.subr.mxu0 0.0
    %3299 = vmatpush1.msra.mxu0 %v3165
    %3300 = vmatprep.subr.mxu0 0.0
    %3301 = vmatpush1.msra.mxu0 %v3166
    %3302 = vmatprep.subr.mxu0 0.0
    %3303 = vmatpush1.msra.mxu0 %v3167
    %3304 = vmatprep.subr.mxu0 0.0
    %3305 = vmatpush1.msra.mxu0 %v3168
    %3306 = vmatprep.subr.mxu0 0.0
    %3307 = vmatpush1.msra.mxu0 %v3169
    %3308 = vmatprep.subr.mxu0 0.0
    %3309 = vmatpush1.msra.mxu0 %v3170
    %3310 = vmatprep.subr.mxu0 0.0
    %3311 = vmatpush1.msra.mxu0 %v3171
    %3312 = vmatprep.subr.mxu0 0.0
    %3313 = vmatpush1.msra.mxu0 %v3172
    %3314 = vmatprep.subr.mxu0 0.0
    %3315 = vmatpush1.msra.mxu0 %v3173
    %3316 = vmatprep.subr.mxu0 0.0
    %3317 = vmatpush1.msra.mxu0 %v3174
    %3318 = vmatprep.subr.mxu0 0.0
    %3319 = vmatpush1.msra.mxu0 %v3175
    %3320 = vmatprep.subr.mxu0 0.0
    %3321 = vmatpush1.msra.mxu0 %v3176
    %3322 = vmatprep.subr.mxu0 0.0
    %3323 = vmatpush1.msra.mxu0 %v3177
    %3324 = vmatprep.subr.mxu0 0.0
    %3325 = vmatpush1.msra.mxu0 %v3178
    %3326 = vmatprep.subr.mxu0 0.0
    %3327 = vmatpush1.msra.mxu0 %v3179
    %3328 = vmatprep.subr.mxu0 0.0
    %3329 = vmatpush1.msra.mxu0 %v3180
    %3330 = vmatprep.subr.mxu0 0.0
    %3331 = vmatpush1.msra.mxu0 %v3181
    %3332 = vmatprep.subr.mxu0 0.0
    %3333 = vmatpush1.msra.mxu0 %v3182
    %3334 = vmatprep.subr.mxu0 0.0
    %3335 = vmatpush1.msra.mxu0 %v3183
    %3336 = vmatprep.subr.mxu0 0.0
    %3337 = vmatpush1.msra.mxu0 %v3184
    %3338 = vmatprep.subr.mxu0 0.0
    %3339 = vmatpush1.msra.mxu0 %v3185
    %3340 = vmatprep.subr.mxu0 0.0
    %3341 = vmatpush1.msra.mxu0 %v3186
    %3342 = vmatprep.subr.mxu0 0.0
    %3343 = vmatpush1.msra.mxu0 %v3187
    %3344 = vmatprep.subr.mxu0 0.0
    %3345 = vmatpush1.msra.mxu0 %v3188
    %3346 = vmatprep.subr.mxu0 0.0
    %3347 = vmatpush1.msra.mxu0 %v3189
    %3348 = vmatprep.subr.mxu0 0.0
    %3349 = vmatpush1.msra.mxu0 %v3190
    %3350 = vmatprep.subr.mxu0 0.0
    %3351 = vmatpush1.msra.mxu0 %v3191
    %3352 = vmatprep.subr.mxu0 0.0
    %3353 = vmatpush1.msra.mxu0 %v3192
    %3354 = vmatprep.mubr.f32.mxu0 %v3154
    %3355 = vmatmul.mubr.f32.gmra.mrb[0].mxu0 %v3153
    %v3356 = vpop.f32.mrb[0].mxu0
    %v3357 = vadd.f32 0.0, %v3356
    %v3358 = vpop.f32.mrb[0].mxu0
    %3359 = vdwg.mxu0
    %3360 = vmatprep.subr.mxu0 0.0
    %3361 = vmatpush1.msra.mxu0 %v3193
    %3362 = vmatprep.subr.mxu0 0.0
    %3363 = vmatpush1.msra.mxu0 %v3194
    %3364 = vmatprep.subr.mxu0 0.0
    %3365 = vmatpush1.msra.mxu0 %v3195
    %3366 = vmatprep.subr.mxu0 0.0
    %3367 = vmatpush1.msra.mxu0 %v3196
    %3368 = vmatprep.subr.mxu0 0.0
    %3369 = vmatpush1.msra.mxu0 %v3197
    %3370 = vmatprep.subr.mxu0 0.0
    %3371 = vmatpush1.msra.mxu0 %v3198
    %3372 = vmatprep.subr.mxu0 0.0
    %3373 = vmatpush1.msra.mxu0 %v3199
    %3374 = vmatprep.subr.mxu0 0.0
    %3375 = vmatpush1.msra.mxu0 %v3200
    %3376 = vmatprep.subr.mxu0 0.0
    %3377 = vmatpush1.msra.mxu0 %v3201
    %3378 = vmatprep.subr.mxu0 0.0
    %3379 = vmatpush1.msra.mxu0 %v3202
    %3380 = vmatprep.subr.mxu0 0.0
    %3381 = vmatpush1.msra.mxu0 %v3203
    %3382 = vmatprep.subr.mxu0 0.0
    %3383 = vmatpush1.msra.mxu0 %v3204
    %3384 = vmatprep.subr.mxu0 0.0
    %3385 = vmatpush1.msra.mxu0 %v3205
    %3386 = vmatprep.subr.mxu0 0.0
    %3387 = vmatpush1.msra.mxu0 %v3206
    %3388 = vmatprep.subr.mxu0 0.0
    %3389 = vmatpush1.msra.mxu0 %v3207
    %3390 = vmatprep.subr.mxu0 0.0
    %3391 = vmatpush1.msra.mxu0 %v3208
    %3392 = vmatprep.subr.mxu0 0.0
    %3393 = vmatpush1.msra.mxu0 %v3209
    %3394 = vmatprep.subr.mxu0 0.0
    %3395 = vmatpush1.msra.mxu0 %v3210
    %3396 = vmatprep.subr.mxu0 0.0
    %3397 = vmatpush1.msra.mxu0 %v3211
    %3398 = vmatprep.subr.mxu0 0.0
    %3399 = vmatpush1.msra.mxu0 %v3212
    %3400 = vmatprep.subr.mxu0 0.0
    %3401 = vmatpush1.msra.mxu0 %v3213
    %3402 = vmatprep.subr.mxu0 0.0
    %3403 = vmatpush1.msra.mxu0 %v3214
    %3404 = vmatprep.subr.mxu0 0.0
    %3405 = vmatpush1.msra.mxu0 %v3215
    %3406 = vmatprep.subr.mxu0 0.0
    %3407 = vmatpush1.msra.mxu0 %v3216
    %3408 = vmatprep.subr.mxu0 0.0
    %3409 = vmatpush1.msra.mxu0 %v3217
    %3410 = vmatprep.subr.mxu0 0.0
    %3411 = vmatpush1.msra.mxu0 %v3218
    %3412 = vmatprep.subr.mxu0 0.0
    %3413 = vmatpush1.msra.mxu0 %v3219
    %3414 = vmatprep.subr.mxu0 0.0
    %3415 = vmatpush1.msra.mxu0 %v3220
    %3416 = vmatprep.subr.mxu0 0.0
    %3417 = vmatpush1.msra.mxu0 %v3221
    %3418 = vmatprep.subr.mxu0 0.0
    %3419 = vmatpush1.msra.mxu0 %v3222
    %3420 = vmatprep.subr.mxu0 0.0
    %3421 = vmatpush1.msra.mxu0 %v3223
    %3422 = vmatprep.subr.mxu0 0.0
    %3423 = vmatpush1.msra.mxu0 %v3224
    %3424 = vmatprep.mubr.f32.mxu0 %v3156
    %3425 = vmatmul.mubr.f32.gmra.mrb[0].mxu0 %v3155
    %v3426 = vpop.f32.mrb[0].mxu0
    %v3427 = vadd.f32 %v3357, %v3426
    %v3428 = vpop.f32.mrb[0].mxu0
    %3429 = vdwg.mxu0
    %3430 = vmatprep.subr.mxu0 0.0
    %3431 = vmatpush1.msra.mxu0 %v3225
    %3432 = vmatprep.subr.mxu0 0.0
    %3433 = vmatpush1.msra.mxu0 %v3226
    %3434 = vmatprep.subr.mxu0 0.0
    %3435 = vmatpush1.msra.mxu0 %v3227
    %3436 = vmatprep.subr.mxu0 0.0
    %3437 = vmatpush1.msra.mxu0 %v3228
    %3438 = vmatprep.subr.mxu0 0.0
    %3439 = vmatpush1.msra.mxu0 %v3229
    %3440 = vmatprep.subr.mxu0 0.0
    %3441 = vmatpush1.msra.mxu0 %v3230
    %3442 = vmatprep.subr.mxu0 0.0
    %3443 = vmatpush1.msra.mxu0 %v3231
    %3444 = vmatprep.subr.mxu0 0.0
    %3445 = vmatpush1.msra.mxu0 %v3232
    %3446 = vmatprep.subr.mxu0 0.0
    %3447 = vmatpush1.msra.mxu0 %v3233
    %3448 = vmatprep.subr.mxu0 0.0
    %3449 = vmatpush1.msra.mxu0 %v3234
    %3450 = vmatprep.subr.mxu0 0.0
    %3451 = vmatpush1.msra.mxu0 %v3235
    %3452 = vmatprep.subr.mxu0 0.0
    %3453 = vmatpush1.msra.mxu0 %v3236
    %3454 = vmatprep.subr.mxu0 0.0
    %3455 = vmatpush1.msra.mxu0 %v3237
    %3456 = vmatprep.subr.mxu0 0.0
    %3457 = vmatpush1.msra.mxu0 %v3238
    %3458 = vmatprep.subr.mxu0 0.0
    %3459 = vmatpush1.msra.mxu0 %v3239
    %3460 = vmatprep.subr.mxu0 0.0
    %3461 = vmatpush1.msra.mxu0 %v3240
    %3462 = vmatprep.subr.mxu0 0.0
    %3463 = vmatpush1.msra.mxu0 %v3241
    %3464 = vmatprep.subr.mxu0 0.0
    %3465 = vmatpush1.msra.mxu0 %v3242
    %3466 = vmatprep.subr.mxu0 0.0
    %3467 = vmatpush1.msra.mxu0 %v3243
    %3468 = vmatprep.subr.mxu0 0.0
    %3469 = vmatpush1.msra.mxu0 %v3244
    %3470 = vmatprep.subr.mxu0 0.0
    %3471 = vmatpush1.msra.mxu0 %v3245
    %3472 = vmatprep.subr.mxu0 0.0
    %3473 = vmatpush1.msra.mxu0 %v3246
    %3474 = vmatprep.subr.mxu0 0.0
    %3475 = vmatpush1.msra.mxu0 %v3247
    %3476 = vmatprep.subr.mxu0 0.0
    %3477 = vmatpush1.msra.mxu0 %v3248
    %3478 = vmatprep.subr.mxu0 0.0
    %3479 = vmatpush1.msra.mxu0 %v3249
    %3480 = vmatprep.subr.mxu0 0.0
    %3481 = vmatpush1.msra.mxu0 %v3250
    %3482 = vmatprep.subr.mxu0 0.0
    %3483 = vmatpush1.msra.mxu0 %v3251
    %3484 = vmatprep.subr.mxu0 0.0
    %3485 = vmatpush1.msra.mxu0 %v3252
    %3486 = vmatprep.subr.mxu0 0.0
    %3487 = vmatpush1.msra.mxu0 %v3253
    %3488 = vmatprep.subr.mxu0 0.0
    %3489 = vmatpush1.msra.mxu0 %v3254
    %3490 = vmatprep.subr.mxu0 0.0
    %3491 = vmatpush1.msra.mxu0 %v3255
    %3492 = vmatprep.subr.mxu0 0.0
    %3493 = vmatpush1.msra.mxu0 %v3256
    %3494 = vmatprep.mubr.f32.mxu0 %v3158
    %3495 = vmatmul.mubr.f32.gmra.mrb[0].mxu0 %v3157
    %v3496 = vpop.f32.mrb[0].mxu0
    %v3497 = vadd.f32 %v3427, %v3496
    %v3498 = vpop.f32.mrb[0].mxu0
    %3499 = vdwg.mxu0
    %3500 = vmatprep.subr.mxu0 0.0
    %3501 = vmatpush1.msra.mxu0 %v3257
    %3502 = vmatprep.subr.mxu0 0.0
    %3503 = vmatpush1.msra.mxu0 %v3258
    %3504 = vmatprep.subr.mxu0 0.0
    %3505 = vmatpush1.msra.mxu0 %v3259
    %3506 = vmatprep.subr.mxu0 0.0
    %3507 = vmatpush1.msra.mxu0 %v3260
    %3508 = vmatprep.subr.mxu0 0.0
    %3509 = vmatpush1.msra.mxu0 %v3261
    %3510 = vmatprep.subr.mxu0 0.0
    %3511 = vmatpush1.msra.mxu0 %v3262
    %3512 = vmatprep.subr.mxu0 0.0
    %3513 = vmatpush1.msra.mxu0 %v3263
    %3514 = vmatprep.subr.mxu0 0.0
    %3515 = vmatpush1.msra.mxu0 %v3264
    %3516 = vmatprep.subr.mxu0 0.0
    %3517 = vmatpush1.msra.mxu0 %v3265
    %3518 = vmatprep.subr.mxu0 0.0
    %3519 = vmatpush1.msra.mxu0 %v3266
    %3520 = vmatprep.subr.mxu0 0.0
    %3521 = vmatpush1.msra.mxu0 %v3267
    %3522 = vmatprep.subr.mxu0 0.0
    %3523 = vmatpush1.msra.mxu0 %v3268
    %3524 = vmatprep.subr.mxu0 0.0
    %3525 = vmatpush1.msra.mxu0 %v3269
    %3526 = vmatprep.subr.mxu0 0.0
    %3527 = vmatpush1.msra.mxu0 %v3270
    %3528 = vmatprep.subr.mxu0 0.0
    %3529 = vmatpush1.msra.mxu0 %v3271
    %3530 = vmatprep.subr.mxu0 0.0
    %3531 = vmatpush1.msra.mxu0 %v3272
    %3532 = vmatprep.subr.mxu0 0.0
    %3533 = vmatpush1.msra.mxu0 %v3273
    %3534 = vmatprep.subr.mxu0 0.0
    %3535 = vmatpush1.msra.mxu0 %v3274
    %3536 = vmatprep.subr.mxu0 0.0
    %3537 = vmatpush1.msra.mxu0 %v3275
    %3538 = vmatprep.subr.mxu0 0.0
    %3539 = vmatpush1.msra.mxu0 %v3276
    %3540 = vmatprep.subr.mxu0 0.0
    %3541 = vmatpush1.msra.mxu0 %v3277
    %3542 = vmatprep.subr.mxu0 0.0
    %3543 = vmatpush1.msra.mxu0 %v3278
    %3544 = vmatprep.subr.mxu0 0.0
    %3545 = vmatpush1.msra.mxu0 %v3279
    %3546 = vmatprep.subr.mxu0 0.0
    %3547 = vmatpush1.msra.mxu0 %v3280
    %3548 = vmatprep.subr.mxu0 0.0
    %3549 = vmatpush1.msra.mxu0 %v3281
    %3550 = vmatprep.subr.mxu0 0.0
    %3551 = vmatpush1.msra.mxu0 %v3282
    %3552 = vmatprep.subr.mxu0 0.0
    %3553 = vmatpush1.msra.mxu0 %v3283
    %3554 = vmatprep.subr.mxu0 0.0
    %3555 = vmatpush1.msra.mxu0 %v3284
    %3556 = vmatprep.subr.mxu0 0.0
    %3557 = vmatpush1.msra.mxu0 %v3285
    %3558 = vmatprep.subr.mxu0 0.0
    %3559 = vmatpush1.msra.mxu0 0.0
    %3560 = vmatprep.subr.mxu0 0.0
    %3561 = vmatpush1.msra.mxu0 0.0
    %3562 = vmatprep.subr.mxu0 0.0
    %3563 = vmatpush1.msra.mxu0 0.0
    %3564 = vmatprep.mubr.f32.mxu0 %v3288
    %3565 = vmatmul.mubr.f32.gmra.mrb[0].mxu0 %v3159
    %v3566 = vpop.f32.mrb[0].mxu0
    %v3567 = vadd.f32 %v3497, %v3566
    %v3568 = vpop.f32.mrb[0].mxu0
    %3569 = vdwg.mxu0
    %v3570 = vmax.f32 %v3567, 0.0
    %v3571 = vld [vmem:[#allocation34] sm:$0xff]
    %v3572 = vld [vmem:[#allocation34 + $0x8] sm:$0xff]
    %v3573 = vld [vmem:[#allocation34 + $0x10] sm:$0xff]
    %v3574 = vld [vmem:[#allocation34 + $0x18] sm:$0xff]
    %v3575 = vld [vmem:[#allocation34 + $0x20] sm:$0xff]
    %v3576 = vld [vmem:[#allocation34 + $0x28] sm:$0xff]
    %v3577 = vld [vmem:[#allocation34 + $0x30] sm:$0xff]
    %v3578 = vld [vmem:[#allocation34 + $0x38] sm:$0xff]
    %v3579 = vld [vmem:[#allocation34 + $0x40] sm:$0xff]
    %v3580 = vld [vmem:[#allocation34 + $0x48] sm:$0xff]
    %v3581 = vld [vmem:[#allocation34 + $0x50] sm:$0xff]
    %v3582 = vld [vmem:[#allocation34 + $0x58] sm:$0xff]
    %vm3583 = vcmask 785408
    %v3585 = vsel %vm3583, %v3570, 0
    %3587 = vmatprep.subr.mxu0 0.0
    %3588 = vmatpush1.msra.mxu0 %v3571
    %3589 = vmatprep.subr.mxu0 0.0
    %3590 = vmatpush1.msra.mxu0 %v3572
    %3591 = vmatprep.subr.mxu0 0.0
    %3592 = vmatpush1.msra.mxu0 %v3573
    %3593 = vmatprep.subr.mxu0 0.0
    %3594 = vmatpush1.msra.mxu0 %v3574
    %3595 = vmatprep.subr.mxu0 0.0
    %3596 = vmatpush1.msra.mxu0 %v3575
    %3597 = vmatprep.subr.mxu0 0.0
    %3598 = vmatpush1.msra.mxu0 %v3576
    %3599 = vmatprep.subr.mxu0 0.0
    %3600 = vmatpush1.msra.mxu0 %v3577
    %3601 = vmatprep.subr.mxu0 0.0
    %3602 = vmatpush1.msra.mxu0 %v3578
    %3603 = vmatprep.subr.mxu0 0.0
    %3604 = vmatpush1.msra.mxu0 %v3579
    %3605 = vmatprep.subr.mxu0 0.0
    %3606 = vmatpush1.msra.mxu0 %v3580
    %3607 = vmatprep.subr.mxu0 0.0
    %3608 = vmatpush1.msra.mxu0 %v3581
    %3609 = vmatprep.subr.mxu0 0.0
    %3610 = vmatpush1.msra.mxu0 %v3582
    %3611 = vmatprep.subr.mxu0 0.0
    %3612 = vmatpush1.msra.mxu0 0.0
    %3613 = vmatprep.subr.mxu0 0.0
    %3614 = vmatpush1.msra.mxu0 0.0
    %3615 = vmatprep.subr.mxu0 0.0
    %3616 = vmatpush1.msra.mxu0 0.0
    %3617 = vmatprep.subr.mxu0 0.0
    %3618 = vmatpush1.msra.mxu0 0.0
    %3619 = vmatprep.subr.mxu0 0.0
    %3620 = vmatpush1.msra.mxu0 0.0
    %3621 = vmatprep.subr.mxu0 0.0
    %3622 = vmatpush1.msra.mxu0 0.0
    %3623 = vmatprep.subr.mxu0 0.0
    %3624 = vmatpush1.msra.mxu0 0.0
    %3625 = vmatprep.subr.mxu0 0.0
    %3626 = vmatpush1.msra.mxu0 0.0
    %3627 = vmatprep.subr.mxu0 0.0
    %3628 = vmatpush1.msra.mxu0 0.0
    %3629 = vmatprep.subr.mxu0 0.0
    %3630 = vmatpush1.msra.mxu0 0.0
    %3631 = vmatprep.subr.mxu0 0.0
    %3632 = vmatpush1.msra.mxu0 0.0
    %3633 = vmatprep.subr.mxu0 0.0
    %3634 = vmatpush1.msra.mxu0 0.0
    %3635 = vmatprep.subr.mxu0 0.0
    %3636 = vmatpush1.msra.mxu0 0.0
    %3637 = vmatprep.subr.mxu0 0.0
    %3638 = vmatpush1.msra.mxu0 0.0
    %3639 = vmatprep.subr.mxu0 0.0
    %3640 = vmatpush1.msra.mxu0 0.0
    %3641 = vmatprep.subr.mxu0 0.0
    %3642 = vmatpush1.msra.mxu0 0.0
    %3643 = vmatprep.subr.mxu0 0.0
    %3644 = vmatpush1.msra.mxu0 0.0
    %3645 = vmatprep.subr.mxu0 0.0
    %3646 = vmatpush1.msra.mxu0 0.0
    %3647 = vmatprep.subr.mxu0 0.0
    %3648 = vmatpush1.msra.mxu0 0.0
    %3649 = vmatprep.subr.mxu0 0.0
    %3650 = vmatpush1.msra.mxu0 0.0
    %3651 = vmatprep.mubr.f32.mxu0 0.0
    %3652 = vmatmul.mubr.f32.gmra.mrb[0].mxu0 %v3585
    %v3653 = vpop.f32.mrb[0].mxu0
    %v3654 = vadd.f32 0.0, %v3653
    %v3655 = vpop.f32.mrb[0].mxu0
    %3656 = vdwg.mxu0
    %vm3657 = vcmask 1024
    %3658 = vst.msk [vmem:[%s77] sm:$0x3] %vm3657, %v3654
    // Predicated region
    $region298: #{_lambda_.1} parent=1 // pred_check
      _
    $region299: #{_lambda_.1} parent=1 // pred_check_branch
      %3660 = sbr.rel (0) target = $region301
    $region300: #{_lambda_.1} parent=1 // pred_region
      _
    $region301: #{_lambda_.1} parent=1 // pred_fallthru
      _
    // Predicated region
    $region302: #{_lambda_.1} parent=1 // pred_check
      _
    $region303: #{_lambda_.1} parent=1 // pred_check_branch
      %3662 = sbr.rel (0) target = $region305
    $region304: #{_lambda_.1} parent=1 // pred_region
      _
    $region305: #{_lambda_.1} parent=1 // pred_fallthru
      _
    %3663 = vsyncpa [#allocation13], 1
    %3664 = vsyncpa [#allocation15], 1
    %3665 = vsyncpa [#allocation18], 1
    %3666 = vsyncpa [#allocation21], 1
    %3667 = vsyncpa [#allocation24], 1
    %3668 = vsyncpa [#allocation27], 1
    %3669 = vsyncpa [#allocation30], 1
    %3670 = vsyncpa [#allocation33], 1

</llo_original>
